<compile_context>
chip_gen: v7x
topology: tpu7x:2x2x1
jax: 0.10.0
libtpu: 0.0.40
codegen_flags: <defaults>
</compile_context>

<pallas_src>
import functools

import jax
import jax.numpy as jnp
import numpy as np
from jax.experimental import pallas as pl
from jax.experimental.pallas import tpu as pltpu

GP = 32            # per-gate lane block; 4 gates fit in one 128-lane vreg
LANES = 4 * GP     # 128
OUT_LANES = 128    # lane-dense tag-score output width


def _tree_sum(terms):
    """Balanced-tree sum: shortens the dependent add chain on serial steps."""
    while len(terms) > 1:
        nxt = [terms[i] + terms[i + 1] for i in range(0, len(terms) - 1, 2)]
        if len(terms) % 2:
            nxt.append(terms[-1])
        terms = nxt
    return terms[0]


# ------------------------------- Pallas kernel --------------------------------
def charlstm_kernel(we_ref, ce_ref, lens_ref, w_ref, out_ref, hout_ref, *,
                    N, L, Ew, EcP, Hc, Hw, T, offs):
    """Char-LSTM -> word-LSTM -> Linear -> log_softmax in one kernel.

    we_ref    [N, Ew]         word embeddings (gathered in wrapper)
    ce_ref    [L*N, EcP]      char embeddings, time-major flattened, lane-padded
    lens_ref  [N, 1] int32    valid chars per word
    w_ref     [R, 128]        packed, gate-padded weights (g-gate pre-scaled x2)
    out_ref   [N, 128]        log-softmax tag scores (lane-dense, first T valid)
    hout_ref  [N, GP]         VMEM scratch: word-LSTM hidden states per step
    """
    f32 = jnp.float32

    # ============================== char LSTM =================================
    wic = w_ref[offs["wic"]:offs["wic"] + EcP, :]                  # [EcP, 128]
    bc = w_ref[offs["bc"]:offs["bc"] + 1, :]                       # [1,   128]
    whc_rows = [w_ref[offs["whc"] + k:offs["whc"] + k + 1, :]      # Hc x [1,128]
                for k in range(Hc)]

    # Hoisted input projection: one MXU matmul for all L*N char positions.
    xc = jnp.dot(ce_ref[...], wic, preferred_element_type=f32) + bc  # [L*N,128]

    lens_b = jnp.broadcast_to(lens_ref[...], (N, GP))              # hoisted bcast

    h_c = jnp.zeros((N, GP), f32)   # padded lanes (>= Hc) stay exactly 0
    c_c = jnp.zeros((N, GP), f32)
    for t in range(L):                                             # static unroll
        # recurrent h @ W_hh^T: Hc broadcast-FMAs on the VPU (no MXU).
        rec = _tree_sum([h_c[:, k:k + 1] * whc_rows[k] for k in range(Hc)])
        gates = xc[t * N:(t + 1) * N, :] + rec                     # [N, 128]
        # ONE EUP pass for all 4 gates; g-gate pre-scaled by 2 in the packer,
        # so tanh(x) = 2*sigmoid(2x) - 1.
        s = jax.nn.sigmoid(gates)
        i_g = s[:, 0 * GP:1 * GP]
        f_g = s[:, 1 * GP:2 * GP]
        g_g = 2.0 * s[:, 2 * GP:3 * GP] - 1.0
        o_g = s[:, 3 * GP:4 * GP]
        c_new = f_g * c_c + i_g * g_g
        h_new = o_g * jnp.tanh(c_new)
        mask = lens_b > t                                          # inline compare
        c_c = jnp.where(mask, c_new, c_c)
        h_c = jnp.where(mask, h_new, h_c)
    char_h = h_c                                                   # [N, GP]

    # ============================== word LSTM =================================
    wiw_we = w_ref[offs["wiw_we"]:offs["wiw_we"] + Ew, :]          # [Ew, 128]
    wiw_ch = w_ref[offs["wiw_ch"]:offs["wiw_ch"] + 8, :]           # [8,  128]
    bw = w_ref[offs["bw"]:offs["bw"] + 1, :]                       # [1,  128]
    whw_rows = [w_ref[offs["whw"] + k:offs["whw"] + k + 1, :]      # Hw x [1,128]
                for k in range(Hw)]

    # Hoisted input projection for all N words (split matmul == concat matmul).
    xproj = (jnp.dot(we_ref[...], wiw_we, preferred_element_type=f32)
             + jnp.dot(char_h[:, :8], wiw_ch, preferred_element_type=f32)
             + bw)                                                 # [N, 128]

    h_w = jnp.zeros((1, GP), f32)
    c_w = jnp.zeros((1, GP), f32)
    for i in range(N):                                             # static unroll
        # recurrent h @ W_hh^T: Hw broadcast-FMAs on the VPU (no per-step MXU).
        rec = _tree_sum([h_w[:, k:k + 1] * whw_rows[k] for k in range(Hw)])
        gates = xproj[i:i + 1, :] + rec                            # [1, 128]
        s = jax.nn.sigmoid(gates)
        i_g = s[:, 0 * GP:1 * GP]
        f_g = s[:, 1 * GP:2 * GP]
        g_g = 2.0 * s[:, 2 * GP:3 * GP] - 1.0
        o_g = s[:, 3 * GP:4 * GP]
        c_w = f_g * c_w + i_g * g_g
        h_w = o_g * jnp.tanh(c_w)
        hout_ref[i, :] = h_w[0, :]                                 # row store

    # ========================= hidden2tag + log_softmax =======================
    wt = w_ref[offs["wt"]:offs["wt"] + Hw, :]                      # [Hw, 128]
    bt = w_ref[offs["bt"]:offs["bt"] + 1, :]                       # [1,  128]
    h_out = hout_ref[...]                                          # [N, GP]
    tag = jnp.dot(h_out[:, :Hw], wt, preferred_element_type=f32) + bt  # [N,128]
    lane = jax.lax.broadcasted_iota(jnp.int32, (N, OUT_LANES), 1)
    valid = lane < T
    tag = jnp.where(valid, tag, jnp.float32(-1e30))
    m = jnp.max(tag, axis=1, keepdims=True)
    z = tag - m
    lse = jnp.log(jnp.sum(jnp.exp(z), axis=1, keepdims=True))
    out_ref[...] = jnp.where(valid, z - lse, 0.0)                  # lane-dense vst


# ---------------------- one-time host-side weight packing ---------------------
def pack_charlstm_params(params):
    """Pack all weights/biases into ONE gate-padded [R, 128] f32 buffer (numpy,
    done once, not per forward call)."""
    f32 = np.float32
    Ew = int(params["word_emb"].shape[1])
    Ec = int(params["char_emb"].shape[1])
    Hc = int(params["whh_c"].shape[1])
    Hw = int(params["whh_w"].shape[1])
    T = int(params["wt"].shape[0])
    EcP = 8
    assert Hc <= GP and Hw <= GP and Ec <= EcP and T <= OUT_LANES

    def gate_pad(wT, H):
        # [K, 4*H] -> [K, 4*GP]; each gate in its own GP-lane block, zero-padded.
        # g-gate (index 2) pre-scaled by 2 so tanh(x) = 2*sigmoid(2x) - 1.
        wT = np.asarray(wT, f32)
        K = wT.shape[0]
        w4 = wT.reshape(K, 4, H).copy()
        w4[:, 2, :] *= 2.0
        out = np.zeros((K, 4, GP), f32)
        out[:, :, :H] = w4
        return out.reshape(K, 4 * GP)

    def rup8(n):
        return (n + 7) // 8 * 8

    rows = (("wic", EcP), ("whc", rup8(Hc)), ("bc", 8),
            ("wiw_we", rup8(Ew)), ("wiw_ch", 8),
            ("whw", rup8(Hw)), ("bw", 8), ("wt", rup8(Hw)), ("bt", 8))
    offs, off = {}, 0
    for name, r in rows:
        offs[name] = off
        off += r
    R = rup8(off)

    wih_w = np.asarray(params["wih_w"], f32)                       # [4*Hw, Ew+Hc]
    wt_p = np.zeros((Hw, OUT_LANES), f32)
    wt_p[:, :T] = np.asarray(params["wt"], f32).T
    bt_p = np.zeros((1, OUT_LANES), f32)
    bt_p[0, :T] = np.asarray(params["bt"], f32)

    pieces = {
        "wic": gate_pad(np.asarray(params["wih_c"], f32).T, Hc),       # [Ec, 128]
        "whc": gate_pad(np.asarray(params["whh_c"], f32).T, Hc),       # [Hc, 128]
        "bc": gate_pad(np.asarray(params["bih_c"] + params["bhh_c"],
                                  f32).reshape(1, -1), Hc),            # [1, 128]
        "wiw_we": gate_pad(wih_w[:, :Ew].T, Hw),                       # [Ew, 128]
        "wiw_ch": gate_pad(wih_w[:, Ew:].T, Hw),                       # [Hc, 128]
        "whw": gate_pad(np.asarray(params["whh_w"], f32).T, Hw),       # [Hw, 128]
        "bw": gate_pad(np.asarray(params["bih_w"] + params["bhh_w"],
                                  f32).reshape(1, -1), Hw),            # [1, 128]
        "wt": wt_p,                                                    # [Hw, 128]
        "bt": bt_p,                                                    # [1, 128]
    }
    wpack = np.zeros((R, LANES), f32)
    for name, arr in pieces.items():
        r = offs[name]
        wpack[r:r + arr.shape[0], :arr.shape[1]] = arr

    return {
        "wpack": jnp.asarray(wpack),
        "word_emb": jnp.asarray(params["word_emb"], jnp.float32),
        "char_emb": jnp.asarray(params["char_emb"], jnp.float32),
        "offs": offs,
        "dims": dict(Ew=Ew, Ec=Ec, EcP=EcP, Hc=Hc, Hw=Hw, T=T),
    }


# ------------------------------- per-call wrapper ------------------------------
def charlstm_forward(packed, word_ids, char_ids_padded, char_lens):
    """Embedding gathers + char padding (plain XLA), then one pallas_call."""
    f32 = jnp.float32
    d = packed["dims"]
    N = int(word_ids.shape[0])
    L = int(char_ids_padded.shape[1])
    Ew, Ec, EcP = d["Ew"], d["Ec"], d["EcP"]
    Hc, Hw, T = d["Hc"], d["Hw"], d["T"]

    we = packed["word_emb"][word_ids].astype(f32)                  # [N, Ew]
    ce = packed["char_emb"][char_ids_padded].astype(f32)           # [N, L, Ec]
    ce = jnp.transpose(ce, (1, 0, 2))                              # [L, N, Ec]
    ce = jnp.zeros((L, N, EcP), f32).at[:, :, :Ec].set(ce)
    ce = ce.reshape(L * N, EcP)                                    # time-major flat
    lens = char_lens.reshape(N, 1).astype(jnp.int32)

    kernel = functools.partial(
        charlstm_kernel, N=N, L=L, Ew=Ew, EcP=EcP, Hc=Hc, Hw=Hw, T=T,
        offs=packed["offs"])

    vmem = pl.BlockSpec(memory_space=pltpu.MemorySpace.VMEM)
    out = pl.pallas_call(
        kernel,
        out_shape=jax.ShapeDtypeStruct((N, OUT_LANES), f32),
        in_specs=[vmem, vmem, vmem, vmem],
        out_specs=vmem,
        scratch_shapes=[pltpu.VMEM((N, GP), jnp.float32)],
    )(we, ce, lens, packed["wpack"])
    return out[:, :T]


# ----------------------------- pure-JAX reference ------------------------------
def _lstm_step(x, h, c, wih, whh, b):
    H = h.shape[-1]
    gates = x @ wih.T + h @ whh.T + b
    i = jax.nn.sigmoid(gates[..., 0 * H:1 * H])
    f = jax.nn.sigmoid(gates[..., 1 * H:2 * H])
    g = jnp.tanh(gates[..., 2 * H:3 * H])
    o = jax.nn.sigmoid(gates[..., 3 * H:4 * H])
    c = f * c + i * g
    h = o * jnp.tanh(c)
    return h, c


def charlstm_reference(params, word_ids, char_ids_padded, char_lens):
    N = word_ids.shape[0]
    Hc = params["whh_c"].shape[1]
    Hw = params["whh_w"].shape[1]
    we = params["word_emb"][word_ids]
    ce = params["char_emb"][char_ids_padded]
    bc = params["bih_c"] + params["bhh_c"]
    bw = params["bih_w"] + params["bhh_w"]

    char_reprs = []
    for i in range(N):
        h = jnp.zeros((1, Hc), jnp.float32)
        c = jnp.zeros((1, Hc), jnp.float32)
        for t in range(int(char_lens[i])):
            h, c = _lstm_step(ce[i, t:t + 1, :], h, c,
                              params["wih_c"], params["whh_c"], bc)
        char_reprs.append(h)
    char_h = jnp.concatenate(char_reprs, axis=0)

    x_cat = jnp.concatenate([we, char_h], axis=1)
    h = jnp.zeros((1, Hw), jnp.float32)
    c = jnp.zeros((1, Hw), jnp.float32)
    outs = []
    for i in range(N):
        h, c = _lstm_step(x_cat[i:i + 1, :], h, c,
                          params["wih_w"], params["whh_w"], bw)
        outs.append(h)
    h_out = jnp.concatenate(outs, axis=0)

    tag = h_out @ params["wt"].T + params["bt"]
    return jax.nn.log_softmax(tag, axis=1)


# ------------------------------------ main -------------------------------------
if __name__ == "__main__":
    # Module hyper-parameters (char dims forced to 6 by the original code).
    word_embedding_dim = 16
    word_hidden_dim = 32
    char_embedding_dim = 6
    char_hidden_dim = 6
    word_vocab_size = 30
    char_vocab_size = 20
    tagset_size = 10

    num_words = 8          # sentence length
    max_word_len = 5       # chars per word (padded)

    key = jax.random.PRNGKey(0)
    keys = jax.random.split(key, 16)

    def uni(k, shape, bound):
        return jax.random.uniform(k, shape, jnp.float32, -bound, bound)

    kc = 1.0 / np.sqrt(char_hidden_dim)
    kw = 1.0 / np.sqrt(word_hidden_dim)
    kt = 1.0 / np.sqrt(word_hidden_dim)

    params = {
        "word_emb": jax.random.normal(keys[0], (word_vocab_size, word_embedding_dim), jnp.float32),
        "char_emb": jax.random.normal(keys[1], (char_vocab_size, char_embedding_dim), jnp.float32),
        # char LSTM
        "wih_c": uni(keys[2], (4 * char_hidden_dim, char_embedding_dim), kc),
        "whh_c": uni(keys[3], (4 * char_hidden_dim, char_hidden_dim), kc),
        "bih_c": uni(keys[4], (4 * char_hidden_dim,), kc),
        "bhh_c": uni(keys[5], (4 * char_hidden_dim,), kc),
        # word LSTM (input = word_embedding_dim + char_embedding_dim)
        "wih_w": uni(keys[6], (4 * word_hidden_dim, word_embedding_dim + char_embedding_dim), kw),
        "whh_w": uni(keys[7], (4 * word_hidden_dim, word_hidden_dim), kw),
        "bih_w": uni(keys[8], (4 * word_hidden_dim,), kw),
        "bhh_w": uni(keys[9], (4 * word_hidden_dim,), kw),
        # hidden2tag
        "wt": uni(keys[10], (tagset_size, word_hidden_dim), kt),
        "bt": uni(keys[11], (tagset_size,), kt),
    }

    # Deterministic inputs: word ids, padded char ids, per-word char lengths.
    word_ids = jax.random.randint(keys[12], (num_words,), 0, word_vocab_size)
    char_ids_padded = jax.random.randint(keys[13], (num_words, max_word_len), 0, char_vocab_size)
    char_lens = jnp.array([5, 3, 4, 2, 5, 1, 4, 3], dtype=jnp.int32)

    packed = pack_charlstm_params(params)     # one-time packing (cached)
    out = charlstm_forward(packed, word_ids, char_ids_padded, char_lens)
    out = jax.block_until_ready(out)

    ref = charlstm_reference(params, np.asarray(word_ids),
                             np.asarray(char_ids_padded), np.asarray(char_lens))
    # tanh-via-sigmoid + tree-sum reassociation + MXU f32 give ~1e-6 level
    # deviations; 1e-4 still catches any real bug at these magnitudes.
    np.testing.assert_allclose(np.asarray(out), np.asarray(ref), rtol=1e-4, atol=1e-4)

    print("KERNEL_OK")
</pallas_src>

<mosaic_0001>
module attributes {stable_mosaic.version = 11 : i64} {
  func.func @charlstm_kernel(%arg0: memref<8x16xf32, #tpu.memory_space<vmem>>, %arg1: memref<40x8xf32, #tpu.memory_space<vmem>>, %arg2: memref<8x1xi32, #tpu.memory_space<vmem>>, %arg3: memref<128x128xf32, #tpu.memory_space<vmem>>, %arg4: memref<8x128xf32, #tpu.memory_space<vmem>>, %arg5: memref<8x32xf32, #tpu.memory_space<vmem>>) attributes {dimension_semantics = [], scalar_prefetch = 0 : i64, scratch_operands = 1 : i64, tpu.core_type = #tpu.core_type<tc>} {
    %c0 = arith.constant 0 : index
    %c0_0 = arith.constant 0 : index
    %0 = vector.load %arg3[%c0, %c0_0] : memref<128x128xf32, #tpu.memory_space<vmem>>, vector<8x128xf32>
    %c16 = arith.constant 16 : index
    %c0_1 = arith.constant 0 : index
    %1 = vector.load %arg3[%c16, %c0_1] : memref<128x128xf32, #tpu.memory_space<vmem>>, vector<1x128xf32>
    %c8 = arith.constant 8 : index
    %c0_2 = arith.constant 0 : index
    %2 = vector.load %arg3[%c8, %c0_2] : memref<128x128xf32, #tpu.memory_space<vmem>>, vector<1x128xf32>
    %c9 = arith.constant 9 : index
    %c0_3 = arith.constant 0 : index
    %3 = vector.load %arg3[%c9, %c0_3] : memref<128x128xf32, #tpu.memory_space<vmem>>, vector<1x128xf32>
    %c10 = arith.constant 10 : index
    %c0_4 = arith.constant 0 : index
    %4 = vector.load %arg3[%c10, %c0_4] : memref<128x128xf32, #tpu.memory_space<vmem>>, vector<1x128xf32>
    %c11 = arith.constant 11 : index
    %c0_5 = arith.constant 0 : index
    %5 = vector.load %arg3[%c11, %c0_5] : memref<128x128xf32, #tpu.memory_space<vmem>>, vector<1x128xf32>
    %c12 = arith.constant 12 : index
    %c0_6 = arith.constant 0 : index
    %6 = vector.load %arg3[%c12, %c0_6] : memref<128x128xf32, #tpu.memory_space<vmem>>, vector<1x128xf32>
    %c13 = arith.constant 13 : index
    %c0_7 = arith.constant 0 : index
    %7 = vector.load %arg3[%c13, %c0_7] : memref<128x128xf32, #tpu.memory_space<vmem>>, vector<1x128xf32>
    %c0_8 = arith.constant 0 : index
    %c0_9 = arith.constant 0 : index
    %8 = vector.load %arg1[%c0_8, %c0_9] : memref<40x8xf32, #tpu.memory_space<vmem>>, vector<40x8xf32>
    %cst = arith.constant dense<0.000000e+00> : vector<40x128xf32>
    %9 = tpu.matmul %8, %0, %cst {dimension_numbers = #tpu.dot_dimension_numbers<[1], [0], [0], [1], [0, 0, 1, 1], [], []>} : vector<40x8xf32>, vector<8x128xf32>, vector<40x128xf32> -> vector<40x128xf32>
    %10 = vector.broadcast %1 : vector<1x128xf32> to vector<40x128xf32>
    %11 = arith.addf %9, %10 : vector<40x128xf32>
    %c0_10 = arith.constant 0 : index
    %c0_11 = arith.constant 0 : index
    %12 = vector.load %arg2[%c0_10, %c0_11] : memref<8x1xi32, #tpu.memory_space<vmem>>, vector<8x1xi32>
    %13 = vector.shape_cast %12 : vector<8x1xi32> to vector<8x1xi32>
    %14 = vector.broadcast %13 : vector<8x1xi32> to vector<8x32xi32>
    %cst_12 = arith.constant 0.000000e+00 : f32
    %15 = vector.broadcast %cst_12 : f32 to vector<8x32xf32>
    %cst_13 = arith.constant 0.000000e+00 : f32
    %16 = vector.broadcast %cst_13 : f32 to vector<8x32xf32>
    %17 = vector.extract_strided_slice %15 {offsets = [0, 0], sizes = [8, 1], strides = [1, 1]} : vector<8x32xf32> to vector<8x1xf32>
    %18 = vector.broadcast %17 : vector<8x1xf32> to vector<8x128xf32>
    %19 = vector.broadcast %2 : vector<1x128xf32> to vector<8x128xf32>
    %20 = arith.mulf %18, %19 : vector<8x128xf32>
    %21 = vector.extract_strided_slice %15 {offsets = [0, 1], sizes = [8, 1], strides = [1, 1]} : vector<8x32xf32> to vector<8x1xf32>
    %22 = vector.broadcast %21 : vector<8x1xf32> to vector<8x128xf32>
    %23 = vector.broadcast %3 : vector<1x128xf32> to vector<8x128xf32>
    %24 = arith.mulf %22, %23 : vector<8x128xf32>
    %25 = vector.extract_strided_slice %15 {offsets = [0, 2], sizes = [8, 1], strides = [1, 1]} : vector<8x32xf32> to vector<8x1xf32>
    %26 = vector.broadcast %25 : vector<8x1xf32> to vector<8x128xf32>
    %27 = vector.broadcast %4 : vector<1x128xf32> to vector<8x128xf32>
    %28 = arith.mulf %26, %27 : vector<8x128xf32>
    %29 = vector.extract_strided_slice %15 {offsets = [0, 3], sizes = [8, 1], strides = [1, 1]} : vector<8x32xf32> to vector<8x1xf32>
    %30 = vector.broadcast %29 : vector<8x1xf32> to vector<8x128xf32>
    %31 = vector.broadcast %5 : vector<1x128xf32> to vector<8x128xf32>
    %32 = arith.mulf %30, %31 : vector<8x128xf32>
    %33 = vector.extract_strided_slice %15 {offsets = [0, 4], sizes = [8, 1], strides = [1, 1]} : vector<8x32xf32> to vector<8x1xf32>
    %34 = vector.broadcast %33 : vector<8x1xf32> to vector<8x128xf32>
    %35 = vector.broadcast %6 : vector<1x128xf32> to vector<8x128xf32>
    %36 = arith.mulf %34, %35 : vector<8x128xf32>
    %37 = vector.extract_strided_slice %15 {offsets = [0, 5], sizes = [8, 1], strides = [1, 1]} : vector<8x32xf32> to vector<8x1xf32>
    %38 = vector.broadcast %37 : vector<8x1xf32> to vector<8x128xf32>
    %39 = vector.broadcast %7 : vector<1x128xf32> to vector<8x128xf32>
    %40 = arith.mulf %38, %39 : vector<8x128xf32>
    %41 = arith.addf %20, %24 : vector<8x128xf32>
    %42 = arith.addf %28, %32 : vector<8x128xf32>
    %43 = arith.addf %36, %40 : vector<8x128xf32>
    %44 = arith.addf %41, %42 : vector<8x128xf32>
    %45 = arith.addf %44, %43 : vector<8x128xf32>
    %46 = vector.extract_strided_slice %11 {offsets = [0, 0], sizes = [8, 128], strides = [1, 1]} : vector<40x128xf32> to vector<8x128xf32>
    %47 = arith.addf %46, %45 : vector<8x128xf32>
    %48 = arith.negf %47 : vector<8x128xf32>
    %49 = math.exp %48 : vector<8x128xf32>
    %cst_14 = arith.constant 1.000000e+00 : f32
    %50 = vector.broadcast %cst_14 : f32 to vector<8x128xf32>
    %51 = arith.addf %50, %49 : vector<8x128xf32>
    %52 = arith.divf %50, %51 : vector<8x128xf32>
    %53 = vector.extract_strided_slice %52 {offsets = [0, 0], sizes = [8, 32], strides = [1, 1]} : vector<8x128xf32> to vector<8x32xf32>
    %54 = vector.extract_strided_slice %52 {offsets = [0, 32], sizes = [8, 32], strides = [1, 1]} : vector<8x128xf32> to vector<8x32xf32>
    %55 = vector.extract_strided_slice %52 {offsets = [0, 64], sizes = [8, 32], strides = [1, 1]} : vector<8x128xf32> to vector<8x32xf32>
    %cst_15 = arith.constant 2.000000e+00 : f32
    %56 = vector.broadcast %cst_15 : f32 to vector<8x32xf32>
    %57 = arith.mulf %56, %55 : vector<8x32xf32>
    %cst_16 = arith.constant 1.000000e+00 : f32
    %58 = vector.broadcast %cst_16 : f32 to vector<8x32xf32>
    %59 = arith.subf %57, %58 : vector<8x32xf32>
    %60 = vector.extract_strided_slice %52 {offsets = [0, 96], sizes = [8, 32], strides = [1, 1]} : vector<8x128xf32> to vector<8x32xf32>
    %61 = arith.mulf %54, %16 : vector<8x32xf32>
    %62 = arith.mulf %53, %59 : vector<8x32xf32>
    %63 = arith.addf %61, %62 : vector<8x32xf32>
    %64 = math.tanh %63 : vector<8x32xf32>
    %65 = arith.mulf %60, %64 : vector<8x32xf32>
    %c0_i32 = arith.constant 0 : i32
    %66 = vector.broadcast %c0_i32 : i32 to vector<8x32xi32>
    %67 = arith.cmpi sgt, %14, %66 : vector<8x32xi32>
    %68 = arith.select %67, %63, %16 : vector<8x32xi1>, vector<8x32xf32>
    %69 = arith.select %67, %65, %15 : vector<8x32xi1>, vector<8x32xf32>
    %70 = vector.extract_strided_slice %69 {offsets = [0, 0], sizes = [8, 1], strides = [1, 1]} : vector<8x32xf32> to vector<8x1xf32>
    %71 = vector.broadcast %70 : vector<8x1xf32> to vector<8x128xf32>
    %72 = vector.broadcast %2 : vector<1x128xf32> to vector<8x128xf32>
    %73 = arith.mulf %71, %72 : vector<8x128xf32>
    %74 = vector.extract_strided_slice %69 {offsets = [0, 1], sizes = [8, 1], strides = [1, 1]} : vector<8x32xf32> to vector<8x1xf32>
    %75 = vector.broadcast %74 : vector<8x1xf32> to vector<8x128xf32>
    %76 = vector.broadcast %3 : vector<1x128xf32> to vector<8x128xf32>
    %77 = arith.mulf %75, %76 : vector<8x128xf32>
    %78 = vector.extract_strided_slice %69 {offsets = [0, 2], sizes = [8, 1], strides = [1, 1]} : vector<8x32xf32> to vector<8x1xf32>
    %79 = vector.broadcast %78 : vector<8x1xf32> to vector<8x128xf32>
    %80 = vector.broadcast %4 : vector<1x128xf32> to vector<8x128xf32>
    %81 = arith.mulf %79, %80 : vector<8x128xf32>
    %82 = vector.extract_strided_slice %69 {offsets = [0, 3], sizes = [8, 1], strides = [1, 1]} : vector<8x32xf32> to vector<8x1xf32>
    %83 = vector.broadcast %82 : vector<8x1xf32> to vector<8x128xf32>
    %84 = vector.broadcast %5 : vector<1x128xf32> to vector<8x128xf32>
    %85 = arith.mulf %83, %84 : vector<8x128xf32>
    %86 = vector.extract_strided_slice %69 {offsets = [0, 4], sizes = [8, 1], strides = [1, 1]} : vector<8x32xf32> to vector<8x1xf32>
    %87 = vector.broadcast %86 : vector<8x1xf32> to vector<8x128xf32>
    %88 = vector.broadcast %6 : vector<1x128xf32> to vector<8x128xf32>
    %89 = arith.mulf %87, %88 : vector<8x128xf32>
    %90 = vector.extract_strided_slice %69 {offsets = [0, 5], sizes = [8, 1], strides = [1, 1]} : vector<8x32xf32> to vector<8x1xf32>
    %91 = vector.broadcast %90 : vector<8x1xf32> to vector<8x128xf32>
    %92 = vector.broadcast %7 : vector<1x128xf32> to vector<8x128xf32>
    %93 = arith.mulf %91, %92 : vector<8x128xf32>
    %94 = arith.addf %73, %77 : vector<8x128xf32>
    %95 = arith.addf %81, %85 : vector<8x128xf32>
    %96 = arith.addf %89, %93 : vector<8x128xf32>
    %97 = arith.addf %94, %95 : vector<8x128xf32>
    %98 = arith.addf %97, %96 : vector<8x128xf32>
    %99 = vector.extract_strided_slice %11 {offsets = [8, 0], sizes = [8, 128], strides = [1, 1]} : vector<40x128xf32> to vector<8x128xf32>
    %100 = arith.addf %99, %98 : vector<8x128xf32>
    %101 = arith.negf %100 : vector<8x128xf32>
    %102 = math.exp %101 : vector<8x128xf32>
    %cst_17 = arith.constant 1.000000e+00 : f32
    %103 = vector.broadcast %cst_17 : f32 to vector<8x128xf32>
    %104 = arith.addf %103, %102 : vector<8x128xf32>
    %105 = arith.divf %103, %104 : vector<8x128xf32>
    %106 = vector.extract_strided_slice %105 {offsets = [0, 0], sizes = [8, 32], strides = [1, 1]} : vector<8x128xf32> to vector<8x32xf32>
    %107 = vector.extract_strided_slice %105 {offsets = [0, 32], sizes = [8, 32], strides = [1, 1]} : vector<8x128xf32> to vector<8x32xf32>
    %108 = vector.extract_strided_slice %105 {offsets = [0, 64], sizes = [8, 32], strides = [1, 1]} : vector<8x128xf32> to vector<8x32xf32>
    %cst_18 = arith.constant 2.000000e+00 : f32
    %109 = vector.broadcast %cst_18 : f32 to vector<8x32xf32>
    %110 = arith.mulf %109, %108 : vector<8x32xf32>
    %cst_19 = arith.constant 1.000000e+00 : f32
    %111 = vector.broadcast %cst_19 : f32 to vector<8x32xf32>
    %112 = arith.subf %110, %111 : vector<8x32xf32>
    %113 = vector.extract_strided_slice %105 {offsets = [0, 96], sizes = [8, 32], strides = [1, 1]} : vector<8x128xf32> to vector<8x32xf32>
    %114 = arith.mulf %107, %68 : vector<8x32xf32>
    %115 = arith.mulf %106, %112 : vector<8x32xf32>
    %116 = arith.addf %114, %115 : vector<8x32xf32>
    %117 = math.tanh %116 : vector<8x32xf32>
    %118 = arith.mulf %113, %117 : vector<8x32xf32>
    %c1_i32 = arith.constant 1 : i32
    %119 = vector.broadcast %c1_i32 : i32 to vector<8x32xi32>
    %120 = arith.cmpi sgt, %14, %119 : vector<8x32xi32>
    %121 = arith.select %120, %116, %68 : vector<8x32xi1>, vector<8x32xf32>
    %122 = arith.select %120, %118, %69 : vector<8x32xi1>, vector<8x32xf32>
    %123 = vector.extract_strided_slice %122 {offsets = [0, 0], sizes = [8, 1], strides = [1, 1]} : vector<8x32xf32> to vector<8x1xf32>
    %124 = vector.broadcast %123 : vector<8x1xf32> to vector<8x128xf32>
    %125 = vector.broadcast %2 : vector<1x128xf32> to vector<8x128xf32>
    %126 = arith.mulf %124, %125 : vector<8x128xf32>
    %127 = vector.extract_strided_slice %122 {offsets = [0, 1], sizes = [8, 1], strides = [1, 1]} : vector<8x32xf32> to vector<8x1xf32>
    %128 = vector.broadcast %127 : vector<8x1xf32> to vector<8x128xf32>
    %129 = vector.broadcast %3 : vector<1x128xf32> to vector<8x128xf32>
    %130 = arith.mulf %128, %129 : vector<8x128xf32>
    %131 = vector.extract_strided_slice %122 {offsets = [0, 2], sizes = [8, 1], strides = [1, 1]} : vector<8x32xf32> to vector<8x1xf32>
    %132 = vector.broadcast %131 : vector<8x1xf32> to vector<8x128xf32>
    %133 = vector.broadcast %4 : vector<1x128xf32> to vector<8x128xf32>
    %134 = arith.mulf %132, %133 : vector<8x128xf32>
    %135 = vector.extract_strided_slice %122 {offsets = [0, 3], sizes = [8, 1], strides = [1, 1]} : vector<8x32xf32> to vector<8x1xf32>
    %136 = vector.broadcast %135 : vector<8x1xf32> to vector<8x128xf32>
    %137 = vector.broadcast %5 : vector<1x128xf32> to vector<8x128xf32>
    %138 = arith.mulf %136, %137 : vector<8x128xf32>
    %139 = vector.extract_strided_slice %122 {offsets = [0, 4], sizes = [8, 1], strides = [1, 1]} : vector<8x32xf32> to vector<8x1xf32>
    %140 = vector.broadcast %139 : vector<8x1xf32> to vector<8x128xf32>
    %141 = vector.broadcast %6 : vector<1x128xf32> to vector<8x128xf32>
    %142 = arith.mulf %140, %141 : vector<8x128xf32>
    %143 = vector.extract_strided_slice %122 {offsets = [0, 5], sizes = [8, 1], strides = [1, 1]} : vector<8x32xf32> to vector<8x1xf32>
    %144 = vector.broadcast %143 : vector<8x1xf32> to vector<8x128xf32>
    %145 = vector.broadcast %7 : vector<1x128xf32> to vector<8x128xf32>
    %146 = arith.mulf %144, %145 : vector<8x128xf32>
    %147 = arith.addf %126, %130 : vector<8x128xf32>
    %148 = arith.addf %134, %138 : vector<8x128xf32>
    %149 = arith.addf %142, %146 : vector<8x128xf32>
    %150 = arith.addf %147, %148 : vector<8x128xf32>
    %151 = arith.addf %150, %149 : vector<8x128xf32>
    %152 = vector.extract_strided_slice %11 {offsets = [16, 0], sizes = [8, 128], strides = [1, 1]} : vector<40x128xf32> to vector<8x128xf32>
    %153 = arith.addf %152, %151 : vector<8x128xf32>
    %154 = arith.negf %153 : vector<8x128xf32>
    %155 = math.exp %154 : vector<8x128xf32>
    %cst_20 = arith.constant 1.000000e+00 : f32
    %156 = vector.broadcast %cst_20 : f32 to vector<8x128xf32>
    %157 = arith.addf %156, %155 : vector<8x128xf32>
    %158 = arith.divf %156, %157 : vector<8x128xf32>
    %159 = vector.extract_strided_slice %158 {offsets = [0, 0], sizes = [8, 32], strides = [1, 1]} : vector<8x128xf32> to vector<8x32xf32>
    %160 = vector.extract_strided_slice %158 {offsets = [0, 32], sizes = [8, 32], strides = [1, 1]} : vector<8x128xf32> to vector<8x32xf32>
    %161 = vector.extract_strided_slice %158 {offsets = [0, 64], sizes = [8, 32], strides = [1, 1]} : vector<8x128xf32> to vector<8x32xf32>
    %cst_21 = arith.constant 2.000000e+00 : f32
    %162 = vector.broadcast %cst_21 : f32 to vector<8x32xf32>
    %163 = arith.mulf %162, %161 : vector<8x32xf32>
    %cst_22 = arith.constant 1.000000e+00 : f32
    %164 = vector.broadcast %cst_22 : f32 to vector<8x32xf32>
    %165 = arith.subf %163, %164 : vector<8x32xf32>
    %166 = vector.extract_strided_slice %158 {offsets = [0, 96], sizes = [8, 32], strides = [1, 1]} : vector<8x128xf32> to vector<8x32xf32>
    %167 = arith.mulf %160, %121 : vector<8x32xf32>
    %168 = arith.mulf %159, %165 : vector<8x32xf32>
    %169 = arith.addf %167, %168 : vector<8x32xf32>
    %170 = math.tanh %169 : vector<8x32xf32>
    %171 = arith.mulf %166, %170 : vector<8x32xf32>
    %c2_i32 = arith.constant 2 : i32
    %172 = vector.broadcast %c2_i32 : i32 to vector<8x32xi32>
    %173 = arith.cmpi sgt, %14, %172 : vector<8x32xi32>
    %174 = arith.select %173, %169, %121 : vector<8x32xi1>, vector<8x32xf32>
    %175 = arith.select %173, %171, %122 : vector<8x32xi1>, vector<8x32xf32>
    %176 = vector.extract_strided_slice %175 {offsets = [0, 0], sizes = [8, 1], strides = [1, 1]} : vector<8x32xf32> to vector<8x1xf32>
    %177 = vector.broadcast %176 : vector<8x1xf32> to vector<8x128xf32>
    %178 = vector.broadcast %2 : vector<1x128xf32> to vector<8x128xf32>
    %179 = arith.mulf %177, %178 : vector<8x128xf32>
    %180 = vector.extract_strided_slice %175 {offsets = [0, 1], sizes = [8, 1], strides = [1, 1]} : vector<8x32xf32> to vector<8x1xf32>
    %181 = vector.broadcast %180 : vector<8x1xf32> to vector<8x128xf32>
    %182 = vector.broadcast %3 : vector<1x128xf32> to vector<8x128xf32>
    %183 = arith.mulf %181, %182 : vector<8x128xf32>
    %184 = vector.extract_strided_slice %175 {offsets = [0, 2], sizes = [8, 1], strides = [1, 1]} : vector<8x32xf32> to vector<8x1xf32>
    %185 = vector.broadcast %184 : vector<8x1xf32> to vector<8x128xf32>
    %186 = vector.broadcast %4 : vector<1x128xf32> to vector<8x128xf32>
    %187 = arith.mulf %185, %186 : vector<8x128xf32>
    %188 = vector.extract_strided_slice %175 {offsets = [0, 3], sizes = [8, 1], strides = [1, 1]} : vector<8x32xf32> to vector<8x1xf32>
    %189 = vector.broadcast %188 : vector<8x1xf32> to vector<8x128xf32>
    %190 = vector.broadcast %5 : vector<1x128xf32> to vector<8x128xf32>
    %191 = arith.mulf %189, %190 : vector<8x128xf32>
    %192 = vector.extract_strided_slice %175 {offsets = [0, 4], sizes = [8, 1], strides = [1, 1]} : vector<8x32xf32> to vector<8x1xf32>
    %193 = vector.broadcast %192 : vector<8x1xf32> to vector<8x128xf32>
    %194 = vector.broadcast %6 : vector<1x128xf32> to vector<8x128xf32>
    %195 = arith.mulf %193, %194 : vector<8x128xf32>
    %196 = vector.extract_strided_slice %175 {offsets = [0, 5], sizes = [8, 1], strides = [1, 1]} : vector<8x32xf32> to vector<8x1xf32>
    %197 = vector.broadcast %196 : vector<8x1xf32> to vector<8x128xf32>
    %198 = vector.broadcast %7 : vector<1x128xf32> to vector<8x128xf32>
    %199 = arith.mulf %197, %198 : vector<8x128xf32>
    %200 = arith.addf %179, %183 : vector<8x128xf32>
    %201 = arith.addf %187, %191 : vector<8x128xf32>
    %202 = arith.addf %195, %199 : vector<8x128xf32>
    %203 = arith.addf %200, %201 : vector<8x128xf32>
    %204 = arith.addf %203, %202 : vector<8x128xf32>
    %205 = vector.extract_strided_slice %11 {offsets = [24, 0], sizes = [8, 128], strides = [1, 1]} : vector<40x128xf32> to vector<8x128xf32>
    %206 = arith.addf %205, %204 : vector<8x128xf32>
    %207 = arith.negf %206 : vector<8x128xf32>
    %208 = math.exp %207 : vector<8x128xf32>
    %cst_23 = arith.constant 1.000000e+00 : f32
    %209 = vector.broadcast %cst_23 : f32 to vector<8x128xf32>
    %210 = arith.addf %209, %208 : vector<8x128xf32>
    %211 = arith.divf %209, %210 : vector<8x128xf32>
    %212 = vector.extract_strided_slice %211 {offsets = [0, 0], sizes = [8, 32], strides = [1, 1]} : vector<8x128xf32> to vector<8x32xf32>
    %213 = vector.extract_strided_slice %211 {offsets = [0, 32], sizes = [8, 32], strides = [1, 1]} : vector<8x128xf32> to vector<8x32xf32>
    %214 = vector.extract_strided_slice %211 {offsets = [0, 64], sizes = [8, 32], strides = [1, 1]} : vector<8x128xf32> to vector<8x32xf32>
    %cst_24 = arith.constant 2.000000e+00 : f32
    %215 = vector.broadcast %cst_24 : f32 to vector<8x32xf32>
    %216 = arith.mulf %215, %214 : vector<8x32xf32>
    %cst_25 = arith.constant 1.000000e+00 : f32
    %217 = vector.broadcast %cst_25 : f32 to vector<8x32xf32>
    %218 = arith.subf %216, %217 : vector<8x32xf32>
    %219 = vector.extract_strided_slice %211 {offsets = [0, 96], sizes = [8, 32], strides = [1, 1]} : vector<8x128xf32> to vector<8x32xf32>
    %220 = arith.mulf %213, %174 : vector<8x32xf32>
    %221 = arith.mulf %212, %218 : vector<8x32xf32>
    %222 = arith.addf %220, %221 : vector<8x32xf32>
    %223 = math.tanh %222 : vector<8x32xf32>
    %224 = arith.mulf %219, %223 : vector<8x32xf32>
    %c3_i32 = arith.constant 3 : i32
    %225 = vector.broadcast %c3_i32 : i32 to vector<8x32xi32>
    %226 = arith.cmpi sgt, %14, %225 : vector<8x32xi32>
    %227 = arith.select %226, %222, %174 : vector<8x32xi1>, vector<8x32xf32>
    %228 = arith.select %226, %224, %175 : vector<8x32xi1>, vector<8x32xf32>
    %229 = vector.extract_strided_slice %228 {offsets = [0, 0], sizes = [8, 1], strides = [1, 1]} : vector<8x32xf32> to vector<8x1xf32>
    %230 = vector.broadcast %229 : vector<8x1xf32> to vector<8x128xf32>
    %231 = vector.broadcast %2 : vector<1x128xf32> to vector<8x128xf32>
    %232 = arith.mulf %230, %231 : vector<8x128xf32>
    %233 = vector.extract_strided_slice %228 {offsets = [0, 1], sizes = [8, 1], strides = [1, 1]} : vector<8x32xf32> to vector<8x1xf32>
    %234 = vector.broadcast %233 : vector<8x1xf32> to vector<8x128xf32>
    %235 = vector.broadcast %3 : vector<1x128xf32> to vector<8x128xf32>
    %236 = arith.mulf %234, %235 : vector<8x128xf32>
    %237 = vector.extract_strided_slice %228 {offsets = [0, 2], sizes = [8, 1], strides = [1, 1]} : vector<8x32xf32> to vector<8x1xf32>
    %238 = vector.broadcast %237 : vector<8x1xf32> to vector<8x128xf32>
    %239 = vector.broadcast %4 : vector<1x128xf32> to vector<8x128xf32>
    %240 = arith.mulf %238, %239 : vector<8x128xf32>
    %241 = vector.extract_strided_slice %228 {offsets = [0, 3], sizes = [8, 1], strides = [1, 1]} : vector<8x32xf32> to vector<8x1xf32>
    %242 = vector.broadcast %241 : vector<8x1xf32> to vector<8x128xf32>
    %243 = vector.broadcast %5 : vector<1x128xf32> to vector<8x128xf32>
    %244 = arith.mulf %242, %243 : vector<8x128xf32>
    %245 = vector.extract_strided_slice %228 {offsets = [0, 4], sizes = [8, 1], strides = [1, 1]} : vector<8x32xf32> to vector<8x1xf32>
    %246 = vector.broadcast %245 : vector<8x1xf32> to vector<8x128xf32>
    %247 = vector.broadcast %6 : vector<1x128xf32> to vector<8x128xf32>
    %248 = arith.mulf %246, %247 : vector<8x128xf32>
    %249 = vector.extract_strided_slice %228 {offsets = [0, 5], sizes = [8, 1], strides = [1, 1]} : vector<8x32xf32> to vector<8x1xf32>
    %250 = vector.broadcast %249 : vector<8x1xf32> to vector<8x128xf32>
    %251 = vector.broadcast %7 : vector<1x128xf32> to vector<8x128xf32>
    %252 = arith.mulf %250, %251 : vector<8x128xf32>
    %253 = arith.addf %232, %236 : vector<8x128xf32>
    %254 = arith.addf %240, %244 : vector<8x128xf32>
    %255 = arith.addf %248, %252 : vector<8x128xf32>
    %256 = arith.addf %253, %254 : vector<8x128xf32>
    %257 = arith.addf %256, %255 : vector<8x128xf32>
    %258 = vector.extract_strided_slice %11 {offsets = [32, 0], sizes = [8, 128], strides = [1, 1]} : vector<40x128xf32> to vector<8x128xf32>
    %259 = arith.addf %258, %257 : vector<8x128xf32>
    %260 = arith.negf %259 : vector<8x128xf32>
    %261 = math.exp %260 : vector<8x128xf32>
    %cst_26 = arith.constant 1.000000e+00 : f32
    %262 = vector.broadcast %cst_26 : f32 to vector<8x128xf32>
    %263 = arith.addf %262, %261 : vector<8x128xf32>
    %264 = arith.divf %262, %263 : vector<8x128xf32>
    %265 = vector.extract_strided_slice %264 {offsets = [0, 0], sizes = [8, 32], strides = [1, 1]} : vector<8x128xf32> to vector<8x32xf32>
    %266 = vector.extract_strided_slice %264 {offsets = [0, 32], sizes = [8, 32], strides = [1, 1]} : vector<8x128xf32> to vector<8x32xf32>
    %267 = vector.extract_strided_slice %264 {offsets = [0, 64], sizes = [8, 32], strides = [1, 1]} : vector<8x128xf32> to vector<8x32xf32>
    %cst_27 = arith.constant 2.000000e+00 : f32
    %268 = vector.broadcast %cst_27 : f32 to vector<8x32xf32>
    %269 = arith.mulf %268, %267 : vector<8x32xf32>
    %cst_28 = arith.constant 1.000000e+00 : f32
    %270 = vector.broadcast %cst_28 : f32 to vector<8x32xf32>
    %271 = arith.subf %269, %270 : vector<8x32xf32>
    %272 = vector.extract_strided_slice %264 {offsets = [0, 96], sizes = [8, 32], strides = [1, 1]} : vector<8x128xf32> to vector<8x32xf32>
    %273 = arith.mulf %266, %227 : vector<8x32xf32>
    %274 = arith.mulf %265, %271 : vector<8x32xf32>
    %275 = arith.addf %273, %274 : vector<8x32xf32>
    %276 = math.tanh %275 : vector<8x32xf32>
    %277 = arith.mulf %272, %276 : vector<8x32xf32>
    %c4_i32 = arith.constant 4 : i32
    %278 = vector.broadcast %c4_i32 : i32 to vector<8x32xi32>
    %279 = arith.cmpi sgt, %14, %278 : vector<8x32xi32>
    %280 = arith.select %279, %277, %228 : vector<8x32xi1>, vector<8x32xf32>
    %c24 = arith.constant 24 : index
    %c0_29 = arith.constant 0 : index
    %281 = vector.load %arg3[%c24, %c0_29] : memref<128x128xf32, #tpu.memory_space<vmem>>, vector<16x128xf32>
    %c40 = arith.constant 40 : index
    %c0_30 = arith.constant 0 : index
    %282 = vector.load %arg3[%c40, %c0_30] : memref<128x128xf32, #tpu.memory_space<vmem>>, vector<8x128xf32>
    %c80 = arith.constant 80 : index
    %c0_31 = arith.constant 0 : index
    %283 = vector.load %arg3[%c80, %c0_31] : memref<128x128xf32, #tpu.memory_space<vmem>>, vector<1x128xf32>
    %c48 = arith.constant 48 : index
    %c0_32 = arith.constant 0 : index
    %284 = vector.load %arg3[%c48, %c0_32] : memref<128x128xf32, #tpu.memory_space<vmem>>, vector<1x128xf32>
    %c49 = arith.constant 49 : index
    %c0_33 = arith.constant 0 : index
    %285 = vector.load %arg3[%c49, %c0_33] : memref<128x128xf32, #tpu.memory_space<vmem>>, vector<1x128xf32>
    %c50 = arith.constant 50 : index
    %c0_34 = arith.constant 0 : index
    %286 = vector.load %arg3[%c50, %c0_34] : memref<128x128xf32, #tpu.memory_space<vmem>>, vector<1x128xf32>
    %c51 = arith.constant 51 : index
    %c0_35 = arith.constant 0 : index
    %287 = vector.load %arg3[%c51, %c0_35] : memref<128x128xf32, #tpu.memory_space<vmem>>, vector<1x128xf32>
    %c52 = arith.constant 52 : index
    %c0_36 = arith.constant 0 : index
    %288 = vector.load %arg3[%c52, %c0_36] : memref<128x128xf32, #tpu.memory_space<vmem>>, vector<1x128xf32>
    %c53 = arith.constant 53 : index
    %c0_37 = arith.constant 0 : index
    %289 = vector.load %arg3[%c53, %c0_37] : memref<128x128xf32, #tpu.memory_space<vmem>>, vector<1x128xf32>
    %c54 = arith.constant 54 : index
    %c0_38 = arith.constant 0 : index
    %290 = vector.load %arg3[%c54, %c0_38] : memref<128x128xf32, #tpu.memory_space<vmem>>, vector<1x128xf32>
    %c55 = arith.constant 55 : index
    %c0_39 = arith.constant 0 : index
    %291 = vector.load %arg3[%c55, %c0_39] : memref<128x128xf32, #tpu.memory_space<vmem>>, vector<1x128xf32>
    %c56 = arith.constant 56 : index
    %c0_40 = arith.constant 0 : index
    %292 = vector.load %arg3[%c56, %c0_40] : memref<128x128xf32, #tpu.memory_space<vmem>>, vector<1x128xf32>
    %c57 = arith.constant 57 : index
    %c0_41 = arith.constant 0 : index
    %293 = vector.load %arg3[%c57, %c0_41] : memref<128x128xf32, #tpu.memory_space<vmem>>, vector<1x128xf32>
    %c58 = arith.constant 58 : index
    %c0_42 = arith.constant 0 : index
    %294 = vector.load %arg3[%c58, %c0_42] : memref<128x128xf32, #tpu.memory_space<vmem>>, vector<1x128xf32>
    %c59 = arith.constant 59 : index
    %c0_43 = arith.constant 0 : index
    %295 = vector.load %arg3[%c59, %c0_43] : memref<128x128xf32, #tpu.memory_space<vmem>>, vector<1x128xf32>
    %c60 = arith.constant 60 : index
    %c0_44 = arith.constant 0 : index
    %296 = vector.load %arg3[%c60, %c0_44] : memref<128x128xf32, #tpu.memory_space<vmem>>, vector<1x128xf32>
    %c61 = arith.constant 61 : index
    %c0_45 = arith.constant 0 : index
    %297 = vector.load %arg3[%c61, %c0_45] : memref<128x128xf32, #tpu.memory_space<vmem>>, vector<1x128xf32>
    %c62 = arith.constant 62 : index
    %c0_46 = arith.constant 0 : index
    %298 = vector.load %arg3[%c62, %c0_46] : memref<128x128xf32, #tpu.memory_space<vmem>>, vector<1x128xf32>
    %c63 = arith.constant 63 : index
    %c0_47 = arith.constant 0 : index
    %299 = vector.load %arg3[%c63, %c0_47] : memref<128x128xf32, #tpu.memory_space<vmem>>, vector<1x128xf32>
    %c64 = arith.constant 64 : index
    %c0_48 = arith.constant 0 : index
    %300 = vector.load %arg3[%c64, %c0_48] : memref<128x128xf32, #tpu.memory_space<vmem>>, vector<1x128xf32>
    %c65 = arith.constant 65 : index
    %c0_49 = arith.constant 0 : index
    %301 = vector.load %arg3[%c65, %c0_49] : memref<128x128xf32, #tpu.memory_space<vmem>>, vector<1x128xf32>
    %c66 = arith.constant 66 : index
    %c0_50 = arith.constant 0 : index
    %302 = vector.load %arg3[%c66, %c0_50] : memref<128x128xf32, #tpu.memory_space<vmem>>, vector<1x128xf32>
    %c67 = arith.constant 67 : index
    %c0_51 = arith.constant 0 : index
    %303 = vector.load %arg3[%c67, %c0_51] : memref<128x128xf32, #tpu.memory_space<vmem>>, vector<1x128xf32>
    %c68 = arith.constant 68 : index
    %c0_52 = arith.constant 0 : index
    %304 = vector.load %arg3[%c68, %c0_52] : memref<128x128xf32, #tpu.memory_space<vmem>>, vector<1x128xf32>
    %c69 = arith.constant 69 : index
    %c0_53 = arith.constant 0 : index
    %305 = vector.load %arg3[%c69, %c0_53] : memref<128x128xf32, #tpu.memory_space<vmem>>, vector<1x128xf32>
    %c70 = arith.constant 70 : index
    %c0_54 = arith.constant 0 : index
    %306 = vector.load %arg3[%c70, %c0_54] : memref<128x128xf32, #tpu.memory_space<vmem>>, vector<1x128xf32>
    %c71 = arith.constant 71 : index
    %c0_55 = arith.constant 0 : index
    %307 = vector.load %arg3[%c71, %c0_55] : memref<128x128xf32, #tpu.memory_space<vmem>>, vector<1x128xf32>
    %c72 = arith.constant 72 : index
    %c0_56 = arith.constant 0 : index
    %308 = vector.load %arg3[%c72, %c0_56] : memref<128x128xf32, #tpu.memory_space<vmem>>, vector<1x128xf32>
    %c73 = arith.constant 73 : index
    %c0_57 = arith.constant 0 : index
    %309 = vector.load %arg3[%c73, %c0_57] : memref<128x128xf32, #tpu.memory_space<vmem>>, vector<1x128xf32>
    %c74 = arith.constant 74 : index
    %c0_58 = arith.constant 0 : index
    %310 = vector.load %arg3[%c74, %c0_58] : memref<128x128xf32, #tpu.memory_space<vmem>>, vector<1x128xf32>
    %c75 = arith.constant 75 : index
    %c0_59 = arith.constant 0 : index
    %311 = vector.load %arg3[%c75, %c0_59] : memref<128x128xf32, #tpu.memory_space<vmem>>, vector<1x128xf32>
    %c76 = arith.constant 76 : index
    %c0_60 = arith.constant 0 : index
    %312 = vector.load %arg3[%c76, %c0_60] : memref<128x128xf32, #tpu.memory_space<vmem>>, vector<1x128xf32>
    %c77 = arith.constant 77 : index
    %c0_61 = arith.constant 0 : index
    %313 = vector.load %arg3[%c77, %c0_61] : memref<128x128xf32, #tpu.memory_space<vmem>>, vector<1x128xf32>
    %c78 = arith.constant 78 : index
    %c0_62 = arith.constant 0 : index
    %314 = vector.load %arg3[%c78, %c0_62] : memref<128x128xf32, #tpu.memory_space<vmem>>, vector<1x128xf32>
    %c79 = arith.constant 79 : index
    %c0_63 = arith.constant 0 : index
    %315 = vector.load %arg3[%c79, %c0_63] : memref<128x128xf32, #tpu.memory_space<vmem>>, vector<1x128xf32>
    %c0_64 = arith.constant 0 : index
    %c0_65 = arith.constant 0 : index
    %316 = vector.load %arg0[%c0_64, %c0_65] : memref<8x16xf32, #tpu.memory_space<vmem>>, vector<8x16xf32>
    %cst_66 = arith.constant dense<0.000000e+00> : vector<8x128xf32>
    %317 = tpu.matmul %316, %281, %cst_66 {dimension_numbers = #tpu.dot_dimension_numbers<[1], [0], [0], [1], [0, 0, 1, 1], [], []>} : vector<8x16xf32>, vector<16x128xf32>, vector<8x128xf32> -> vector<8x128xf32>
    %318 = vector.extract_strided_slice %280 {offsets = [0, 0], sizes = [8, 8], strides = [1, 1]} : vector<8x32xf32> to vector<8x8xf32>
    %cst_67 = arith.constant dense<0.000000e+00> : vector<8x128xf32>
    %319 = tpu.matmul %318, %282, %cst_67 {dimension_numbers = #tpu.dot_dimension_numbers<[1], [0], [0], [1], [0, 0, 1, 1], [], []>} : vector<8x8xf32>, vector<8x128xf32>, vector<8x128xf32> -> vector<8x128xf32>
    %320 = arith.addf %317, %319 : vector<8x128xf32>
    %321 = vector.broadcast %283 : vector<1x128xf32> to vector<8x128xf32>
    %322 = arith.addf %320, %321 : vector<8x128xf32>
    %cst_68 = arith.constant 0.000000e+00 : f32
    %323 = vector.broadcast %cst_68 : f32 to vector<1x32xf32>
    %cst_69 = arith.constant 0.000000e+00 : f32
    %324 = vector.broadcast %cst_69 : f32 to vector<1x32xf32>
    %325 = vector.extract_strided_slice %323 {offsets = [0, 0], sizes = [1, 1], strides = [1, 1]} : vector<1x32xf32> to vector<1x1xf32>
    %326 = vector.broadcast %325 : vector<1x1xf32> to vector<1x128xf32>
    %327 = arith.mulf %326, %284 : vector<1x128xf32>
    %328 = vector.extract_strided_slice %323 {offsets = [0, 1], sizes = [1, 1], strides = [1, 1]} : vector<1x32xf32> to vector<1x1xf32>
    %329 = vector.broadcast %328 : vector<1x1xf32> to vector<1x128xf32>
    %330 = arith.mulf %329, %285 : vector<1x128xf32>
    %331 = vector.extract_strided_slice %323 {offsets = [0, 2], sizes = [1, 1], strides = [1, 1]} : vector<1x32xf32> to vector<1x1xf32>
    %332 = vector.broadcast %331 : vector<1x1xf32> to vector<1x128xf32>
    %333 = arith.mulf %332, %286 : vector<1x128xf32>
    %334 = vector.extract_strided_slice %323 {offsets = [0, 3], sizes = [1, 1], strides = [1, 1]} : vector<1x32xf32> to vector<1x1xf32>
    %335 = vector.broadcast %334 : vector<1x1xf32> to vector<1x128xf32>
    %336 = arith.mulf %335, %287 : vector<1x128xf32>
    %337 = vector.extract_strided_slice %323 {offsets = [0, 4], sizes = [1, 1], strides = [1, 1]} : vector<1x32xf32> to vector<1x1xf32>
    %338 = vector.broadcast %337 : vector<1x1xf32> to vector<1x128xf32>
    %339 = arith.mulf %338, %288 : vector<1x128xf32>
    %340 = vector.extract_strided_slice %323 {offsets = [0, 5], sizes = [1, 1], strides = [1, 1]} : vector<1x32xf32> to vector<1x1xf32>
    %341 = vector.broadcast %340 : vector<1x1xf32> to vector<1x128xf32>
    %342 = arith.mulf %341, %289 : vector<1x128xf32>
    %343 = vector.extract_strided_slice %323 {offsets = [0, 6], sizes = [1, 1], strides = [1, 1]} : vector<1x32xf32> to vector<1x1xf32>
    %344 = vector.broadcast %343 : vector<1x1xf32> to vector<1x128xf32>
    %345 = arith.mulf %344, %290 : vector<1x128xf32>
    %346 = vector.extract_strided_slice %323 {offsets = [0, 7], sizes = [1, 1], strides = [1, 1]} : vector<1x32xf32> to vector<1x1xf32>
    %347 = vector.broadcast %346 : vector<1x1xf32> to vector<1x128xf32>
    %348 = arith.mulf %347, %291 : vector<1x128xf32>
    %349 = vector.extract_strided_slice %323 {offsets = [0, 8], sizes = [1, 1], strides = [1, 1]} : vector<1x32xf32> to vector<1x1xf32>
    %350 = vector.broadcast %349 : vector<1x1xf32> to vector<1x128xf32>
    %351 = arith.mulf %350, %292 : vector<1x128xf32>
    %352 = vector.extract_strided_slice %323 {offsets = [0, 9], sizes = [1, 1], strides = [1, 1]} : vector<1x32xf32> to vector<1x1xf32>
    %353 = vector.broadcast %352 : vector<1x1xf32> to vector<1x128xf32>
    %354 = arith.mulf %353, %293 : vector<1x128xf32>
    %355 = vector.extract_strided_slice %323 {offsets = [0, 10], sizes = [1, 1], strides = [1, 1]} : vector<1x32xf32> to vector<1x1xf32>
    %356 = vector.broadcast %355 : vector<1x1xf32> to vector<1x128xf32>
    %357 = arith.mulf %356, %294 : vector<1x128xf32>
    %358 = vector.extract_strided_slice %323 {offsets = [0, 11], sizes = [1, 1], strides = [1, 1]} : vector<1x32xf32> to vector<1x1xf32>
    %359 = vector.broadcast %358 : vector<1x1xf32> to vector<1x128xf32>
    %360 = arith.mulf %359, %295 : vector<1x128xf32>
    %361 = vector.extract_strided_slice %323 {offsets = [0, 12], sizes = [1, 1], strides = [1, 1]} : vector<1x32xf32> to vector<1x1xf32>
    %362 = vector.broadcast %361 : vector<1x1xf32> to vector<1x128xf32>
    %363 = arith.mulf %362, %296 : vector<1x128xf32>
    %364 = vector.extract_strided_slice %323 {offsets = [0, 13], sizes = [1, 1], strides = [1, 1]} : vector<1x32xf32> to vector<1x1xf32>
    %365 = vector.broadcast %364 : vector<1x1xf32> to vector<1x128xf32>
    %366 = arith.mulf %365, %297 : vector<1x128xf32>
    %367 = vector.extract_strided_slice %323 {offsets = [0, 14], sizes = [1, 1], strides = [1, 1]} : vector<1x32xf32> to vector<1x1xf32>
    %368 = vector.broadcast %367 : vector<1x1xf32> to vector<1x128xf32>
    %369 = arith.mulf %368, %298 : vector<1x128xf32>
    %370 = vector.extract_strided_slice %323 {offsets = [0, 15], sizes = [1, 1], strides = [1, 1]} : vector<1x32xf32> to vector<1x1xf32>
    %371 = vector.broadcast %370 : vector<1x1xf32> to vector<1x128xf32>
    %372 = arith.mulf %371, %299 : vector<1x128xf32>
    %373 = vector.extract_strided_slice %323 {offsets = [0, 16], sizes = [1, 1], strides = [1, 1]} : vector<1x32xf32> to vector<1x1xf32>
    %374 = vector.broadcast %373 : vector<1x1xf32> to vector<1x128xf32>
    %375 = arith.mulf %374, %300 : vector<1x128xf32>
    %376 = vector.extract_strided_slice %323 {offsets = [0, 17], sizes = [1, 1], strides = [1, 1]} : vector<1x32xf32> to vector<1x1xf32>
    %377 = vector.broadcast %376 : vector<1x1xf32> to vector<1x128xf32>
    %378 = arith.mulf %377, %301 : vector<1x128xf32>
    %379 = vector.extract_strided_slice %323 {offsets = [0, 18], sizes = [1, 1], strides = [1, 1]} : vector<1x32xf32> to vector<1x1xf32>
    %380 = vector.broadcast %379 : vector<1x1xf32> to vector<1x128xf32>
    %381 = arith.mulf %380, %302 : vector<1x128xf32>
    %382 = vector.extract_strided_slice %323 {offsets = [0, 19], sizes = [1, 1], strides = [1, 1]} : vector<1x32xf32> to vector<1x1xf32>
    %383 = vector.broadcast %382 : vector<1x1xf32> to vector<1x128xf32>
    %384 = arith.mulf %383, %303 : vector<1x128xf32>
    %385 = vector.extract_strided_slice %323 {offsets = [0, 20], sizes = [1, 1], strides = [1, 1]} : vector<1x32xf32> to vector<1x1xf32>
    %386 = vector.broadcast %385 : vector<1x1xf32> to vector<1x128xf32>
    %387 = arith.mulf %386, %304 : vector<1x128xf32>
    %388 = vector.extract_strided_slice %323 {offsets = [0, 21], sizes = [1, 1], strides = [1, 1]} : vector<1x32xf32> to vector<1x1xf32>
    %389 = vector.broadcast %388 : vector<1x1xf32> to vector<1x128xf32>
    %390 = arith.mulf %389, %305 : vector<1x128xf32>
    %391 = vector.extract_strided_slice %323 {offsets = [0, 22], sizes = [1, 1], strides = [1, 1]} : vector<1x32xf32> to vector<1x1xf32>
    %392 = vector.broadcast %391 : vector<1x1xf32> to vector<1x128xf32>
    %393 = arith.mulf %392, %306 : vector<1x128xf32>
    %394 = vector.extract_strided_slice %323 {offsets = [0, 23], sizes = [1, 1], strides = [1, 1]} : vector<1x32xf32> to vector<1x1xf32>
    %395 = vector.broadcast %394 : vector<1x1xf32> to vector<1x128xf32>
    %396 = arith.mulf %395, %307 : vector<1x128xf32>
    %397 = vector.extract_strided_slice %323 {offsets = [0, 24], sizes = [1, 1], strides = [1, 1]} : vector<1x32xf32> to vector<1x1xf32>
    %398 = vector.broadcast %397 : vector<1x1xf32> to vector<1x128xf32>
    %399 = arith.mulf %398, %308 : vector<1x128xf32>
    %400 = vector.extract_strided_slice %323 {offsets = [0, 25], sizes = [1, 1], strides = [1, 1]} : vector<1x32xf32> to vector<1x1xf32>
    %401 = vector.broadcast %400 : vector<1x1xf32> to vector<1x128xf32>
    %402 = arith.mulf %401, %309 : vector<1x128xf32>
    %403 = vector.extract_strided_slice %323 {offsets = [0, 26], sizes = [1, 1], strides = [1, 1]} : vector<1x32xf32> to vector<1x1xf32>
    %404 = vector.broadcast %403 : vector<1x1xf32> to vector<1x128xf32>
    %405 = arith.mulf %404, %310 : vector<1x128xf32>
    %406 = vector.extract_strided_slice %323 {offsets = [0, 27], sizes = [1, 1], strides = [1, 1]} : vector<1x32xf32> to vector<1x1xf32>
    %407 = vector.broadcast %406 : vector<1x1xf32> to vector<1x128xf32>
    %408 = arith.mulf %407, %311 : vector<1x128xf32>
    %409 = vector.extract_strided_slice %323 {offsets = [0, 28], sizes = [1, 1], strides = [1, 1]} : vector<1x32xf32> to vector<1x1xf32>
    %410 = vector.broadcast %409 : vector<1x1xf32> to vector<1x128xf32>
    %411 = arith.mulf %410, %312 : vector<1x128xf32>
    %412 = vector.extract_strided_slice %323 {offsets = [0, 29], sizes = [1, 1], strides = [1, 1]} : vector<1x32xf32> to vector<1x1xf32>
    %413 = vector.broadcast %412 : vector<1x1xf32> to vector<1x128xf32>
    %414 = arith.mulf %413, %313 : vector<1x128xf32>
    %415 = vector.extract_strided_slice %323 {offsets = [0, 30], sizes = [1, 1], strides = [1, 1]} : vector<1x32xf32> to vector<1x1xf32>
    %416 = vector.broadcast %415 : vector<1x1xf32> to vector<1x128xf32>
    %417 = arith.mulf %416, %314 : vector<1x128xf32>
    %418 = vector.extract_strided_slice %323 {offsets = [0, 31], sizes = [1, 1], strides = [1, 1]} : vector<1x32xf32> to vector<1x1xf32>
    %419 = vector.broadcast %418 : vector<1x1xf32> to vector<1x128xf32>
    %420 = arith.mulf %419, %315 : vector<1x128xf32>
    %421 = arith.addf %327, %330 : vector<1x128xf32>
    %422 = arith.addf %333, %336 : vector<1x128xf32>
    %423 = arith.addf %339, %342 : vector<1x128xf32>
    %424 = arith.addf %345, %348 : vector<1x128xf32>
    %425 = arith.addf %351, %354 : vector<1x128xf32>
    %426 = arith.addf %357, %360 : vector<1x128xf32>
    %427 = arith.addf %363, %366 : vector<1x128xf32>
    %428 = arith.addf %369, %372 : vector<1x128xf32>
    %429 = arith.addf %375, %378 : vector<1x128xf32>
    %430 = arith.addf %381, %384 : vector<1x128xf32>
    %431 = arith.addf %387, %390 : vector<1x128xf32>
    %432 = arith.addf %393, %396 : vector<1x128xf32>
    %433 = arith.addf %399, %402 : vector<1x128xf32>
    %434 = arith.addf %405, %408 : vector<1x128xf32>
    %435 = arith.addf %411, %414 : vector<1x128xf32>
    %436 = arith.addf %417, %420 : vector<1x128xf32>
    %437 = arith.addf %421, %422 : vector<1x128xf32>
    %438 = arith.addf %423, %424 : vector<1x128xf32>
    %439 = arith.addf %425, %426 : vector<1x128xf32>
    %440 = arith.addf %427, %428 : vector<1x128xf32>
    %441 = arith.addf %429, %430 : vector<1x128xf32>
    %442 = arith.addf %431, %432 : vector<1x128xf32>
    %443 = arith.addf %433, %434 : vector<1x128xf32>
    %444 = arith.addf %435, %436 : vector<1x128xf32>
    %445 = arith.addf %437, %438 : vector<1x128xf32>
    %446 = arith.addf %439, %440 : vector<1x128xf32>
    %447 = arith.addf %441, %442 : vector<1x128xf32>
    %448 = arith.addf %443, %444 : vector<1x128xf32>
    %449 = arith.addf %445, %446 : vector<1x128xf32>
    %450 = arith.addf %447, %448 : vector<1x128xf32>
    %451 = arith.addf %449, %450 : vector<1x128xf32>
    %452 = vector.extract_strided_slice %322 {offsets = [0, 0], sizes = [1, 128], strides = [1, 1]} : vector<8x128xf32> to vector<1x128xf32>
    %453 = arith.addf %452, %451 : vector<1x128xf32>
    %454 = arith.negf %453 : vector<1x128xf32>
    %455 = math.exp %454 : vector<1x128xf32>
    %cst_70 = arith.constant 1.000000e+00 : f32
    %456 = vector.broadcast %cst_70 : f32 to vector<1x128xf32>
    %457 = arith.addf %456, %455 : vector<1x128xf32>
    %458 = arith.divf %456, %457 : vector<1x128xf32>
    %459 = vector.extract_strided_slice %458 {offsets = [0, 0], sizes = [1, 32], strides = [1, 1]} : vector<1x128xf32> to vector<1x32xf32>
    %460 = vector.extract_strided_slice %458 {offsets = [0, 32], sizes = [1, 32], strides = [1, 1]} : vector<1x128xf32> to vector<1x32xf32>
    %461 = vector.extract_strided_slice %458 {offsets = [0, 64], sizes = [1, 32], strides = [1, 1]} : vector<1x128xf32> to vector<1x32xf32>
    %cst_71 = arith.constant 2.000000e+00 : f32
    %462 = vector.broadcast %cst_71 : f32 to vector<1x32xf32>
    %463 = arith.mulf %462, %461 : vector<1x32xf32>
    %cst_72 = arith.constant 1.000000e+00 : f32
    %464 = vector.broadcast %cst_72 : f32 to vector<1x32xf32>
    %465 = arith.subf %463, %464 : vector<1x32xf32>
    %466 = vector.extract_strided_slice %458 {offsets = [0, 96], sizes = [1, 32], strides = [1, 1]} : vector<1x128xf32> to vector<1x32xf32>
    %467 = arith.mulf %460, %324 : vector<1x32xf32>
    %468 = arith.mulf %459, %465 : vector<1x32xf32>
    %469 = arith.addf %467, %468 : vector<1x32xf32>
    %470 = math.tanh %469 : vector<1x32xf32>
    %471 = arith.mulf %466, %470 : vector<1x32xf32>
    %472 = vector.shape_cast %471 : vector<1x32xf32> to vector<32xf32>
    %c0_73 = arith.constant 0 : index
    %c0_74 = arith.constant 0 : index
    %473 = vector.load %arg5[%c0_73, %c0_74] : memref<8x32xf32, #tpu.memory_space<vmem>>, vector<1x32xf32>
    %474 = vector.shape_cast %473 : vector<1x32xf32> to vector<32xf32>
    %475 = vector.shape_cast %472 : vector<32xf32> to vector<1x32xf32>
    tpu.vector_store %arg5[%c0_73, %c0_74], %475 {strides = array<i32>} : memref<8x32xf32, #tpu.memory_space<vmem>>, vector<1x32xf32>,
    %476 = vector.extract_strided_slice %471 {offsets = [0, 0], sizes = [1, 1], strides = [1, 1]} : vector<1x32xf32> to vector<1x1xf32>
    %477 = vector.broadcast %476 : vector<1x1xf32> to vector<1x128xf32>
    %478 = arith.mulf %477, %284 : vector<1x128xf32>
    %479 = vector.extract_strided_slice %471 {offsets = [0, 1], sizes = [1, 1], strides = [1, 1]} : vector<1x32xf32> to vector<1x1xf32>
    %480 = vector.broadcast %479 : vector<1x1xf32> to vector<1x128xf32>
    %481 = arith.mulf %480, %285 : vector<1x128xf32>
    %482 = vector.extract_strided_slice %471 {offsets = [0, 2], sizes = [1, 1], strides = [1, 1]} : vector<1x32xf32> to vector<1x1xf32>
    %483 = vector.broadcast %482 : vector<1x1xf32> to vector<1x128xf32>
    %484 = arith.mulf %483, %286 : vector<1x128xf32>
    %485 = vector.extract_strided_slice %471 {offsets = [0, 3], sizes = [1, 1], strides = [1, 1]} : vector<1x32xf32> to vector<1x1xf32>
    %486 = vector.broadcast %485 : vector<1x1xf32> to vector<1x128xf32>
    %487 = arith.mulf %486, %287 : vector<1x128xf32>
    %488 = vector.extract_strided_slice %471 {offsets = [0, 4], sizes = [1, 1], strides = [1, 1]} : vector<1x32xf32> to vector<1x1xf32>
    %489 = vector.broadcast %488 : vector<1x1xf32> to vector<1x128xf32>
    %490 = arith.mulf %489, %288 : vector<1x128xf32>
    %491 = vector.extract_strided_slice %471 {offsets = [0, 5], sizes = [1, 1], strides = [1, 1]} : vector<1x32xf32> to vector<1x1xf32>
    %492 = vector.broadcast %491 : vector<1x1xf32> to vector<1x128xf32>
    %493 = arith.mulf %492, %289 : vector<1x128xf32>
    %494 = vector.extract_strided_slice %471 {offsets = [0, 6], sizes = [1, 1], strides = [1, 1]} : vector<1x32xf32> to vector<1x1xf32>
    %495 = vector.broadcast %494 : vector<1x1xf32> to vector<1x128xf32>
    %496 = arith.mulf %495, %290 : vector<1x128xf32>
    %497 = vector.extract_strided_slice %471 {offsets = [0, 7], sizes = [1, 1], strides = [1, 1]} : vector<1x32xf32> to vector<1x1xf32>
    %498 = vector.broadcast %497 : vector<1x1xf32> to vector<1x128xf32>
    %499 = arith.mulf %498, %291 : vector<1x128xf32>
    %500 = vector.extract_strided_slice %471 {offsets = [0, 8], sizes = [1, 1], strides = [1, 1]} : vector<1x32xf32> to vector<1x1xf32>
    %501 = vector.broadcast %500 : vector<1x1xf32> to vector<1x128xf32>
    %502 = arith.mulf %501, %292 : vector<1x128xf32>
    %503 = vector.extract_strided_slice %471 {offsets = [0, 9], sizes = [1, 1], strides = [1, 1]} : vector<1x32xf32> to vector<1x1xf32>
    %504 = vector.broadcast %503 : vector<1x1xf32> to vector<1x128xf32>
    %505 = arith.mulf %504, %293 : vector<1x128xf32>
    %506 = vector.extract_strided_slice %471 {offsets = [0, 10], sizes = [1, 1], strides = [1, 1]} : vector<1x32xf32> to vector<1x1xf32>
    %507 = vector.broadcast %506 : vector<1x1xf32> to vector<1x128xf32>
    %508 = arith.mulf %507, %294 : vector<1x128xf32>
    %509 = vector.extract_strided_slice %471 {offsets = [0, 11], sizes = [1, 1], strides = [1, 1]} : vector<1x32xf32> to vector<1x1xf32>
    %510 = vector.broadcast %509 : vector<1x1xf32> to vector<1x128xf32>
    %511 = arith.mulf %510, %295 : vector<1x128xf32>
    %512 = vector.extract_strided_slice %471 {offsets = [0, 12], sizes = [1, 1], strides = [1, 1]} : vector<1x32xf32> to vector<1x1xf32>
    %513 = vector.broadcast %512 : vector<1x1xf32> to vector<1x128xf32>
    %514 = arith.mulf %513, %296 : vector<1x128xf32>
    %515 = vector.extract_strided_slice %471 {offsets = [0, 13], sizes = [1, 1], strides = [1, 1]} : vector<1x32xf32> to vector<1x1xf32>
    %516 = vector.broadcast %515 : vector<1x1xf32> to vector<1x128xf32>
    %517 = arith.mulf %516, %297 : vector<1x128xf32>
    %518 = vector.extract_strided_slice %471 {offsets = [0, 14], sizes = [1, 1], strides = [1, 1]} : vector<1x32xf32> to vector<1x1xf32>
    %519 = vector.broadcast %518 : vector<1x1xf32> to vector<1x128xf32>
    %520 = arith.mulf %519, %298 : vector<1x128xf32>
    %521 = vector.extract_strided_slice %471 {offsets = [0, 15], sizes = [1, 1], strides = [1, 1]} : vector<1x32xf32> to vector<1x1xf32>
    %522 = vector.broadcast %521 : vector<1x1xf32> to vector<1x128xf32>
    %523 = arith.mulf %522, %299 : vector<1x128xf32>
    %524 = vector.extract_strided_slice %471 {offsets = [0, 16], sizes = [1, 1], strides = [1, 1]} : vector<1x32xf32> to vector<1x1xf32>
    %525 = vector.broadcast %524 : vector<1x1xf32> to vector<1x128xf32>
    %526 = arith.mulf %525, %300 : vector<1x128xf32>
    %527 = vector.extract_strided_slice %471 {offsets = [0, 17], sizes = [1, 1], strides = [1, 1]} : vector<1x32xf32> to vector<1x1xf32>
    %528 = vector.broadcast %527 : vector<1x1xf32> to vector<1x128xf32>
    %529 = arith.mulf %528, %301 : vector<1x128xf32>
    %530 = vector.extract_strided_slice %471 {offsets = [0, 18], sizes = [1, 1], strides = [1, 1]} : vector<1x32xf32> to vector<1x1xf32>
    %531 = vector.broadcast %530 : vector<1x1xf32> to vector<1x128xf32>
    %532 = arith.mulf %531, %302 : vector<1x128xf32>
    %533 = vector.extract_strided_slice %471 {offsets = [0, 19], sizes = [1, 1], strides = [1, 1]} : vector<1x32xf32> to vector<1x1xf32>
    %534 = vector.broadcast %533 : vector<1x1xf32> to vector<1x128xf32>
    %535 = arith.mulf %534, %303 : vector<1x128xf32>
    %536 = vector.extract_strided_slice %471 {offsets = [0, 20], sizes = [1, 1], strides = [1, 1]} : vector<1x32xf32> to vector<1x1xf32>
    %537 = vector.broadcast %536 : vector<1x1xf32> to vector<1x128xf32>
    %538 = arith.mulf %537, %304 : vector<1x128xf32>
    %539 = vector.extract_strided_slice %471 {offsets = [0, 21], sizes = [1, 1], strides = [1, 1]} : vector<1x32xf32> to vector<1x1xf32>
    %540 = vector.broadcast %539 : vector<1x1xf32> to vector<1x128xf32>
    %541 = arith.mulf %540, %305 : vector<1x128xf32>
    %542 = vector.extract_strided_slice %471 {offsets = [0, 22], sizes = [1, 1], strides = [1, 1]} : vector<1x32xf32> to vector<1x1xf32>
    %543 = vector.broadcast %542 : vector<1x1xf32> to vector<1x128xf32>
    %544 = arith.mulf %543, %306 : vector<1x128xf32>
    %545 = vector.extract_strided_slice %471 {offsets = [0, 23], sizes = [1, 1], strides = [1, 1]} : vector<1x32xf32> to vector<1x1xf32>
    %546 = vector.broadcast %545 : vector<1x1xf32> to vector<1x128xf32>
    %547 = arith.mulf %546, %307 : vector<1x128xf32>
    %548 = vector.extract_strided_slice %471 {offsets = [0, 24], sizes = [1, 1], strides = [1, 1]} : vector<1x32xf32> to vector<1x1xf32>
    %549 = vector.broadcast %548 : vector<1x1xf32> to vector<1x128xf32>
    %550 = arith.mulf %549, %308 : vector<1x128xf32>
    %551 = vector.extract_strided_slice %471 {offsets = [0, 25], sizes = [1, 1], strides = [1, 1]} : vector<1x32xf32> to vector<1x1xf32>
    %552 = vector.broadcast %551 : vector<1x1xf32> to vector<1x128xf32>
    %553 = arith.mulf %552, %309 : vector<1x128xf32>
    %554 = vector.extract_strided_slice %471 {offsets = [0, 26], sizes = [1, 1], strides = [1, 1]} : vector<1x32xf32> to vector<1x1xf32>
    %555 = vector.broadcast %554 : vector<1x1xf32> to vector<1x128xf32>
    %556 = arith.mulf %555, %310 : vector<1x128xf32>
    %557 = vector.extract_strided_slice %471 {offsets = [0, 27], sizes = [1, 1], strides = [1, 1]} : vector<1x32xf32> to vector<1x1xf32>
    %558 = vector.broadcast %557 : vector<1x1xf32> to vector<1x128xf32>
    %559 = arith.mulf %558, %311 : vector<1x128xf32>
    %560 = vector.extract_strided_slice %471 {offsets = [0, 28], sizes = [1, 1], strides = [1, 1]} : vector<1x32xf32> to vector<1x1xf32>
    %561 = vector.broadcast %560 : vector<1x1xf32> to vector<1x128xf32>
    %562 = arith.mulf %561, %312 : vector<1x128xf32>
    %563 = vector.extract_strided_slice %471 {offsets = [0, 29], sizes = [1, 1], strides = [1, 1]} : vector<1x32xf32> to vector<1x1xf32>
    %564 = vector.broadcast %563 : vector<1x1xf32> to vector<1x128xf32>
    %565 = arith.mulf %564, %313 : vector<1x128xf32>
    %566 = vector.extract_strided_slice %471 {offsets = [0, 30], sizes = [1, 1], strides = [1, 1]} : vector<1x32xf32> to vector<1x1xf32>
    %567 = vector.broadcast %566 : vector<1x1xf32> to vector<1x128xf32>
    %568 = arith.mulf %567, %314 : vector<1x128xf32>
    %569 = vector.extract_strided_slice %471 {offsets = [0, 31], sizes = [1, 1], strides = [1, 1]} : vector<1x32xf32> to vector<1x1xf32>
    %570 = vector.broadcast %569 : vector<1x1xf32> to vector<1x128xf32>
    %571 = arith.mulf %570, %315 : vector<1x128xf32>
    %572 = arith.addf %478, %481 : vector<1x128xf32>
    %573 = arith.addf %484, %487 : vector<1x128xf32>
    %574 = arith.addf %490, %493 : vector<1x128xf32>
    %575 = arith.addf %496, %499 : vector<1x128xf32>
    %576 = arith.addf %502, %505 : vector<1x128xf32>
    %577 = arith.addf %508, %511 : vector<1x128xf32>
    %578 = arith.addf %514, %517 : vector<1x128xf32>
    %579 = arith.addf %520, %523 : vector<1x128xf32>
    %580 = arith.addf %526, %529 : vector<1x128xf32>
    %581 = arith.addf %532, %535 : vector<1x128xf32>
    %582 = arith.addf %538, %541 : vector<1x128xf32>
    %583 = arith.addf %544, %547 : vector<1x128xf32>
    %584 = arith.addf %550, %553 : vector<1x128xf32>
    %585 = arith.addf %556, %559 : vector<1x128xf32>
    %586 = arith.addf %562, %565 : vector<1x128xf32>
    %587 = arith.addf %568, %571 : vector<1x128xf32>
    %588 = arith.addf %572, %573 : vector<1x128xf32>
    %589 = arith.addf %574, %575 : vector<1x128xf32>
    %590 = arith.addf %576, %577 : vector<1x128xf32>
    %591 = arith.addf %578, %579 : vector<1x128xf32>
    %592 = arith.addf %580, %581 : vector<1x128xf32>
    %593 = arith.addf %582, %583 : vector<1x128xf32>
    %594 = arith.addf %584, %585 : vector<1x128xf32>
    %595 = arith.addf %586, %587 : vector<1x128xf32>
    %596 = arith.addf %588, %589 : vector<1x128xf32>
    %597 = arith.addf %590, %591 : vector<1x128xf32>
    %598 = arith.addf %592, %593 : vector<1x128xf32>
    %599 = arith.addf %594, %595 : vector<1x128xf32>
    %600 = arith.addf %596, %597 : vector<1x128xf32>
    %601 = arith.addf %598, %599 : vector<1x128xf32>
    %602 = arith.addf %600, %601 : vector<1x128xf32>
    %603 = vector.extract_strided_slice %322 {offsets = [1, 0], sizes = [1, 128], strides = [1, 1]} : vector<8x128xf32> to vector<1x128xf32>
    %604 = arith.addf %603, %602 : vector<1x128xf32>
    %605 = arith.negf %604 : vector<1x128xf32>
    %606 = math.exp %605 : vector<1x128xf32>
    %cst_75 = arith.constant 1.000000e+00 : f32
    %607 = vector.broadcast %cst_75 : f32 to vector<1x128xf32>
    %608 = arith.addf %607, %606 : vector<1x128xf32>
    %609 = arith.divf %607, %608 : vector<1x128xf32>
    %610 = vector.extract_strided_slice %609 {offsets = [0, 0], sizes = [1, 32], strides = [1, 1]} : vector<1x128xf32> to vector<1x32xf32>
    %611 = vector.extract_strided_slice %609 {offsets = [0, 32], sizes = [1, 32], strides = [1, 1]} : vector<1x128xf32> to vector<1x32xf32>
    %612 = vector.extract_strided_slice %609 {offsets = [0, 64], sizes = [1, 32], strides = [1, 1]} : vector<1x128xf32> to vector<1x32xf32>
    %cst_76 = arith.constant 2.000000e+00 : f32
    %613 = vector.broadcast %cst_76 : f32 to vector<1x32xf32>
    %614 = arith.mulf %613, %612 : vector<1x32xf32>
    %cst_77 = arith.constant 1.000000e+00 : f32
    %615 = vector.broadcast %cst_77 : f32 to vector<1x32xf32>
    %616 = arith.subf %614, %615 : vector<1x32xf32>
    %617 = vector.extract_strided_slice %609 {offsets = [0, 96], sizes = [1, 32], strides = [1, 1]} : vector<1x128xf32> to vector<1x32xf32>
    %618 = arith.mulf %611, %469 : vector<1x32xf32>
    %619 = arith.mulf %610, %616 : vector<1x32xf32>
    %620 = arith.addf %618, %619 : vector<1x32xf32>
    %621 = math.tanh %620 : vector<1x32xf32>
    %622 = arith.mulf %617, %621 : vector<1x32xf32>
    %623 = vector.shape_cast %622 : vector<1x32xf32> to vector<32xf32>
    %c1 = arith.constant 1 : index
    %c0_78 = arith.constant 0 : index
    %624 = vector.load %arg5[%c1, %c0_78] : memref<8x32xf32, #tpu.memory_space<vmem>>, vector<1x32xf32>
    %625 = vector.shape_cast %624 : vector<1x32xf32> to vector<32xf32>
    %626 = vector.shape_cast %623 : vector<32xf32> to vector<1x32xf32>
    tpu.vector_store %arg5[%c1, %c0_78], %626 {strides = array<i32>} : memref<8x32xf32, #tpu.memory_space<vmem>>, vector<1x32xf32>,
    %627 = vector.extract_strided_slice %622 {offsets = [0, 0], sizes = [1, 1], strides = [1, 1]} : vector<1x32xf32> to vector<1x1xf32>
    %628 = vector.broadcast %627 : vector<1x1xf32> to vector<1x128xf32>
    %629 = arith.mulf %628, %284 : vector<1x128xf32>
    %630 = vector.extract_strided_slice %622 {offsets = [0, 1], sizes = [1, 1], strides = [1, 1]} : vector<1x32xf32> to vector<1x1xf32>
    %631 = vector.broadcast %630 : vector<1x1xf32> to vector<1x128xf32>
    %632 = arith.mulf %631, %285 : vector<1x128xf32>
    %633 = vector.extract_strided_slice %622 {offsets = [0, 2], sizes = [1, 1], strides = [1, 1]} : vector<1x32xf32> to vector<1x1xf32>
    %634 = vector.broadcast %633 : vector<1x1xf32> to vector<1x128xf32>
    %635 = arith.mulf %634, %286 : vector<1x128xf32>
    %636 = vector.extract_strided_slice %622 {offsets = [0, 3], sizes = [1, 1], strides = [1, 1]} : vector<1x32xf32> to vector<1x1xf32>
    %637 = vector.broadcast %636 : vector<1x1xf32> to vector<1x128xf32>
    %638 = arith.mulf %637, %287 : vector<1x128xf32>
    %639 = vector.extract_strided_slice %622 {offsets = [0, 4], sizes = [1, 1], strides = [1, 1]} : vector<1x32xf32> to vector<1x1xf32>
    %640 = vector.broadcast %639 : vector<1x1xf32> to vector<1x128xf32>
    %641 = arith.mulf %640, %288 : vector<1x128xf32>
    %642 = vector.extract_strided_slice %622 {offsets = [0, 5], sizes = [1, 1], strides = [1, 1]} : vector<1x32xf32> to vector<1x1xf32>
    %643 = vector.broadcast %642 : vector<1x1xf32> to vector<1x128xf32>
    %644 = arith.mulf %643, %289 : vector<1x128xf32>
    %645 = vector.extract_strided_slice %622 {offsets = [0, 6], sizes = [1, 1], strides = [1, 1]} : vector<1x32xf32> to vector<1x1xf32>
    %646 = vector.broadcast %645 : vector<1x1xf32> to vector<1x128xf32>
    %647 = arith.mulf %646, %290 : vector<1x128xf32>
    %648 = vector.extract_strided_slice %622 {offsets = [0, 7], sizes = [1, 1], strides = [1, 1]} : vector<1x32xf32> to vector<1x1xf32>
    %649 = vector.broadcast %648 : vector<1x1xf32> to vector<1x128xf32>
    %650 = arith.mulf %649, %291 : vector<1x128xf32>
    %651 = vector.extract_strided_slice %622 {offsets = [0, 8], sizes = [1, 1], strides = [1, 1]} : vector<1x32xf32> to vector<1x1xf32>
    %652 = vector.broadcast %651 : vector<1x1xf32> to vector<1x128xf32>
    %653 = arith.mulf %652, %292 : vector<1x128xf32>
    %654 = vector.extract_strided_slice %622 {offsets = [0, 9], sizes = [1, 1], strides = [1, 1]} : vector<1x32xf32> to vector<1x1xf32>
    %655 = vector.broadcast %654 : vector<1x1xf32> to vector<1x128xf32>
    %656 = arith.mulf %655, %293 : vector<1x128xf32>
    %657 = vector.extract_strided_slice %622 {offsets = [0, 10], sizes = [1, 1], strides = [1, 1]} : vector<1x32xf32> to vector<1x1xf32>
    %658 = vector.broadcast %657 : vector<1x1xf32> to vector<1x128xf32>
    %659 = arith.mulf %658, %294 : vector<1x128xf32>
    %660 = vector.extract_strided_slice %622 {offsets = [0, 11], sizes = [1, 1], strides = [1, 1]} : vector<1x32xf32> to vector<1x1xf32>
    %661 = vector.broadcast %660 : vector<1x1xf32> to vector<1x128xf32>
    %662 = arith.mulf %661, %295 : vector<1x128xf32>
    %663 = vector.extract_strided_slice %622 {offsets = [0, 12], sizes = [1, 1], strides = [1, 1]} : vector<1x32xf32> to vector<1x1xf32>
    %664 = vector.broadcast %663 : vector<1x1xf32> to vector<1x128xf32>
    %665 = arith.mulf %664, %296 : vector<1x128xf32>
    %666 = vector.extract_strided_slice %622 {offsets = [0, 13], sizes = [1, 1], strides = [1, 1]} : vector<1x32xf32> to vector<1x1xf32>
    %667 = vector.broadcast %666 : vector<1x1xf32> to vector<1x128xf32>
    %668 = arith.mulf %667, %297 : vector<1x128xf32>
    %669 = vector.extract_strided_slice %622 {offsets = [0, 14], sizes = [1, 1], strides = [1, 1]} : vector<1x32xf32> to vector<1x1xf32>
    %670 = vector.broadcast %669 : vector<1x1xf32> to vector<1x128xf32>
    %671 = arith.mulf %670, %298 : vector<1x128xf32>
    %672 = vector.extract_strided_slice %622 {offsets = [0, 15], sizes = [1, 1], strides = [1, 1]} : vector<1x32xf32> to vector<1x1xf32>
    %673 = vector.broadcast %672 : vector<1x1xf32> to vector<1x128xf32>
    %674 = arith.mulf %673, %299 : vector<1x128xf32>
    %675 = vector.extract_strided_slice %622 {offsets = [0, 16], sizes = [1, 1], strides = [1, 1]} : vector<1x32xf32> to vector<1x1xf32>
    %676 = vector.broadcast %675 : vector<1x1xf32> to vector<1x128xf32>
    %677 = arith.mulf %676, %300 : vector<1x128xf32>
    %678 = vector.extract_strided_slice %622 {offsets = [0, 17], sizes = [1, 1], strides = [1, 1]} : vector<1x32xf32> to vector<1x1xf32>
    %679 = vector.broadcast %678 : vector<1x1xf32> to vector<1x128xf32>
    %680 = arith.mulf %679, %301 : vector<1x128xf32>
    %681 = vector.extract_strided_slice %622 {offsets = [0, 18], sizes = [1, 1], strides = [1, 1]} : vector<1x32xf32> to vector<1x1xf32>
    %682 = vector.broadcast %681 : vector<1x1xf32> to vector<1x128xf32>
    %683 = arith.mulf %682, %302 : vector<1x128xf32>
    %684 = vector.extract_strided_slice %622 {offsets = [0, 19], sizes = [1, 1], strides = [1, 1]} : vector<1x32xf32> to vector<1x1xf32>
    %685 = vector.broadcast %684 : vector<1x1xf32> to vector<1x128xf32>
    %686 = arith.mulf %685, %303 : vector<1x128xf32>
    %687 = vector.extract_strided_slice %622 {offsets = [0, 20], sizes = [1, 1], strides = [1, 1]} : vector<1x32xf32> to vector<1x1xf32>
    %688 = vector.broadcast %687 : vector<1x1xf32> to vector<1x128xf32>
    %689 = arith.mulf %688, %304 : vector<1x128xf32>
    %690 = vector.extract_strided_slice %622 {offsets = [0, 21], sizes = [1, 1], strides = [1, 1]} : vector<1x32xf32> to vector<1x1xf32>
    %691 = vector.broadcast %690 : vector<1x1xf32> to vector<1x128xf32>
    %692 = arith.mulf %691, %305 : vector<1x128xf32>
    %693 = vector.extract_strided_slice %622 {offsets = [0, 22], sizes = [1, 1], strides = [1, 1]} : vector<1x32xf32> to vector<1x1xf32>
    %694 = vector.broadcast %693 : vector<1x1xf32> to vector<1x128xf32>
    %695 = arith.mulf %694, %306 : vector<1x128xf32>
    %696 = vector.extract_strided_slice %622 {offsets = [0, 23], sizes = [1, 1], strides = [1, 1]} : vector<1x32xf32> to vector<1x1xf32>
    %697 = vector.broadcast %696 : vector<1x1xf32> to vector<1x128xf32>
    %698 = arith.mulf %697, %307 : vector<1x128xf32>
    %699 = vector.extract_strided_slice %622 {offsets = [0, 24], sizes = [1, 1], strides = [1, 1]} : vector<1x32xf32> to vector<1x1xf32>
    %700 = vector.broadcast %699 : vector<1x1xf32> to vector<1x128xf32>
    %701 = arith.mulf %700, %308 : vector<1x128xf32>
    %702 = vector.extract_strided_slice %622 {offsets = [0, 25], sizes = [1, 1], strides = [1, 1]} : vector<1x32xf32> to vector<1x1xf32>
    %703 = vector.broadcast %702 : vector<1x1xf32> to vector<1x128xf32>
    %704 = arith.mulf %703, %309 : vector<1x128xf32>
    %705 = vector.extract_strided_slice %622 {offsets = [0, 26], sizes = [1, 1], strides = [1, 1]} : vector<1x32xf32> to vector<1x1xf32>
    %706 = vector.broadcast %705 : vector<1x1xf32> to vector<1x128xf32>
    %707 = arith.mulf %706, %310 : vector<1x128xf32>
    %708 = vector.extract_strided_slice %622 {offsets = [0, 27], sizes = [1, 1], strides = [1, 1]} : vector<1x32xf32> to vector<1x1xf32>
    %709 = vector.broadcast %708 : vector<1x1xf32> to vector<1x128xf32>
    %710 = arith.mulf %709, %311 : vector<1x128xf32>
    %711 = vector.extract_strided_slice %622 {offsets = [0, 28], sizes = [1, 1], strides = [1, 1]} : vector<1x32xf32> to vector<1x1xf32>
    %712 = vector.broadcast %711 : vector<1x1xf32> to vector<1x128xf32>
    %713 = arith.mulf %712, %312 : vector<1x128xf32>
    %714 = vector.extract_strided_slice %622 {offsets = [0, 29], sizes = [1, 1], strides = [1, 1]} : vector<1x32xf32> to vector<1x1xf32>
    %715 = vector.broadcast %714 : vector<1x1xf32> to vector<1x128xf32>
    %716 = arith.mulf %715, %313 : vector<1x128xf32>
    %717 = vector.extract_strided_slice %622 {offsets = [0, 30], sizes = [1, 1], strides = [1, 1]} : vector<1x32xf32> to vector<1x1xf32>
    %718 = vector.broadcast %717 : vector<1x1xf32> to vector<1x128xf32>
    %719 = arith.mulf %718, %314 : vector<1x128xf32>
    %720 = vector.extract_strided_slice %622 {offsets = [0, 31], sizes = [1, 1], strides = [1, 1]} : vector<1x32xf32> to vector<1x1xf32>
    %721 = vector.broadcast %720 : vector<1x1xf32> to vector<1x128xf32>
    %722 = arith.mulf %721, %315 : vector<1x128xf32>
    %723 = arith.addf %629, %632 : vector<1x128xf32>
    %724 = arith.addf %635, %638 : vector<1x128xf32>
    %725 = arith.addf %641, %644 : vector<1x128xf32>
    %726 = arith.addf %647, %650 : vector<1x128xf32>
    %727 = arith.addf %653, %656 : vector<1x128xf32>
    %728 = arith.addf %659, %662 : vector<1x128xf32>
    %729 = arith.addf %665, %668 : vector<1x128xf32>
    %730 = arith.addf %671, %674 : vector<1x128xf32>
    %731 = arith.addf %677, %680 : vector<1x128xf32>
    %732 = arith.addf %683, %686 : vector<1x128xf32>
    %733 = arith.addf %689, %692 : vector<1x128xf32>
    %734 = arith.addf %695, %698 : vector<1x128xf32>
    %735 = arith.addf %701, %704 : vector<1x128xf32>
    %736 = arith.addf %707, %710 : vector<1x128xf32>
    %737 = arith.addf %713, %716 : vector<1x128xf32>
    %738 = arith.addf %719, %722 : vector<1x128xf32>
    %739 = arith.addf %723, %724 : vector<1x128xf32>
    %740 = arith.addf %725, %726 : vector<1x128xf32>
    %741 = arith.addf %727, %728 : vector<1x128xf32>
    %742 = arith.addf %729, %730 : vector<1x128xf32>
    %743 = arith.addf %731, %732 : vector<1x128xf32>
    %744 = arith.addf %733, %734 : vector<1x128xf32>
    %745 = arith.addf %735, %736 : vector<1x128xf32>
    %746 = arith.addf %737, %738 : vector<1x128xf32>
    %747 = arith.addf %739, %740 : vector<1x128xf32>
    %748 = arith.addf %741, %742 : vector<1x128xf32>
    %749 = arith.addf %743, %744 : vector<1x128xf32>
    %750 = arith.addf %745, %746 : vector<1x128xf32>
    %751 = arith.addf %747, %748 : vector<1x128xf32>
    %752 = arith.addf %749, %750 : vector<1x128xf32>
    %753 = arith.addf %751, %752 : vector<1x128xf32>
    %754 = vector.extract_strided_slice %322 {offsets = [2, 0], sizes = [1, 128], strides = [1, 1]} : vector<8x128xf32> to vector<1x128xf32>
    %755 = arith.addf %754, %753 : vector<1x128xf32>
    %756 = arith.negf %755 : vector<1x128xf32>
    %757 = math.exp %756 : vector<1x128xf32>
    %cst_79 = arith.constant 1.000000e+00 : f32
    %758 = vector.broadcast %cst_79 : f32 to vector<1x128xf32>
    %759 = arith.addf %758, %757 : vector<1x128xf32>
    %760 = arith.divf %758, %759 : vector<1x128xf32>
    %761 = vector.extract_strided_slice %760 {offsets = [0, 0], sizes = [1, 32], strides = [1, 1]} : vector<1x128xf32> to vector<1x32xf32>
    %762 = vector.extract_strided_slice %760 {offsets = [0, 32], sizes = [1, 32], strides = [1, 1]} : vector<1x128xf32> to vector<1x32xf32>
    %763 = vector.extract_strided_slice %760 {offsets = [0, 64], sizes = [1, 32], strides = [1, 1]} : vector<1x128xf32> to vector<1x32xf32>
    %cst_80 = arith.constant 2.000000e+00 : f32
    %764 = vector.broadcast %cst_80 : f32 to vector<1x32xf32>
    %765 = arith.mulf %764, %763 : vector<1x32xf32>
    %cst_81 = arith.constant 1.000000e+00 : f32
    %766 = vector.broadcast %cst_81 : f32 to vector<1x32xf32>
    %767 = arith.subf %765, %766 : vector<1x32xf32>
    %768 = vector.extract_strided_slice %760 {offsets = [0, 96], sizes = [1, 32], strides = [1, 1]} : vector<1x128xf32> to vector<1x32xf32>
    %769 = arith.mulf %762, %620 : vector<1x32xf32>
    %770 = arith.mulf %761, %767 : vector<1x32xf32>
    %771 = arith.addf %769, %770 : vector<1x32xf32>
    %772 = math.tanh %771 : vector<1x32xf32>
    %773 = arith.mulf %768, %772 : vector<1x32xf32>
    %774 = vector.shape_cast %773 : vector<1x32xf32> to vector<32xf32>
    %c2 = arith.constant 2 : index
    %c0_82 = arith.constant 0 : index
    %775 = vector.load %arg5[%c2, %c0_82] : memref<8x32xf32, #tpu.memory_space<vmem>>, vector<1x32xf32>
    %776 = vector.shape_cast %775 : vector<1x32xf32> to vector<32xf32>
    %777 = vector.shape_cast %774 : vector<32xf32> to vector<1x32xf32>
    tpu.vector_store %arg5[%c2, %c0_82], %777 {strides = array<i32>} : memref<8x32xf32, #tpu.memory_space<vmem>>, vector<1x32xf32>,
    %778 = vector.extract_strided_slice %773 {offsets = [0, 0], sizes = [1, 1], strides = [1, 1]} : vector<1x32xf32> to vector<1x1xf32>
    %779 = vector.broadcast %778 : vector<1x1xf32> to vector<1x128xf32>
    %780 = arith.mulf %779, %284 : vector<1x128xf32>
    %781 = vector.extract_strided_slice %773 {offsets = [0, 1], sizes = [1, 1], strides = [1, 1]} : vector<1x32xf32> to vector<1x1xf32>
    %782 = vector.broadcast %781 : vector<1x1xf32> to vector<1x128xf32>
    %783 = arith.mulf %782, %285 : vector<1x128xf32>
    %784 = vector.extract_strided_slice %773 {offsets = [0, 2], sizes = [1, 1], strides = [1, 1]} : vector<1x32xf32> to vector<1x1xf32>
    %785 = vector.broadcast %784 : vector<1x1xf32> to vector<1x128xf32>
    %786 = arith.mulf %785, %286 : vector<1x128xf32>
    %787 = vector.extract_strided_slice %773 {offsets = [0, 3], sizes = [1, 1], strides = [1, 1]} : vector<1x32xf32> to vector<1x1xf32>
    %788 = vector.broadcast %787 : vector<1x1xf32> to vector<1x128xf32>
    %789 = arith.mulf %788, %287 : vector<1x128xf32>
    %790 = vector.extract_strided_slice %773 {offsets = [0, 4], sizes = [1, 1], strides = [1, 1]} : vector<1x32xf32> to vector<1x1xf32>
    %791 = vector.broadcast %790 : vector<1x1xf32> to vector<1x128xf32>
    %792 = arith.mulf %791, %288 : vector<1x128xf32>
    %793 = vector.extract_strided_slice %773 {offsets = [0, 5], sizes = [1, 1], strides = [1, 1]} : vector<1x32xf32> to vector<1x1xf32>
    %794 = vector.broadcast %793 : vector<1x1xf32> to vector<1x128xf32>
    %795 = arith.mulf %794, %289 : vector<1x128xf32>
    %796 = vector.extract_strided_slice %773 {offsets = [0, 6], sizes = [1, 1], strides = [1, 1]} : vector<1x32xf32> to vector<1x1xf32>
    %797 = vector.broadcast %796 : vector<1x1xf32> to vector<1x128xf32>
    %798 = arith.mulf %797, %290 : vector<1x128xf32>
    %799 = vector.extract_strided_slice %773 {offsets = [0, 7], sizes = [1, 1], strides = [1, 1]} : vector<1x32xf32> to vector<1x1xf32>
    %800 = vector.broadcast %799 : vector<1x1xf32> to vector<1x128xf32>
    %801 = arith.mulf %800, %291 : vector<1x128xf32>
    %802 = vector.extract_strided_slice %773 {offsets = [0, 8], sizes = [1, 1], strides = [1, 1]} : vector<1x32xf32> to vector<1x1xf32>
    %803 = vector.broadcast %802 : vector<1x1xf32> to vector<1x128xf32>
    %804 = arith.mulf %803, %292 : vector<1x128xf32>
    %805 = vector.extract_strided_slice %773 {offsets = [0, 9], sizes = [1, 1], strides = [1, 1]} : vector<1x32xf32> to vector<1x1xf32>
    %806 = vector.broadcast %805 : vector<1x1xf32> to vector<1x128xf32>
    %807 = arith.mulf %806, %293 : vector<1x128xf32>
    %808 = vector.extract_strided_slice %773 {offsets = [0, 10], sizes = [1, 1], strides = [1, 1]} : vector<1x32xf32> to vector<1x1xf32>
    %809 = vector.broadcast %808 : vector<1x1xf32> to vector<1x128xf32>
    %810 = arith.mulf %809, %294 : vector<1x128xf32>
    %811 = vector.extract_strided_slice %773 {offsets = [0, 11], sizes = [1, 1], strides = [1, 1]} : vector<1x32xf32> to vector<1x1xf32>
    %812 = vector.broadcast %811 : vector<1x1xf32> to vector<1x128xf32>
    %813 = arith.mulf %812, %295 : vector<1x128xf32>
    %814 = vector.extract_strided_slice %773 {offsets = [0, 12], sizes = [1, 1], strides = [1, 1]} : vector<1x32xf32> to vector<1x1xf32>
    %815 = vector.broadcast %814 : vector<1x1xf32> to vector<1x128xf32>
    %816 = arith.mulf %815, %296 : vector<1x128xf32>
    %817 = vector.extract_strided_slice %773 {offsets = [0, 13], sizes = [1, 1], strides = [1, 1]} : vector<1x32xf32> to vector<1x1xf32>
    %818 = vector.broadcast %817 : vector<1x1xf32> to vector<1x128xf32>
    %819 = arith.mulf %818, %297 : vector<1x128xf32>
    %820 = vector.extract_strided_slice %773 {offsets = [0, 14], sizes = [1, 1], strides = [1, 1]} : vector<1x32xf32> to vector<1x1xf32>
    %821 = vector.broadcast %820 : vector<1x1xf32> to vector<1x128xf32>
    %822 = arith.mulf %821, %298 : vector<1x128xf32>
    %823 = vector.extract_strided_slice %773 {offsets = [0, 15], sizes = [1, 1], strides = [1, 1]} : vector<1x32xf32> to vector<1x1xf32>
    %824 = vector.broadcast %823 : vector<1x1xf32> to vector<1x128xf32>
    %825 = arith.mulf %824, %299 : vector<1x128xf32>
    %826 = vector.extract_strided_slice %773 {offsets = [0, 16], sizes = [1, 1], strides = [1, 1]} : vector<1x32xf32> to vector<1x1xf32>
    %827 = vector.broadcast %826 : vector<1x1xf32> to vector<1x128xf32>
    %828 = arith.mulf %827, %300 : vector<1x128xf32>
    %829 = vector.extract_strided_slice %773 {offsets = [0, 17], sizes = [1, 1], strides = [1, 1]} : vector<1x32xf32> to vector<1x1xf32>
    %830 = vector.broadcast %829 : vector<1x1xf32> to vector<1x128xf32>
    %831 = arith.mulf %830, %301 : vector<1x128xf32>
    %832 = vector.extract_strided_slice %773 {offsets = [0, 18], sizes = [1, 1], strides = [1, 1]} : vector<1x32xf32> to vector<1x1xf32>
    %833 = vector.broadcast %832 : vector<1x1xf32> to vector<1x128xf32>
    %834 = arith.mulf %833, %302 : vector<1x128xf32>
    %835 = vector.extract_strided_slice %773 {offsets = [0, 19], sizes = [1, 1], strides = [1, 1]} : vector<1x32xf32> to vector<1x1xf32>
    %836 = vector.broadcast %835 : vector<1x1xf32> to vector<1x128xf32>
    %837 = arith.mulf %836, %303 : vector<1x128xf32>
    %838 = vector.extract_strided_slice %773 {offsets = [0, 20], sizes = [1, 1], strides = [1, 1]} : vector<1x32xf32> to vector<1x1xf32>
    %839 = vector.broadcast %838 : vector<1x1xf32> to vector<1x128xf32>
    %840 = arith.mulf %839, %304 : vector<1x128xf32>
    %841 = vector.extract_strided_slice %773 {offsets = [0, 21], sizes = [1, 1], strides = [1, 1]} : vector<1x32xf32> to vector<1x1xf32>
    %842 = vector.broadcast %841 : vector<1x1xf32> to vector<1x128xf32>
    %843 = arith.mulf %842, %305 : vector<1x128xf32>
    %844 = vector.extract_strided_slice %773 {offsets = [0, 22], sizes = [1, 1], strides = [1, 1]} : vector<1x32xf32> to vector<1x1xf32>
    %845 = vector.broadcast %844 : vector<1x1xf32> to vector<1x128xf32>
    %846 = arith.mulf %845, %306 : vector<1x128xf32>
    %847 = vector.extract_strided_slice %773 {offsets = [0, 23], sizes = [1, 1], strides = [1, 1]} : vector<1x32xf32> to vector<1x1xf32>
    %848 = vector.broadcast %847 : vector<1x1xf32> to vector<1x128xf32>
    %849 = arith.mulf %848, %307 : vector<1x128xf32>
    %850 = vector.extract_strided_slice %773 {offsets = [0, 24], sizes = [1, 1], strides = [1, 1]} : vector<1x32xf32> to vector<1x1xf32>
    %851 = vector.broadcast %850 : vector<1x1xf32> to vector<1x128xf32>
    %852 = arith.mulf %851, %308 : vector<1x128xf32>
    %853 = vector.extract_strided_slice %773 {offsets = [0, 25], sizes = [1, 1], strides = [1, 1]} : vector<1x32xf32> to vector<1x1xf32>
    %854 = vector.broadcast %853 : vector<1x1xf32> to vector<1x128xf32>
    %855 = arith.mulf %854, %309 : vector<1x128xf32>
    %856 = vector.extract_strided_slice %773 {offsets = [0, 26], sizes = [1, 1], strides = [1, 1]} : vector<1x32xf32> to vector<1x1xf32>
    %857 = vector.broadcast %856 : vector<1x1xf32> to vector<1x128xf32>
    %858 = arith.mulf %857, %310 : vector<1x128xf32>
    %859 = vector.extract_strided_slice %773 {offsets = [0, 27], sizes = [1, 1], strides = [1, 1]} : vector<1x32xf32> to vector<1x1xf32>
    %860 = vector.broadcast %859 : vector<1x1xf32> to vector<1x128xf32>
    %861 = arith.mulf %860, %311 : vector<1x128xf32>
    %862 = vector.extract_strided_slice %773 {offsets = [0, 28], sizes = [1, 1], strides = [1, 1]} : vector<1x32xf32> to vector<1x1xf32>
    %863 = vector.broadcast %862 : vector<1x1xf32> to vector<1x128xf32>
    %864 = arith.mulf %863, %312 : vector<1x128xf32>
    %865 = vector.extract_strided_slice %773 {offsets = [0, 29], sizes = [1, 1], strides = [1, 1]} : vector<1x32xf32> to vector<1x1xf32>
    %866 = vector.broadcast %865 : vector<1x1xf32> to vector<1x128xf32>
    %867 = arith.mulf %866, %313 : vector<1x128xf32>
    %868 = vector.extract_strided_slice %773 {offsets = [0, 30], sizes = [1, 1], strides = [1, 1]} : vector<1x32xf32> to vector<1x1xf32>
    %869 = vector.broadcast %868 : vector<1x1xf32> to vector<1x128xf32>
    %870 = arith.mulf %869, %314 : vector<1x128xf32>
    %871 = vector.extract_strided_slice %773 {offsets = [0, 31], sizes = [1, 1], strides = [1, 1]} : vector<1x32xf32> to vector<1x1xf32>
    %872 = vector.broadcast %871 : vector<1x1xf32> to vector<1x128xf32>
    %873 = arith.mulf %872, %315 : vector<1x128xf32>
    %874 = arith.addf %780, %783 : vector<1x128xf32>
    %875 = arith.addf %786, %789 : vector<1x128xf32>
    %876 = arith.addf %792, %795 : vector<1x128xf32>
    %877 = arith.addf %798, %801 : vector<1x128xf32>
    %878 = arith.addf %804, %807 : vector<1x128xf32>
    %879 = arith.addf %810, %813 : vector<1x128xf32>
    %880 = arith.addf %816, %819 : vector<1x128xf32>
    %881 = arith.addf %822, %825 : vector<1x128xf32>
    %882 = arith.addf %828, %831 : vector<1x128xf32>
    %883 = arith.addf %834, %837 : vector<1x128xf32>
    %884 = arith.addf %840, %843 : vector<1x128xf32>
    %885 = arith.addf %846, %849 : vector<1x128xf32>
    %886 = arith.addf %852, %855 : vector<1x128xf32>
    %887 = arith.addf %858, %861 : vector<1x128xf32>
    %888 = arith.addf %864, %867 : vector<1x128xf32>
    %889 = arith.addf %870, %873 : vector<1x128xf32>
    %890 = arith.addf %874, %875 : vector<1x128xf32>
    %891 = arith.addf %876, %877 : vector<1x128xf32>
    %892 = arith.addf %878, %879 : vector<1x128xf32>
    %893 = arith.addf %880, %881 : vector<1x128xf32>
    %894 = arith.addf %882, %883 : vector<1x128xf32>
    %895 = arith.addf %884, %885 : vector<1x128xf32>
    %896 = arith.addf %886, %887 : vector<1x128xf32>
    %897 = arith.addf %888, %889 : vector<1x128xf32>
    %898 = arith.addf %890, %891 : vector<1x128xf32>
    %899 = arith.addf %892, %893 : vector<1x128xf32>
    %900 = arith.addf %894, %895 : vector<1x128xf32>
    %901 = arith.addf %896, %897 : vector<1x128xf32>
    %902 = arith.addf %898, %899 : vector<1x128xf32>
    %903 = arith.addf %900, %901 : vector<1x128xf32>
    %904 = arith.addf %902, %903 : vector<1x128xf32>
    %905 = vector.extract_strided_slice %322 {offsets = [3, 0], sizes = [1, 128], strides = [1, 1]} : vector<8x128xf32> to vector<1x128xf32>
    %906 = arith.addf %905, %904 : vector<1x128xf32>
    %907 = arith.negf %906 : vector<1x128xf32>
    %908 = math.exp %907 : vector<1x128xf32>
    %cst_83 = arith.constant 1.000000e+00 : f32
    %909 = vector.broadcast %cst_83 : f32 to vector<1x128xf32>
    %910 = arith.addf %909, %908 : vector<1x128xf32>
    %911 = arith.divf %909, %910 : vector<1x128xf32>
    %912 = vector.extract_strided_slice %911 {offsets = [0, 0], sizes = [1, 32], strides = [1, 1]} : vector<1x128xf32> to vector<1x32xf32>
    %913 = vector.extract_strided_slice %911 {offsets = [0, 32], sizes = [1, 32], strides = [1, 1]} : vector<1x128xf32> to vector<1x32xf32>
    %914 = vector.extract_strided_slice %911 {offsets = [0, 64], sizes = [1, 32], strides = [1, 1]} : vector<1x128xf32> to vector<1x32xf32>
    %cst_84 = arith.constant 2.000000e+00 : f32
    %915 = vector.broadcast %cst_84 : f32 to vector<1x32xf32>
    %916 = arith.mulf %915, %914 : vector<1x32xf32>
    %cst_85 = arith.constant 1.000000e+00 : f32
    %917 = vector.broadcast %cst_85 : f32 to vector<1x32xf32>
    %918 = arith.subf %916, %917 : vector<1x32xf32>
    %919 = vector.extract_strided_slice %911 {offsets = [0, 96], sizes = [1, 32], strides = [1, 1]} : vector<1x128xf32> to vector<1x32xf32>
    %920 = arith.mulf %913, %771 : vector<1x32xf32>
    %921 = arith.mulf %912, %918 : vector<1x32xf32>
    %922 = arith.addf %920, %921 : vector<1x32xf32>
    %923 = math.tanh %922 : vector<1x32xf32>
    %924 = arith.mulf %919, %923 : vector<1x32xf32>
    %925 = vector.shape_cast %924 : vector<1x32xf32> to vector<32xf32>
    %c3 = arith.constant 3 : index
    %c0_86 = arith.constant 0 : index
    %926 = vector.load %arg5[%c3, %c0_86] : memref<8x32xf32, #tpu.memory_space<vmem>>, vector<1x32xf32>
    %927 = vector.shape_cast %926 : vector<1x32xf32> to vector<32xf32>
    %928 = vector.shape_cast %925 : vector<32xf32> to vector<1x32xf32>
    tpu.vector_store %arg5[%c3, %c0_86], %928 {strides = array<i32>} : memref<8x32xf32, #tpu.memory_space<vmem>>, vector<1x32xf32>,
    %929 = vector.extract_strided_slice %924 {offsets = [0, 0], sizes = [1, 1], strides = [1, 1]} : vector<1x32xf32> to vector<1x1xf32>
    %930 = vector.broadcast %929 : vector<1x1xf32> to vector<1x128xf32>
    %931 = arith.mulf %930, %284 : vector<1x128xf32>
    %932 = vector.extract_strided_slice %924 {offsets = [0, 1], sizes = [1, 1], strides = [1, 1]} : vector<1x32xf32> to vector<1x1xf32>
    %933 = vector.broadcast %932 : vector<1x1xf32> to vector<1x128xf32>
    %934 = arith.mulf %933, %285 : vector<1x128xf32>
    %935 = vector.extract_strided_slice %924 {offsets = [0, 2], sizes = [1, 1], strides = [1, 1]} : vector<1x32xf32> to vector<1x1xf32>
    %936 = vector.broadcast %935 : vector<1x1xf32> to vector<1x128xf32>
    %937 = arith.mulf %936, %286 : vector<1x128xf32>
    %938 = vector.extract_strided_slice %924 {offsets = [0, 3], sizes = [1, 1], strides = [1, 1]} : vector<1x32xf32> to vector<1x1xf32>
    %939 = vector.broadcast %938 : vector<1x1xf32> to vector<1x128xf32>
    %940 = arith.mulf %939, %287 : vector<1x128xf32>
    %941 = vector.extract_strided_slice %924 {offsets = [0, 4], sizes = [1, 1], strides = [1, 1]} : vector<1x32xf32> to vector<1x1xf32>
    %942 = vector.broadcast %941 : vector<1x1xf32> to vector<1x128xf32>
    %943 = arith.mulf %942, %288 : vector<1x128xf32>
    %944 = vector.extract_strided_slice %924 {offsets = [0, 5], sizes = [1, 1], strides = [1, 1]} : vector<1x32xf32> to vector<1x1xf32>
    %945 = vector.broadcast %944 : vector<1x1xf32> to vector<1x128xf32>
    %946 = arith.mulf %945, %289 : vector<1x128xf32>
    %947 = vector.extract_strided_slice %924 {offsets = [0, 6], sizes = [1, 1], strides = [1, 1]} : vector<1x32xf32> to vector<1x1xf32>
    %948 = vector.broadcast %947 : vector<1x1xf32> to vector<1x128xf32>
    %949 = arith.mulf %948, %290 : vector<1x128xf32>
    %950 = vector.extract_strided_slice %924 {offsets = [0, 7], sizes = [1, 1], strides = [1, 1]} : vector<1x32xf32> to vector<1x1xf32>
    %951 = vector.broadcast %950 : vector<1x1xf32> to vector<1x128xf32>
    %952 = arith.mulf %951, %291 : vector<1x128xf32>
    %953 = vector.extract_strided_slice %924 {offsets = [0, 8], sizes = [1, 1], strides = [1, 1]} : vector<1x32xf32> to vector<1x1xf32>
    %954 = vector.broadcast %953 : vector<1x1xf32> to vector<1x128xf32>
    %955 = arith.mulf %954, %292 : vector<1x128xf32>
    %956 = vector.extract_strided_slice %924 {offsets = [0, 9], sizes = [1, 1], strides = [1, 1]} : vector<1x32xf32> to vector<1x1xf32>
    %957 = vector.broadcast %956 : vector<1x1xf32> to vector<1x128xf32>
    %958 = arith.mulf %957, %293 : vector<1x128xf32>
    %959 = vector.extract_strided_slice %924 {offsets = [0, 10], sizes = [1, 1], strides = [1, 1]} : vector<1x32xf32> to vector<1x1xf32>
    %960 = vector.broadcast %959 : vector<1x1xf32> to vector<1x128xf32>
    %961 = arith.mulf %960, %294 : vector<1x128xf32>
    %962 = vector.extract_strided_slice %924 {offsets = [0, 11], sizes = [1, 1], strides = [1, 1]} : vector<1x32xf32> to vector<1x1xf32>
    %963 = vector.broadcast %962 : vector<1x1xf32> to vector<1x128xf32>
    %964 = arith.mulf %963, %295 : vector<1x128xf32>
    %965 = vector.extract_strided_slice %924 {offsets = [0, 12], sizes = [1, 1], strides = [1, 1]} : vector<1x32xf32> to vector<1x1xf32>
    %966 = vector.broadcast %965 : vector<1x1xf32> to vector<1x128xf32>
    %967 = arith.mulf %966, %296 : vector<1x128xf32>
    %968 = vector.extract_strided_slice %924 {offsets = [0, 13], sizes = [1, 1], strides = [1, 1]} : vector<1x32xf32> to vector<1x1xf32>
    %969 = vector.broadcast %968 : vector<1x1xf32> to vector<1x128xf32>
    %970 = arith.mulf %969, %297 : vector<1x128xf32>
    %971 = vector.extract_strided_slice %924 {offsets = [0, 14], sizes = [1, 1], strides = [1, 1]} : vector<1x32xf32> to vector<1x1xf32>
    %972 = vector.broadcast %971 : vector<1x1xf32> to vector<1x128xf32>
    %973 = arith.mulf %972, %298 : vector<1x128xf32>
    %974 = vector.extract_strided_slice %924 {offsets = [0, 15], sizes = [1, 1], strides = [1, 1]} : vector<1x32xf32> to vector<1x1xf32>
    %975 = vector.broadcast %974 : vector<1x1xf32> to vector<1x128xf32>
    %976 = arith.mulf %975, %299 : vector<1x128xf32>
    %977 = vector.extract_strided_slice %924 {offsets = [0, 16], sizes = [1, 1], strides = [1, 1]} : vector<1x32xf32> to vector<1x1xf32>
    %978 = vector.broadcast %977 : vector<1x1xf32> to vector<1x128xf32>
    %979 = arith.mulf %978, %300 : vector<1x128xf32>
    %980 = vector.extract_strided_slice %924 {offsets = [0, 17], sizes = [1, 1], strides = [1, 1]} : vector<1x32xf32> to vector<1x1xf32>
    %981 = vector.broadcast %980 : vector<1x1xf32> to vector<1x128xf32>
    %982 = arith.mulf %981, %301 : vector<1x128xf32>
    %983 = vector.extract_strided_slice %924 {offsets = [0, 18], sizes = [1, 1], strides = [1, 1]} : vector<1x32xf32> to vector<1x1xf32>
    %984 = vector.broadcast %983 : vector<1x1xf32> to vector<1x128xf32>
    %985 = arith.mulf %984, %302 : vector<1x128xf32>
    %986 = vector.extract_strided_slice %924 {offsets = [0, 19], sizes = [1, 1], strides = [1, 1]} : vector<1x32xf32> to vector<1x1xf32>
    %987 = vector.broadcast %986 : vector<1x1xf32> to vector<1x128xf32>
    %988 = arith.mulf %987, %303 : vector<1x128xf32>
    %989 = vector.extract_strided_slice %924 {offsets = [0, 20], sizes = [1, 1], strides = [1, 1]} : vector<1x32xf32> to vector<1x1xf32>
    %990 = vector.broadcast %989 : vector<1x1xf32> to vector<1x128xf32>
    %991 = arith.mulf %990, %304 : vector<1x128xf32>
    %992 = vector.extract_strided_slice %924 {offsets = [0, 21], sizes = [1, 1], strides = [1, 1]} : vector<1x32xf32> to vector<1x1xf32>
    %993 = vector.broadcast %992 : vector<1x1xf32> to vector<1x128xf32>
    %994 = arith.mulf %993, %305 : vector<1x128xf32>
    %995 = vector.extract_strided_slice %924 {offsets = [0, 22], sizes = [1, 1], strides = [1, 1]} : vector<1x32xf32> to vector<1x1xf32>
    %996 = vector.broadcast %995 : vector<1x1xf32> to vector<1x128xf32>
    %997 = arith.mulf %996, %306 : vector<1x128xf32>
    %998 = vector.extract_strided_slice %924 {offsets = [0, 23], sizes = [1, 1], strides = [1, 1]} : vector<1x32xf32> to vector<1x1xf32>
    %999 = vector.broadcast %998 : vector<1x1xf32> to vector<1x128xf32>
    %1000 = arith.mulf %999, %307 : vector<1x128xf32>
    %1001 = vector.extract_strided_slice %924 {offsets = [0, 24], sizes = [1, 1], strides = [1, 1]} : vector<1x32xf32> to vector<1x1xf32>
    %1002 = vector.broadcast %1001 : vector<1x1xf32> to vector<1x128xf32>
    %1003 = arith.mulf %1002, %308 : vector<1x128xf32>
    %1004 = vector.extract_strided_slice %924 {offsets = [0, 25], sizes = [1, 1], strides = [1, 1]} : vector<1x32xf32> to vector<1x1xf32>
    %1005 = vector.broadcast %1004 : vector<1x1xf32> to vector<1x128xf32>
    %1006 = arith.mulf %1005, %309 : vector<1x128xf32>
    %1007 = vector.extract_strided_slice %924 {offsets = [0, 26], sizes = [1, 1], strides = [1, 1]} : vector<1x32xf32> to vector<1x1xf32>
    %1008 = vector.broadcast %1007 : vector<1x1xf32> to vector<1x128xf32>
    %1009 = arith.mulf %1008, %310 : vector<1x128xf32>
    %1010 = vector.extract_strided_slice %924 {offsets = [0, 27], sizes = [1, 1], strides = [1, 1]} : vector<1x32xf32> to vector<1x1xf32>
    %1011 = vector.broadcast %1010 : vector<1x1xf32> to vector<1x128xf32>
    %1012 = arith.mulf %1011, %311 : vector<1x128xf32>
    %1013 = vector.extract_strided_slice %924 {offsets = [0, 28], sizes = [1, 1], strides = [1, 1]} : vector<1x32xf32> to vector<1x1xf32>
    %1014 = vector.broadcast %1013 : vector<1x1xf32> to vector<1x128xf32>
    %1015 = arith.mulf %1014, %312 : vector<1x128xf32>
    %1016 = vector.extract_strided_slice %924 {offsets = [0, 29], sizes = [1, 1], strides = [1, 1]} : vector<1x32xf32> to vector<1x1xf32>
    %1017 = vector.broadcast %1016 : vector<1x1xf32> to vector<1x128xf32>
    %1018 = arith.mulf %1017, %313 : vector<1x128xf32>
    %1019 = vector.extract_strided_slice %924 {offsets = [0, 30], sizes = [1, 1], strides = [1, 1]} : vector<1x32xf32> to vector<1x1xf32>
    %1020 = vector.broadcast %1019 : vector<1x1xf32> to vector<1x128xf32>
    %1021 = arith.mulf %1020, %314 : vector<1x128xf32>
    %1022 = vector.extract_strided_slice %924 {offsets = [0, 31], sizes = [1, 1], strides = [1, 1]} : vector<1x32xf32> to vector<1x1xf32>
    %1023 = vector.broadcast %1022 : vector<1x1xf32> to vector<1x128xf32>
    %1024 = arith.mulf %1023, %315 : vector<1x128xf32>
    %1025 = arith.addf %931, %934 : vector<1x128xf32>
    %1026 = arith.addf %937, %940 : vector<1x128xf32>
    %1027 = arith.addf %943, %946 : vector<1x128xf32>
    %1028 = arith.addf %949, %952 : vector<1x128xf32>
    %1029 = arith.addf %955, %958 : vector<1x128xf32>
    %1030 = arith.addf %961, %964 : vector<1x128xf32>
    %1031 = arith.addf %967, %970 : vector<1x128xf32>
    %1032 = arith.addf %973, %976 : vector<1x128xf32>
    %1033 = arith.addf %979, %982 : vector<1x128xf32>
    %1034 = arith.addf %985, %988 : vector<1x128xf32>
    %1035 = arith.addf %991, %994 : vector<1x128xf32>
    %1036 = arith.addf %997, %1000 : vector<1x128xf32>
    %1037 = arith.addf %1003, %1006 : vector<1x128xf32>
    %1038 = arith.addf %1009, %1012 : vector<1x128xf32>
    %1039 = arith.addf %1015, %1018 : vector<1x128xf32>
    %1040 = arith.addf %1021, %1024 : vector<1x128xf32>
    %1041 = arith.addf %1025, %1026 : vector<1x128xf32>
    %1042 = arith.addf %1027, %1028 : vector<1x128xf32>
    %1043 = arith.addf %1029, %1030 : vector<1x128xf32>
    %1044 = arith.addf %1031, %1032 : vector<1x128xf32>
    %1045 = arith.addf %1033, %1034 : vector<1x128xf32>
    %1046 = arith.addf %1035, %1036 : vector<1x128xf32>
    %1047 = arith.addf %1037, %1038 : vector<1x128xf32>
    %1048 = arith.addf %1039, %1040 : vector<1x128xf32>
    %1049 = arith.addf %1041, %1042 : vector<1x128xf32>
    %1050 = arith.addf %1043, %1044 : vector<1x128xf32>
    %1051 = arith.addf %1045, %1046 : vector<1x128xf32>
    %1052 = arith.addf %1047, %1048 : vector<1x128xf32>
    %1053 = arith.addf %1049, %1050 : vector<1x128xf32>
    %1054 = arith.addf %1051, %1052 : vector<1x128xf32>
    %1055 = arith.addf %1053, %1054 : vector<1x128xf32>
    %1056 = vector.extract_strided_slice %322 {offsets = [4, 0], sizes = [1, 128], strides = [1, 1]} : vector<8x128xf32> to vector<1x128xf32>
    %1057 = arith.addf %1056, %1055 : vector<1x128xf32>
    %1058 = arith.negf %1057 : vector<1x128xf32>
    %1059 = math.exp %1058 : vector<1x128xf32>
    %cst_87 = arith.constant 1.000000e+00 : f32
    %1060 = vector.broadcast %cst_87 : f32 to vector<1x128xf32>
    %1061 = arith.addf %1060, %1059 : vector<1x128xf32>
    %1062 = arith.divf %1060, %1061 : vector<1x128xf32>
    %1063 = vector.extract_strided_slice %1062 {offsets = [0, 0], sizes = [1, 32], strides = [1, 1]} : vector<1x128xf32> to vector<1x32xf32>
    %1064 = vector.extract_strided_slice %1062 {offsets = [0, 32], sizes = [1, 32], strides = [1, 1]} : vector<1x128xf32> to vector<1x32xf32>
    %1065 = vector.extract_strided_slice %1062 {offsets = [0, 64], sizes = [1, 32], strides = [1, 1]} : vector<1x128xf32> to vector<1x32xf32>
    %cst_88 = arith.constant 2.000000e+00 : f32
    %1066 = vector.broadcast %cst_88 : f32 to vector<1x32xf32>
    %1067 = arith.mulf %1066, %1065 : vector<1x32xf32>
    %cst_89 = arith.constant 1.000000e+00 : f32
    %1068 = vector.broadcast %cst_89 : f32 to vector<1x32xf32>
    %1069 = arith.subf %1067, %1068 : vector<1x32xf32>
    %1070 = vector.extract_strided_slice %1062 {offsets = [0, 96], sizes = [1, 32], strides = [1, 1]} : vector<1x128xf32> to vector<1x32xf32>
    %1071 = arith.mulf %1064, %922 : vector<1x32xf32>
    %1072 = arith.mulf %1063, %1069 : vector<1x32xf32>
    %1073 = arith.addf %1071, %1072 : vector<1x32xf32>
    %1074 = math.tanh %1073 : vector<1x32xf32>
    %1075 = arith.mulf %1070, %1074 : vector<1x32xf32>
    %1076 = vector.shape_cast %1075 : vector<1x32xf32> to vector<32xf32>
    %c4 = arith.constant 4 : index
    %c0_90 = arith.constant 0 : index
    %1077 = vector.load %arg5[%c4, %c0_90] : memref<8x32xf32, #tpu.memory_space<vmem>>, vector<1x32xf32>
    %1078 = vector.shape_cast %1077 : vector<1x32xf32> to vector<32xf32>
    %1079 = vector.shape_cast %1076 : vector<32xf32> to vector<1x32xf32>
    tpu.vector_store %arg5[%c4, %c0_90], %1079 {strides = array<i32>} : memref<8x32xf32, #tpu.memory_space<vmem>>, vector<1x32xf32>,
    %1080 = vector.extract_strided_slice %1075 {offsets = [0, 0], sizes = [1, 1], strides = [1, 1]} : vector<1x32xf32> to vector<1x1xf32>
    %1081 = vector.broadcast %1080 : vector<1x1xf32> to vector<1x128xf32>
    %1082 = arith.mulf %1081, %284 : vector<1x128xf32>
    %1083 = vector.extract_strided_slice %1075 {offsets = [0, 1], sizes = [1, 1], strides = [1, 1]} : vector<1x32xf32> to vector<1x1xf32>
    %1084 = vector.broadcast %1083 : vector<1x1xf32> to vector<1x128xf32>
    %1085 = arith.mulf %1084, %285 : vector<1x128xf32>
    %1086 = vector.extract_strided_slice %1075 {offsets = [0, 2], sizes = [1, 1], strides = [1, 1]} : vector<1x32xf32> to vector<1x1xf32>
    %1087 = vector.broadcast %1086 : vector<1x1xf32> to vector<1x128xf32>
    %1088 = arith.mulf %1087, %286 : vector<1x128xf32>
    %1089 = vector.extract_strided_slice %1075 {offsets = [0, 3], sizes = [1, 1], strides = [1, 1]} : vector<1x32xf32> to vector<1x1xf32>
    %1090 = vector.broadcast %1089 : vector<1x1xf32> to vector<1x128xf32>
    %1091 = arith.mulf %1090, %287 : vector<1x128xf32>
    %1092 = vector.extract_strided_slice %1075 {offsets = [0, 4], sizes = [1, 1], strides = [1, 1]} : vector<1x32xf32> to vector<1x1xf32>
    %1093 = vector.broadcast %1092 : vector<1x1xf32> to vector<1x128xf32>
    %1094 = arith.mulf %1093, %288 : vector<1x128xf32>
    %1095 = vector.extract_strided_slice %1075 {offsets = [0, 5], sizes = [1, 1], strides = [1, 1]} : vector<1x32xf32> to vector<1x1xf32>
    %1096 = vector.broadcast %1095 : vector<1x1xf32> to vector<1x128xf32>
    %1097 = arith.mulf %1096, %289 : vector<1x128xf32>
    %1098 = vector.extract_strided_slice %1075 {offsets = [0, 6], sizes = [1, 1], strides = [1, 1]} : vector<1x32xf32> to vector<1x1xf32>
    %1099 = vector.broadcast %1098 : vector<1x1xf32> to vector<1x128xf32>
    %1100 = arith.mulf %1099, %290 : vector<1x128xf32>
    %1101 = vector.extract_strided_slice %1075 {offsets = [0, 7], sizes = [1, 1], strides = [1, 1]} : vector<1x32xf32> to vector<1x1xf32>
    %1102 = vector.broadcast %1101 : vector<1x1xf32> to vector<1x128xf32>
    %1103 = arith.mulf %1102, %291 : vector<1x128xf32>
    %1104 = vector.extract_strided_slice %1075 {offsets = [0, 8], sizes = [1, 1], strides = [1, 1]} : vector<1x32xf32> to vector<1x1xf32>
    %1105 = vector.broadcast %1104 : vector<1x1xf32> to vector<1x128xf32>
    %1106 = arith.mulf %1105, %292 : vector<1x128xf32>
    %1107 = vector.extract_strided_slice %1075 {offsets = [0, 9], sizes = [1, 1], strides = [1, 1]} : vector<1x32xf32> to vector<1x1xf32>
    %1108 = vector.broadcast %1107 : vector<1x1xf32> to vector<1x128xf32>
    %1109 = arith.mulf %1108, %293 : vector<1x128xf32>
    %1110 = vector.extract_strided_slice %1075 {offsets = [0, 10], sizes = [1, 1], strides = [1, 1]} : vector<1x32xf32> to vector<1x1xf32>
    %1111 = vector.broadcast %1110 : vector<1x1xf32> to vector<1x128xf32>
    %1112 = arith.mulf %1111, %294 : vector<1x128xf32>
    %1113 = vector.extract_strided_slice %1075 {offsets = [0, 11], sizes = [1, 1], strides = [1, 1]} : vector<1x32xf32> to vector<1x1xf32>
    %1114 = vector.broadcast %1113 : vector<1x1xf32> to vector<1x128xf32>
    %1115 = arith.mulf %1114, %295 : vector<1x128xf32>
    %1116 = vector.extract_strided_slice %1075 {offsets = [0, 12], sizes = [1, 1], strides = [1, 1]} : vector<1x32xf32> to vector<1x1xf32>
    %1117 = vector.broadcast %1116 : vector<1x1xf32> to vector<1x128xf32>
    %1118 = arith.mulf %1117, %296 : vector<1x128xf32>
    %1119 = vector.extract_strided_slice %1075 {offsets = [0, 13], sizes = [1, 1], strides = [1, 1]} : vector<1x32xf32> to vector<1x1xf32>
    %1120 = vector.broadcast %1119 : vector<1x1xf32> to vector<1x128xf32>
    %1121 = arith.mulf %1120, %297 : vector<1x128xf32>
    %1122 = vector.extract_strided_slice %1075 {offsets = [0, 14], sizes = [1, 1], strides = [1, 1]} : vector<1x32xf32> to vector<1x1xf32>
    %1123 = vector.broadcast %1122 : vector<1x1xf32> to vector<1x128xf32>
    %1124 = arith.mulf %1123, %298 : vector<1x128xf32>
    %1125 = vector.extract_strided_slice %1075 {offsets = [0, 15], sizes = [1, 1], strides = [1, 1]} : vector<1x32xf32> to vector<1x1xf32>
    %1126 = vector.broadcast %1125 : vector<1x1xf32> to vector<1x128xf32>
    %1127 = arith.mulf %1126, %299 : vector<1x128xf32>
    %1128 = vector.extract_strided_slice %1075 {offsets = [0, 16], sizes = [1, 1], strides = [1, 1]} : vector<1x32xf32> to vector<1x1xf32>
    %1129 = vector.broadcast %1128 : vector<1x1xf32> to vector<1x128xf32>
    %1130 = arith.mulf %1129, %300 : vector<1x128xf32>
    %1131 = vector.extract_strided_slice %1075 {offsets = [0, 17], sizes = [1, 1], strides = [1, 1]} : vector<1x32xf32> to vector<1x1xf32>
    %1132 = vector.broadcast %1131 : vector<1x1xf32> to vector<1x128xf32>
    %1133 = arith.mulf %1132, %301 : vector<1x128xf32>
    %1134 = vector.extract_strided_slice %1075 {offsets = [0, 18], sizes = [1, 1], strides = [1, 1]} : vector<1x32xf32> to vector<1x1xf32>
    %1135 = vector.broadcast %1134 : vector<1x1xf32> to vector<1x128xf32>
    %1136 = arith.mulf %1135, %302 : vector<1x128xf32>
    %1137 = vector.extract_strided_slice %1075 {offsets = [0, 19], sizes = [1, 1], strides = [1, 1]} : vector<1x32xf32> to vector<1x1xf32>
    %1138 = vector.broadcast %1137 : vector<1x1xf32> to vector<1x128xf32>
    %1139 = arith.mulf %1138, %303 : vector<1x128xf32>
    %1140 = vector.extract_strided_slice %1075 {offsets = [0, 20], sizes = [1, 1], strides = [1, 1]} : vector<1x32xf32> to vector<1x1xf32>
    %1141 = vector.broadcast %1140 : vector<1x1xf32> to vector<1x128xf32>
    %1142 = arith.mulf %1141, %304 : vector<1x128xf32>
    %1143 = vector.extract_strided_slice %1075 {offsets = [0, 21], sizes = [1, 1], strides = [1, 1]} : vector<1x32xf32> to vector<1x1xf32>
    %1144 = vector.broadcast %1143 : vector<1x1xf32> to vector<1x128xf32>
    %1145 = arith.mulf %1144, %305 : vector<1x128xf32>
    %1146 = vector.extract_strided_slice %1075 {offsets = [0, 22], sizes = [1, 1], strides = [1, 1]} : vector<1x32xf32> to vector<1x1xf32>
    %1147 = vector.broadcast %1146 : vector<1x1xf32> to vector<1x128xf32>
    %1148 = arith.mulf %1147, %306 : vector<1x128xf32>
    %1149 = vector.extract_strided_slice %1075 {offsets = [0, 23], sizes = [1, 1], strides = [1, 1]} : vector<1x32xf32> to vector<1x1xf32>
    %1150 = vector.broadcast %1149 : vector<1x1xf32> to vector<1x128xf32>
    %1151 = arith.mulf %1150, %307 : vector<1x128xf32>
    %1152 = vector.extract_strided_slice %1075 {offsets = [0, 24], sizes = [1, 1], strides = [1, 1]} : vector<1x32xf32> to vector<1x1xf32>
    %1153 = vector.broadcast %1152 : vector<1x1xf32> to vector<1x128xf32>
    %1154 = arith.mulf %1153, %308 : vector<1x128xf32>
    %1155 = vector.extract_strided_slice %1075 {offsets = [0, 25], sizes = [1, 1], strides = [1, 1]} : vector<1x32xf32> to vector<1x1xf32>
    %1156 = vector.broadcast %1155 : vector<1x1xf32> to vector<1x128xf32>
    %1157 = arith.mulf %1156, %309 : vector<1x128xf32>
    %1158 = vector.extract_strided_slice %1075 {offsets = [0, 26], sizes = [1, 1], strides = [1, 1]} : vector<1x32xf32> to vector<1x1xf32>
    %1159 = vector.broadcast %1158 : vector<1x1xf32> to vector<1x128xf32>
    %1160 = arith.mulf %1159, %310 : vector<1x128xf32>
    %1161 = vector.extract_strided_slice %1075 {offsets = [0, 27], sizes = [1, 1], strides = [1, 1]} : vector<1x32xf32> to vector<1x1xf32>
    %1162 = vector.broadcast %1161 : vector<1x1xf32> to vector<1x128xf32>
    %1163 = arith.mulf %1162, %311 : vector<1x128xf32>
    %1164 = vector.extract_strided_slice %1075 {offsets = [0, 28], sizes = [1, 1], strides = [1, 1]} : vector<1x32xf32> to vector<1x1xf32>
    %1165 = vector.broadcast %1164 : vector<1x1xf32> to vector<1x128xf32>
    %1166 = arith.mulf %1165, %312 : vector<1x128xf32>
    %1167 = vector.extract_strided_slice %1075 {offsets = [0, 29], sizes = [1, 1], strides = [1, 1]} : vector<1x32xf32> to vector<1x1xf32>
    %1168 = vector.broadcast %1167 : vector<1x1xf32> to vector<1x128xf32>
    %1169 = arith.mulf %1168, %313 : vector<1x128xf32>
    %1170 = vector.extract_strided_slice %1075 {offsets = [0, 30], sizes = [1, 1], strides = [1, 1]} : vector<1x32xf32> to vector<1x1xf32>
    %1171 = vector.broadcast %1170 : vector<1x1xf32> to vector<1x128xf32>
    %1172 = arith.mulf %1171, %314 : vector<1x128xf32>
    %1173 = vector.extract_strided_slice %1075 {offsets = [0, 31], sizes = [1, 1], strides = [1, 1]} : vector<1x32xf32> to vector<1x1xf32>
    %1174 = vector.broadcast %1173 : vector<1x1xf32> to vector<1x128xf32>
    %1175 = arith.mulf %1174, %315 : vector<1x128xf32>
    %1176 = arith.addf %1082, %1085 : vector<1x128xf32>
    %1177 = arith.addf %1088, %1091 : vector<1x128xf32>
    %1178 = arith.addf %1094, %1097 : vector<1x128xf32>
    %1179 = arith.addf %1100, %1103 : vector<1x128xf32>
    %1180 = arith.addf %1106, %1109 : vector<1x128xf32>
    %1181 = arith.addf %1112, %1115 : vector<1x128xf32>
    %1182 = arith.addf %1118, %1121 : vector<1x128xf32>
    %1183 = arith.addf %1124, %1127 : vector<1x128xf32>
    %1184 = arith.addf %1130, %1133 : vector<1x128xf32>
    %1185 = arith.addf %1136, %1139 : vector<1x128xf32>
    %1186 = arith.addf %1142, %1145 : vector<1x128xf32>
    %1187 = arith.addf %1148, %1151 : vector<1x128xf32>
    %1188 = arith.addf %1154, %1157 : vector<1x128xf32>
    %1189 = arith.addf %1160, %1163 : vector<1x128xf32>
    %1190 = arith.addf %1166, %1169 : vector<1x128xf32>
    %1191 = arith.addf %1172, %1175 : vector<1x128xf32>
    %1192 = arith.addf %1176, %1177 : vector<1x128xf32>
    %1193 = arith.addf %1178, %1179 : vector<1x128xf32>
    %1194 = arith.addf %1180, %1181 : vector<1x128xf32>
    %1195 = arith.addf %1182, %1183 : vector<1x128xf32>
    %1196 = arith.addf %1184, %1185 : vector<1x128xf32>
    %1197 = arith.addf %1186, %1187 : vector<1x128xf32>
    %1198 = arith.addf %1188, %1189 : vector<1x128xf32>
    %1199 = arith.addf %1190, %1191 : vector<1x128xf32>
    %1200 = arith.addf %1192, %1193 : vector<1x128xf32>
    %1201 = arith.addf %1194, %1195 : vector<1x128xf32>
    %1202 = arith.addf %1196, %1197 : vector<1x128xf32>
    %1203 = arith.addf %1198, %1199 : vector<1x128xf32>
    %1204 = arith.addf %1200, %1201 : vector<1x128xf32>
    %1205 = arith.addf %1202, %1203 : vector<1x128xf32>
    %1206 = arith.addf %1204, %1205 : vector<1x128xf32>
    %1207 = vector.extract_strided_slice %322 {offsets = [5, 0], sizes = [1, 128], strides = [1, 1]} : vector<8x128xf32> to vector<1x128xf32>
    %1208 = arith.addf %1207, %1206 : vector<1x128xf32>
    %1209 = arith.negf %1208 : vector<1x128xf32>
    %1210 = math.exp %1209 : vector<1x128xf32>
    %cst_91 = arith.constant 1.000000e+00 : f32
    %1211 = vector.broadcast %cst_91 : f32 to vector<1x128xf32>
    %1212 = arith.addf %1211, %1210 : vector<1x128xf32>
    %1213 = arith.divf %1211, %1212 : vector<1x128xf32>
    %1214 = vector.extract_strided_slice %1213 {offsets = [0, 0], sizes = [1, 32], strides = [1, 1]} : vector<1x128xf32> to vector<1x32xf32>
    %1215 = vector.extract_strided_slice %1213 {offsets = [0, 32], sizes = [1, 32], strides = [1, 1]} : vector<1x128xf32> to vector<1x32xf32>
    %1216 = vector.extract_strided_slice %1213 {offsets = [0, 64], sizes = [1, 32], strides = [1, 1]} : vector<1x128xf32> to vector<1x32xf32>
    %cst_92 = arith.constant 2.000000e+00 : f32
    %1217 = vector.broadcast %cst_92 : f32 to vector<1x32xf32>
    %1218 = arith.mulf %1217, %1216 : vector<1x32xf32>
    %cst_93 = arith.constant 1.000000e+00 : f32
    %1219 = vector.broadcast %cst_93 : f32 to vector<1x32xf32>
    %1220 = arith.subf %1218, %1219 : vector<1x32xf32>
    %1221 = vector.extract_strided_slice %1213 {offsets = [0, 96], sizes = [1, 32], strides = [1, 1]} : vector<1x128xf32> to vector<1x32xf32>
    %1222 = arith.mulf %1215, %1073 : vector<1x32xf32>
    %1223 = arith.mulf %1214, %1220 : vector<1x32xf32>
    %1224 = arith.addf %1222, %1223 : vector<1x32xf32>
    %1225 = math.tanh %1224 : vector<1x32xf32>
    %1226 = arith.mulf %1221, %1225 : vector<1x32xf32>
    %1227 = vector.shape_cast %1226 : vector<1x32xf32> to vector<32xf32>
    %c5 = arith.constant 5 : index
    %c0_94 = arith.constant 0 : index
    %1228 = vector.load %arg5[%c5, %c0_94] : memref<8x32xf32, #tpu.memory_space<vmem>>, vector<1x32xf32>
    %1229 = vector.shape_cast %1228 : vector<1x32xf32> to vector<32xf32>
    %1230 = vector.shape_cast %1227 : vector<32xf32> to vector<1x32xf32>
    tpu.vector_store %arg5[%c5, %c0_94], %1230 {strides = array<i32>} : memref<8x32xf32, #tpu.memory_space<vmem>>, vector<1x32xf32>,
    %1231 = vector.extract_strided_slice %1226 {offsets = [0, 0], sizes = [1, 1], strides = [1, 1]} : vector<1x32xf32> to vector<1x1xf32>
    %1232 = vector.broadcast %1231 : vector<1x1xf32> to vector<1x128xf32>
    %1233 = arith.mulf %1232, %284 : vector<1x128xf32>
    %1234 = vector.extract_strided_slice %1226 {offsets = [0, 1], sizes = [1, 1], strides = [1, 1]} : vector<1x32xf32> to vector<1x1xf32>
    %1235 = vector.broadcast %1234 : vector<1x1xf32> to vector<1x128xf32>
    %1236 = arith.mulf %1235, %285 : vector<1x128xf32>
    %1237 = vector.extract_strided_slice %1226 {offsets = [0, 2], sizes = [1, 1], strides = [1, 1]} : vector<1x32xf32> to vector<1x1xf32>
    %1238 = vector.broadcast %1237 : vector<1x1xf32> to vector<1x128xf32>
    %1239 = arith.mulf %1238, %286 : vector<1x128xf32>
    %1240 = vector.extract_strided_slice %1226 {offsets = [0, 3], sizes = [1, 1], strides = [1, 1]} : vector<1x32xf32> to vector<1x1xf32>
    %1241 = vector.broadcast %1240 : vector<1x1xf32> to vector<1x128xf32>
    %1242 = arith.mulf %1241, %287 : vector<1x128xf32>
    %1243 = vector.extract_strided_slice %1226 {offsets = [0, 4], sizes = [1, 1], strides = [1, 1]} : vector<1x32xf32> to vector<1x1xf32>
    %1244 = vector.broadcast %1243 : vector<1x1xf32> to vector<1x128xf32>
    %1245 = arith.mulf %1244, %288 : vector<1x128xf32>
    %1246 = vector.extract_strided_slice %1226 {offsets = [0, 5], sizes = [1, 1], strides = [1, 1]} : vector<1x32xf32> to vector<1x1xf32>
    %1247 = vector.broadcast %1246 : vector<1x1xf32> to vector<1x128xf32>
    %1248 = arith.mulf %1247, %289 : vector<1x128xf32>
    %1249 = vector.extract_strided_slice %1226 {offsets = [0, 6], sizes = [1, 1], strides = [1, 1]} : vector<1x32xf32> to vector<1x1xf32>
    %1250 = vector.broadcast %1249 : vector<1x1xf32> to vector<1x128xf32>
    %1251 = arith.mulf %1250, %290 : vector<1x128xf32>
    %1252 = vector.extract_strided_slice %1226 {offsets = [0, 7], sizes = [1, 1], strides = [1, 1]} : vector<1x32xf32> to vector<1x1xf32>
    %1253 = vector.broadcast %1252 : vector<1x1xf32> to vector<1x128xf32>
    %1254 = arith.mulf %1253, %291 : vector<1x128xf32>
    %1255 = vector.extract_strided_slice %1226 {offsets = [0, 8], sizes = [1, 1], strides = [1, 1]} : vector<1x32xf32> to vector<1x1xf32>
    %1256 = vector.broadcast %1255 : vector<1x1xf32> to vector<1x128xf32>
    %1257 = arith.mulf %1256, %292 : vector<1x128xf32>
    %1258 = vector.extract_strided_slice %1226 {offsets = [0, 9], sizes = [1, 1], strides = [1, 1]} : vector<1x32xf32> to vector<1x1xf32>
    %1259 = vector.broadcast %1258 : vector<1x1xf32> to vector<1x128xf32>
    %1260 = arith.mulf %1259, %293 : vector<1x128xf32>
    %1261 = vector.extract_strided_slice %1226 {offsets = [0, 10], sizes = [1, 1], strides = [1, 1]} : vector<1x32xf32> to vector<1x1xf32>
    %1262 = vector.broadcast %1261 : vector<1x1xf32> to vector<1x128xf32>
    %1263 = arith.mulf %1262, %294 : vector<1x128xf32>
    %1264 = vector.extract_strided_slice %1226 {offsets = [0, 11], sizes = [1, 1], strides = [1, 1]} : vector<1x32xf32> to vector<1x1xf32>
    %1265 = vector.broadcast %1264 : vector<1x1xf32> to vector<1x128xf32>
    %1266 = arith.mulf %1265, %295 : vector<1x128xf32>
    %1267 = vector.extract_strided_slice %1226 {offsets = [0, 12], sizes = [1, 1], strides = [1, 1]} : vector<1x32xf32> to vector<1x1xf32>
    %1268 = vector.broadcast %1267 : vector<1x1xf32> to vector<1x128xf32>
    %1269 = arith.mulf %1268, %296 : vector<1x128xf32>
    %1270 = vector.extract_strided_slice %1226 {offsets = [0, 13], sizes = [1, 1], strides = [1, 1]} : vector<1x32xf32> to vector<1x1xf32>
    %1271 = vector.broadcast %1270 : vector<1x1xf32> to vector<1x128xf32>
    %1272 = arith.mulf %1271, %297 : vector<1x128xf32>
    %1273 = vector.extract_strided_slice %1226 {offsets = [0, 14], sizes = [1, 1], strides = [1, 1]} : vector<1x32xf32> to vector<1x1xf32>
    %1274 = vector.broadcast %1273 : vector<1x1xf32> to vector<1x128xf32>
    %1275 = arith.mulf %1274, %298 : vector<1x128xf32>
    %1276 = vector.extract_strided_slice %1226 {offsets = [0, 15], sizes = [1, 1], strides = [1, 1]} : vector<1x32xf32> to vector<1x1xf32>
    %1277 = vector.broadcast %1276 : vector<1x1xf32> to vector<1x128xf32>
    %1278 = arith.mulf %1277, %299 : vector<1x128xf32>
    %1279 = vector.extract_strided_slice %1226 {offsets = [0, 16], sizes = [1, 1], strides = [1, 1]} : vector<1x32xf32> to vector<1x1xf32>
    %1280 = vector.broadcast %1279 : vector<1x1xf32> to vector<1x128xf32>
    %1281 = arith.mulf %1280, %300 : vector<1x128xf32>
    %1282 = vector.extract_strided_slice %1226 {offsets = [0, 17], sizes = [1, 1], strides = [1, 1]} : vector<1x32xf32> to vector<1x1xf32>
    %1283 = vector.broadcast %1282 : vector<1x1xf32> to vector<1x128xf32>
    %1284 = arith.mulf %1283, %301 : vector<1x128xf32>
    %1285 = vector.extract_strided_slice %1226 {offsets = [0, 18], sizes = [1, 1], strides = [1, 1]} : vector<1x32xf32> to vector<1x1xf32>
    %1286 = vector.broadcast %1285 : vector<1x1xf32> to vector<1x128xf32>
    %1287 = arith.mulf %1286, %302 : vector<1x128xf32>
    %1288 = vector.extract_strided_slice %1226 {offsets = [0, 19], sizes = [1, 1], strides = [1, 1]} : vector<1x32xf32> to vector<1x1xf32>
    %1289 = vector.broadcast %1288 : vector<1x1xf32> to vector<1x128xf32>
    %1290 = arith.mulf %1289, %303 : vector<1x128xf32>
    %1291 = vector.extract_strided_slice %1226 {offsets = [0, 20], sizes = [1, 1], strides = [1, 1]} : vector<1x32xf32> to vector<1x1xf32>
    %1292 = vector.broadcast %1291 : vector<1x1xf32> to vector<1x128xf32>
    %1293 = arith.mulf %1292, %304 : vector<1x128xf32>
    %1294 = vector.extract_strided_slice %1226 {offsets = [0, 21], sizes = [1, 1], strides = [1, 1]} : vector<1x32xf32> to vector<1x1xf32>
    %1295 = vector.broadcast %1294 : vector<1x1xf32> to vector<1x128xf32>
    %1296 = arith.mulf %1295, %305 : vector<1x128xf32>
    %1297 = vector.extract_strided_slice %1226 {offsets = [0, 22], sizes = [1, 1], strides = [1, 1]} : vector<1x32xf32> to vector<1x1xf32>
    %1298 = vector.broadcast %1297 : vector<1x1xf32> to vector<1x128xf32>
    %1299 = arith.mulf %1298, %306 : vector<1x128xf32>
    %1300 = vector.extract_strided_slice %1226 {offsets = [0, 23], sizes = [1, 1], strides = [1, 1]} : vector<1x32xf32> to vector<1x1xf32>
    %1301 = vector.broadcast %1300 : vector<1x1xf32> to vector<1x128xf32>
    %1302 = arith.mulf %1301, %307 : vector<1x128xf32>
    %1303 = vector.extract_strided_slice %1226 {offsets = [0, 24], sizes = [1, 1], strides = [1, 1]} : vector<1x32xf32> to vector<1x1xf32>
    %1304 = vector.broadcast %1303 : vector<1x1xf32> to vector<1x128xf32>
    %1305 = arith.mulf %1304, %308 : vector<1x128xf32>
    %1306 = vector.extract_strided_slice %1226 {offsets = [0, 25], sizes = [1, 1], strides = [1, 1]} : vector<1x32xf32> to vector<1x1xf32>
    %1307 = vector.broadcast %1306 : vector<1x1xf32> to vector<1x128xf32>
    %1308 = arith.mulf %1307, %309 : vector<1x128xf32>
    %1309 = vector.extract_strided_slice %1226 {offsets = [0, 26], sizes = [1, 1], strides = [1, 1]} : vector<1x32xf32> to vector<1x1xf32>
    %1310 = vector.broadcast %1309 : vector<1x1xf32> to vector<1x128xf32>
    %1311 = arith.mulf %1310, %310 : vector<1x128xf32>
    %1312 = vector.extract_strided_slice %1226 {offsets = [0, 27], sizes = [1, 1], strides = [1, 1]} : vector<1x32xf32> to vector<1x1xf32>
    %1313 = vector.broadcast %1312 : vector<1x1xf32> to vector<1x128xf32>
    %1314 = arith.mulf %1313, %311 : vector<1x128xf32>
    %1315 = vector.extract_strided_slice %1226 {offsets = [0, 28], sizes = [1, 1], strides = [1, 1]} : vector<1x32xf32> to vector<1x1xf32>
    %1316 = vector.broadcast %1315 : vector<1x1xf32> to vector<1x128xf32>
    %1317 = arith.mulf %1316, %312 : vector<1x128xf32>
    %1318 = vector.extract_strided_slice %1226 {offsets = [0, 29], sizes = [1, 1], strides = [1, 1]} : vector<1x32xf32> to vector<1x1xf32>
    %1319 = vector.broadcast %1318 : vector<1x1xf32> to vector<1x128xf32>
    %1320 = arith.mulf %1319, %313 : vector<1x128xf32>
    %1321 = vector.extract_strided_slice %1226 {offsets = [0, 30], sizes = [1, 1], strides = [1, 1]} : vector<1x32xf32> to vector<1x1xf32>
    %1322 = vector.broadcast %1321 : vector<1x1xf32> to vector<1x128xf32>
    %1323 = arith.mulf %1322, %314 : vector<1x128xf32>
    %1324 = vector.extract_strided_slice %1226 {offsets = [0, 31], sizes = [1, 1], strides = [1, 1]} : vector<1x32xf32> to vector<1x1xf32>
    %1325 = vector.broadcast %1324 : vector<1x1xf32> to vector<1x128xf32>
    %1326 = arith.mulf %1325, %315 : vector<1x128xf32>
    %1327 = arith.addf %1233, %1236 : vector<1x128xf32>
    %1328 = arith.addf %1239, %1242 : vector<1x128xf32>
    %1329 = arith.addf %1245, %1248 : vector<1x128xf32>
    %1330 = arith.addf %1251, %1254 : vector<1x128xf32>
    %1331 = arith.addf %1257, %1260 : vector<1x128xf32>
    %1332 = arith.addf %1263, %1266 : vector<1x128xf32>
    %1333 = arith.addf %1269, %1272 : vector<1x128xf32>
    %1334 = arith.addf %1275, %1278 : vector<1x128xf32>
    %1335 = arith.addf %1281, %1284 : vector<1x128xf32>
    %1336 = arith.addf %1287, %1290 : vector<1x128xf32>
    %1337 = arith.addf %1293, %1296 : vector<1x128xf32>
    %1338 = arith.addf %1299, %1302 : vector<1x128xf32>
    %1339 = arith.addf %1305, %1308 : vector<1x128xf32>
    %1340 = arith.addf %1311, %1314 : vector<1x128xf32>
    %1341 = arith.addf %1317, %1320 : vector<1x128xf32>
    %1342 = arith.addf %1323, %1326 : vector<1x128xf32>
    %1343 = arith.addf %1327, %1328 : vector<1x128xf32>
    %1344 = arith.addf %1329, %1330 : vector<1x128xf32>
    %1345 = arith.addf %1331, %1332 : vector<1x128xf32>
    %1346 = arith.addf %1333, %1334 : vector<1x128xf32>
    %1347 = arith.addf %1335, %1336 : vector<1x128xf32>
    %1348 = arith.addf %1337, %1338 : vector<1x128xf32>
    %1349 = arith.addf %1339, %1340 : vector<1x128xf32>
    %1350 = arith.addf %1341, %1342 : vector<1x128xf32>
    %1351 = arith.addf %1343, %1344 : vector<1x128xf32>
    %1352 = arith.addf %1345, %1346 : vector<1x128xf32>
    %1353 = arith.addf %1347, %1348 : vector<1x128xf32>
    %1354 = arith.addf %1349, %1350 : vector<1x128xf32>
    %1355 = arith.addf %1351, %1352 : vector<1x128xf32>
    %1356 = arith.addf %1353, %1354 : vector<1x128xf32>
    %1357 = arith.addf %1355, %1356 : vector<1x128xf32>
    %1358 = vector.extract_strided_slice %322 {offsets = [6, 0], sizes = [1, 128], strides = [1, 1]} : vector<8x128xf32> to vector<1x128xf32>
    %1359 = arith.addf %1358, %1357 : vector<1x128xf32>
    %1360 = arith.negf %1359 : vector<1x128xf32>
    %1361 = math.exp %1360 : vector<1x128xf32>
    %cst_95 = arith.constant 1.000000e+00 : f32
    %1362 = vector.broadcast %cst_95 : f32 to vector<1x128xf32>
    %1363 = arith.addf %1362, %1361 : vector<1x128xf32>
    %1364 = arith.divf %1362, %1363 : vector<1x128xf32>
    %1365 = vector.extract_strided_slice %1364 {offsets = [0, 0], sizes = [1, 32], strides = [1, 1]} : vector<1x128xf32> to vector<1x32xf32>
    %1366 = vector.extract_strided_slice %1364 {offsets = [0, 32], sizes = [1, 32], strides = [1, 1]} : vector<1x128xf32> to vector<1x32xf32>
    %1367 = vector.extract_strided_slice %1364 {offsets = [0, 64], sizes = [1, 32], strides = [1, 1]} : vector<1x128xf32> to vector<1x32xf32>
    %cst_96 = arith.constant 2.000000e+00 : f32
    %1368 = vector.broadcast %cst_96 : f32 to vector<1x32xf32>
    %1369 = arith.mulf %1368, %1367 : vector<1x32xf32>
    %cst_97 = arith.constant 1.000000e+00 : f32
    %1370 = vector.broadcast %cst_97 : f32 to vector<1x32xf32>
    %1371 = arith.subf %1369, %1370 : vector<1x32xf32>
    %1372 = vector.extract_strided_slice %1364 {offsets = [0, 96], sizes = [1, 32], strides = [1, 1]} : vector<1x128xf32> to vector<1x32xf32>
    %1373 = arith.mulf %1366, %1224 : vector<1x32xf32>
    %1374 = arith.mulf %1365, %1371 : vector<1x32xf32>
    %1375 = arith.addf %1373, %1374 : vector<1x32xf32>
    %1376 = math.tanh %1375 : vector<1x32xf32>
    %1377 = arith.mulf %1372, %1376 : vector<1x32xf32>
    %1378 = vector.shape_cast %1377 : vector<1x32xf32> to vector<32xf32>
    %c6 = arith.constant 6 : index
    %c0_98 = arith.constant 0 : index
    %1379 = vector.load %arg5[%c6, %c0_98] : memref<8x32xf32, #tpu.memory_space<vmem>>, vector<1x32xf32>
    %1380 = vector.shape_cast %1379 : vector<1x32xf32> to vector<32xf32>
    %1381 = vector.shape_cast %1378 : vector<32xf32> to vector<1x32xf32>
    tpu.vector_store %arg5[%c6, %c0_98], %1381 {strides = array<i32>} : memref<8x32xf32, #tpu.memory_space<vmem>>, vector<1x32xf32>,
    %1382 = vector.extract_strided_slice %1377 {offsets = [0, 0], sizes = [1, 1], strides = [1, 1]} : vector<1x32xf32> to vector<1x1xf32>
    %1383 = vector.broadcast %1382 : vector<1x1xf32> to vector<1x128xf32>
    %1384 = arith.mulf %1383, %284 : vector<1x128xf32>
    %1385 = vector.extract_strided_slice %1377 {offsets = [0, 1], sizes = [1, 1], strides = [1, 1]} : vector<1x32xf32> to vector<1x1xf32>
    %1386 = vector.broadcast %1385 : vector<1x1xf32> to vector<1x128xf32>
    %1387 = arith.mulf %1386, %285 : vector<1x128xf32>
    %1388 = vector.extract_strided_slice %1377 {offsets = [0, 2], sizes = [1, 1], strides = [1, 1]} : vector<1x32xf32> to vector<1x1xf32>
    %1389 = vector.broadcast %1388 : vector<1x1xf32> to vector<1x128xf32>
    %1390 = arith.mulf %1389, %286 : vector<1x128xf32>
    %1391 = vector.extract_strided_slice %1377 {offsets = [0, 3], sizes = [1, 1], strides = [1, 1]} : vector<1x32xf32> to vector<1x1xf32>
    %1392 = vector.broadcast %1391 : vector<1x1xf32> to vector<1x128xf32>
    %1393 = arith.mulf %1392, %287 : vector<1x128xf32>
    %1394 = vector.extract_strided_slice %1377 {offsets = [0, 4], sizes = [1, 1], strides = [1, 1]} : vector<1x32xf32> to vector<1x1xf32>
    %1395 = vector.broadcast %1394 : vector<1x1xf32> to vector<1x128xf32>
    %1396 = arith.mulf %1395, %288 : vector<1x128xf32>
    %1397 = vector.extract_strided_slice %1377 {offsets = [0, 5], sizes = [1, 1], strides = [1, 1]} : vector<1x32xf32> to vector<1x1xf32>
    %1398 = vector.broadcast %1397 : vector<1x1xf32> to vector<1x128xf32>
    %1399 = arith.mulf %1398, %289 : vector<1x128xf32>
    %1400 = vector.extract_strided_slice %1377 {offsets = [0, 6], sizes = [1, 1], strides = [1, 1]} : vector<1x32xf32> to vector<1x1xf32>
    %1401 = vector.broadcast %1400 : vector<1x1xf32> to vector<1x128xf32>
    %1402 = arith.mulf %1401, %290 : vector<1x128xf32>
    %1403 = vector.extract_strided_slice %1377 {offsets = [0, 7], sizes = [1, 1], strides = [1, 1]} : vector<1x32xf32> to vector<1x1xf32>
    %1404 = vector.broadcast %1403 : vector<1x1xf32> to vector<1x128xf32>
    %1405 = arith.mulf %1404, %291 : vector<1x128xf32>
    %1406 = vector.extract_strided_slice %1377 {offsets = [0, 8], sizes = [1, 1], strides = [1, 1]} : vector<1x32xf32> to vector<1x1xf32>
    %1407 = vector.broadcast %1406 : vector<1x1xf32> to vector<1x128xf32>
    %1408 = arith.mulf %1407, %292 : vector<1x128xf32>
    %1409 = vector.extract_strided_slice %1377 {offsets = [0, 9], sizes = [1, 1], strides = [1, 1]} : vector<1x32xf32> to vector<1x1xf32>
    %1410 = vector.broadcast %1409 : vector<1x1xf32> to vector<1x128xf32>
    %1411 = arith.mulf %1410, %293 : vector<1x128xf32>
    %1412 = vector.extract_strided_slice %1377 {offsets = [0, 10], sizes = [1, 1], strides = [1, 1]} : vector<1x32xf32> to vector<1x1xf32>
    %1413 = vector.broadcast %1412 : vector<1x1xf32> to vector<1x128xf32>
    %1414 = arith.mulf %1413, %294 : vector<1x128xf32>
    %1415 = vector.extract_strided_slice %1377 {offsets = [0, 11], sizes = [1, 1], strides = [1, 1]} : vector<1x32xf32> to vector<1x1xf32>
    %1416 = vector.broadcast %1415 : vector<1x1xf32> to vector<1x128xf32>
    %1417 = arith.mulf %1416, %295 : vector<1x128xf32>
    %1418 = vector.extract_strided_slice %1377 {offsets = [0, 12], sizes = [1, 1], strides = [1, 1]} : vector<1x32xf32> to vector<1x1xf32>
    %1419 = vector.broadcast %1418 : vector<1x1xf32> to vector<1x128xf32>
    %1420 = arith.mulf %1419, %296 : vector<1x128xf32>
    %1421 = vector.extract_strided_slice %1377 {offsets = [0, 13], sizes = [1, 1], strides = [1, 1]} : vector<1x32xf32> to vector<1x1xf32>
    %1422 = vector.broadcast %1421 : vector<1x1xf32> to vector<1x128xf32>
    %1423 = arith.mulf %1422, %297 : vector<1x128xf32>
    %1424 = vector.extract_strided_slice %1377 {offsets = [0, 14], sizes = [1, 1], strides = [1, 1]} : vector<1x32xf32> to vector<1x1xf32>
    %1425 = vector.broadcast %1424 : vector<1x1xf32> to vector<1x128xf32>
    %1426 = arith.mulf %1425, %298 : vector<1x128xf32>
    %1427 = vector.extract_strided_slice %1377 {offsets = [0, 15], sizes = [1, 1], strides = [1, 1]} : vector<1x32xf32> to vector<1x1xf32>
    %1428 = vector.broadcast %1427 : vector<1x1xf32> to vector<1x128xf32>
    %1429 = arith.mulf %1428, %299 : vector<1x128xf32>
    %1430 = vector.extract_strided_slice %1377 {offsets = [0, 16], sizes = [1, 1], strides = [1, 1]} : vector<1x32xf32> to vector<1x1xf32>
    %1431 = vector.broadcast %1430 : vector<1x1xf32> to vector<1x128xf32>
    %1432 = arith.mulf %1431, %300 : vector<1x128xf32>
    %1433 = vector.extract_strided_slice %1377 {offsets = [0, 17], sizes = [1, 1], strides = [1, 1]} : vector<1x32xf32> to vector<1x1xf32>
    %1434 = vector.broadcast %1433 : vector<1x1xf32> to vector<1x128xf32>
    %1435 = arith.mulf %1434, %301 : vector<1x128xf32>
    %1436 = vector.extract_strided_slice %1377 {offsets = [0, 18], sizes = [1, 1], strides = [1, 1]} : vector<1x32xf32> to vector<1x1xf32>
    %1437 = vector.broadcast %1436 : vector<1x1xf32> to vector<1x128xf32>
    %1438 = arith.mulf %1437, %302 : vector<1x128xf32>
    %1439 = vector.extract_strided_slice %1377 {offsets = [0, 19], sizes = [1, 1], strides = [1, 1]} : vector<1x32xf32> to vector<1x1xf32>
    %1440 = vector.broadcast %1439 : vector<1x1xf32> to vector<1x128xf32>
    %1441 = arith.mulf %1440, %303 : vector<1x128xf32>
    %1442 = vector.extract_strided_slice %1377 {offsets = [0, 20], sizes = [1, 1], strides = [1, 1]} : vector<1x32xf32> to vector<1x1xf32>
    %1443 = vector.broadcast %1442 : vector<1x1xf32> to vector<1x128xf32>
    %1444 = arith.mulf %1443, %304 : vector<1x128xf32>
    %1445 = vector.extract_strided_slice %1377 {offsets = [0, 21], sizes = [1, 1], strides = [1, 1]} : vector<1x32xf32> to vector<1x1xf32>
    %1446 = vector.broadcast %1445 : vector<1x1xf32> to vector<1x128xf32>
    %1447 = arith.mulf %1446, %305 : vector<1x128xf32>
    %1448 = vector.extract_strided_slice %1377 {offsets = [0, 22], sizes = [1, 1], strides = [1, 1]} : vector<1x32xf32> to vector<1x1xf32>
    %1449 = vector.broadcast %1448 : vector<1x1xf32> to vector<1x128xf32>
    %1450 = arith.mulf %1449, %306 : vector<1x128xf32>
    %1451 = vector.extract_strided_slice %1377 {offsets = [0, 23], sizes = [1, 1], strides = [1, 1]} : vector<1x32xf32> to vector<1x1xf32>
    %1452 = vector.broadcast %1451 : vector<1x1xf32> to vector<1x128xf32>
    %1453 = arith.mulf %1452, %307 : vector<1x128xf32>
    %1454 = vector.extract_strided_slice %1377 {offsets = [0, 24], sizes = [1, 1], strides = [1, 1]} : vector<1x32xf32> to vector<1x1xf32>
    %1455 = vector.broadcast %1454 : vector<1x1xf32> to vector<1x128xf32>
    %1456 = arith.mulf %1455, %308 : vector<1x128xf32>
    %1457 = vector.extract_strided_slice %1377 {offsets = [0, 25], sizes = [1, 1], strides = [1, 1]} : vector<1x32xf32> to vector<1x1xf32>
    %1458 = vector.broadcast %1457 : vector<1x1xf32> to vector<1x128xf32>
    %1459 = arith.mulf %1458, %309 : vector<1x128xf32>
    %1460 = vector.extract_strided_slice %1377 {offsets = [0, 26], sizes = [1, 1], strides = [1, 1]} : vector<1x32xf32> to vector<1x1xf32>
    %1461 = vector.broadcast %1460 : vector<1x1xf32> to vector<1x128xf32>
    %1462 = arith.mulf %1461, %310 : vector<1x128xf32>
    %1463 = vector.extract_strided_slice %1377 {offsets = [0, 27], sizes = [1, 1], strides = [1, 1]} : vector<1x32xf32> to vector<1x1xf32>
    %1464 = vector.broadcast %1463 : vector<1x1xf32> to vector<1x128xf32>
    %1465 = arith.mulf %1464, %311 : vector<1x128xf32>
    %1466 = vector.extract_strided_slice %1377 {offsets = [0, 28], sizes = [1, 1], strides = [1, 1]} : vector<1x32xf32> to vector<1x1xf32>
    %1467 = vector.broadcast %1466 : vector<1x1xf32> to vector<1x128xf32>
    %1468 = arith.mulf %1467, %312 : vector<1x128xf32>
    %1469 = vector.extract_strided_slice %1377 {offsets = [0, 29], sizes = [1, 1], strides = [1, 1]} : vector<1x32xf32> to vector<1x1xf32>
    %1470 = vector.broadcast %1469 : vector<1x1xf32> to vector<1x128xf32>
    %1471 = arith.mulf %1470, %313 : vector<1x128xf32>
    %1472 = vector.extract_strided_slice %1377 {offsets = [0, 30], sizes = [1, 1], strides = [1, 1]} : vector<1x32xf32> to vector<1x1xf32>
    %1473 = vector.broadcast %1472 : vector<1x1xf32> to vector<1x128xf32>
    %1474 = arith.mulf %1473, %314 : vector<1x128xf32>
    %1475 = vector.extract_strided_slice %1377 {offsets = [0, 31], sizes = [1, 1], strides = [1, 1]} : vector<1x32xf32> to vector<1x1xf32>
    %1476 = vector.broadcast %1475 : vector<1x1xf32> to vector<1x128xf32>
    %1477 = arith.mulf %1476, %315 : vector<1x128xf32>
    %1478 = arith.addf %1384, %1387 : vector<1x128xf32>
    %1479 = arith.addf %1390, %1393 : vector<1x128xf32>
    %1480 = arith.addf %1396, %1399 : vector<1x128xf32>
    %1481 = arith.addf %1402, %1405 : vector<1x128xf32>
    %1482 = arith.addf %1408, %1411 : vector<1x128xf32>
    %1483 = arith.addf %1414, %1417 : vector<1x128xf32>
    %1484 = arith.addf %1420, %1423 : vector<1x128xf32>
    %1485 = arith.addf %1426, %1429 : vector<1x128xf32>
    %1486 = arith.addf %1432, %1435 : vector<1x128xf32>
    %1487 = arith.addf %1438, %1441 : vector<1x128xf32>
    %1488 = arith.addf %1444, %1447 : vector<1x128xf32>
    %1489 = arith.addf %1450, %1453 : vector<1x128xf32>
    %1490 = arith.addf %1456, %1459 : vector<1x128xf32>
    %1491 = arith.addf %1462, %1465 : vector<1x128xf32>
    %1492 = arith.addf %1468, %1471 : vector<1x128xf32>
    %1493 = arith.addf %1474, %1477 : vector<1x128xf32>
    %1494 = arith.addf %1478, %1479 : vector<1x128xf32>
    %1495 = arith.addf %1480, %1481 : vector<1x128xf32>
    %1496 = arith.addf %1482, %1483 : vector<1x128xf32>
    %1497 = arith.addf %1484, %1485 : vector<1x128xf32>
    %1498 = arith.addf %1486, %1487 : vector<1x128xf32>
    %1499 = arith.addf %1488, %1489 : vector<1x128xf32>
    %1500 = arith.addf %1490, %1491 : vector<1x128xf32>
    %1501 = arith.addf %1492, %1493 : vector<1x128xf32>
    %1502 = arith.addf %1494, %1495 : vector<1x128xf32>
    %1503 = arith.addf %1496, %1497 : vector<1x128xf32>
    %1504 = arith.addf %1498, %1499 : vector<1x128xf32>
    %1505 = arith.addf %1500, %1501 : vector<1x128xf32>
    %1506 = arith.addf %1502, %1503 : vector<1x128xf32>
    %1507 = arith.addf %1504, %1505 : vector<1x128xf32>
    %1508 = arith.addf %1506, %1507 : vector<1x128xf32>
    %1509 = vector.extract_strided_slice %322 {offsets = [7, 0], sizes = [1, 128], strides = [1, 1]} : vector<8x128xf32> to vector<1x128xf32>
    %1510 = arith.addf %1509, %1508 : vector<1x128xf32>
    %1511 = arith.negf %1510 : vector<1x128xf32>
    %1512 = math.exp %1511 : vector<1x128xf32>
    %cst_99 = arith.constant 1.000000e+00 : f32
    %1513 = vector.broadcast %cst_99 : f32 to vector<1x128xf32>
    %1514 = arith.addf %1513, %1512 : vector<1x128xf32>
    %1515 = arith.divf %1513, %1514 : vector<1x128xf32>
    %1516 = vector.extract_strided_slice %1515 {offsets = [0, 0], sizes = [1, 32], strides = [1, 1]} : vector<1x128xf32> to vector<1x32xf32>
    %1517 = vector.extract_strided_slice %1515 {offsets = [0, 32], sizes = [1, 32], strides = [1, 1]} : vector<1x128xf32> to vector<1x32xf32>
    %1518 = vector.extract_strided_slice %1515 {offsets = [0, 64], sizes = [1, 32], strides = [1, 1]} : vector<1x128xf32> to vector<1x32xf32>
    %cst_100 = arith.constant 2.000000e+00 : f32
    %1519 = vector.broadcast %cst_100 : f32 to vector<1x32xf32>
    %1520 = arith.mulf %1519, %1518 : vector<1x32xf32>
    %cst_101 = arith.constant 1.000000e+00 : f32
    %1521 = vector.broadcast %cst_101 : f32 to vector<1x32xf32>
    %1522 = arith.subf %1520, %1521 : vector<1x32xf32>
    %1523 = vector.extract_strided_slice %1515 {offsets = [0, 96], sizes = [1, 32], strides = [1, 1]} : vector<1x128xf32> to vector<1x32xf32>
    %1524 = arith.mulf %1517, %1375 : vector<1x32xf32>
    %1525 = arith.mulf %1516, %1522 : vector<1x32xf32>
    %1526 = arith.addf %1524, %1525 : vector<1x32xf32>
    %1527 = math.tanh %1526 : vector<1x32xf32>
    %1528 = arith.mulf %1523, %1527 : vector<1x32xf32>
    %1529 = vector.shape_cast %1528 : vector<1x32xf32> to vector<32xf32>
    %c7 = arith.constant 7 : index
    %c0_102 = arith.constant 0 : index
    %1530 = vector.load %arg5[%c7, %c0_102] : memref<8x32xf32, #tpu.memory_space<vmem>>, vector<1x32xf32>
    %1531 = vector.shape_cast %1530 : vector<1x32xf32> to vector<32xf32>
    %1532 = vector.shape_cast %1529 : vector<32xf32> to vector<1x32xf32>
    tpu.vector_store %arg5[%c7, %c0_102], %1532 {strides = array<i32>} : memref<8x32xf32, #tpu.memory_space<vmem>>, vector<1x32xf32>,
    %c88 = arith.constant 88 : index
    %c0_103 = arith.constant 0 : index
    %1533 = vector.load %arg3[%c88, %c0_103] : memref<128x128xf32, #tpu.memory_space<vmem>>, vector<32x128xf32>
    %c120 = arith.constant 120 : index
    %c0_104 = arith.constant 0 : index
    %1534 = vector.load %arg3[%c120, %c0_104] : memref<128x128xf32, #tpu.memory_space<vmem>>, vector<1x128xf32>
    %c0_105 = arith.constant 0 : index
    %c0_106 = arith.constant 0 : index
    %1535 = vector.load %arg5[%c0_105, %c0_106] : memref<8x32xf32, #tpu.memory_space<vmem>>, vector<8x32xf32>
    %cst_107 = arith.constant dense<0.000000e+00> : vector<8x128xf32>
    %1536 = tpu.matmul %1535, %1533, %cst_107 {dimension_numbers = #tpu.dot_dimension_numbers<[1], [0], [0], [1], [0, 0, 1, 1], [], []>} : vector<8x32xf32>, vector<32x128xf32>, vector<8x128xf32> -> vector<8x128xf32>
    %1537 = vector.broadcast %1534 : vector<1x128xf32> to vector<8x128xf32>
    %1538 = arith.addf %1536, %1537 : vector<8x128xf32>
    %1539 = tpu.iota {dimensions = array<i32: 1>} : vector<8x128xi32>
    %c10_i32 = arith.constant 10 : i32
    %1540 = vector.broadcast %c10_i32 : i32 to vector<8x128xi32>
    %1541 = arith.cmpi slt, %1539, %1540 : vector<8x128xi32>
    %cst_108 = arith.constant -1.000000e+30 : f32
    %1542 = vector.broadcast %cst_108 : f32 to vector<8x128xf32>
    %1543 = arith.select %1541, %1538, %1542 : vector<8x128xi1>, vector<8x128xf32>
    %cst_109 = arith.constant dense<0xFF800000> : vector<8xf32>
    %1544 = vector.multi_reduction <maximumf>, %1543, %cst_109 [1] : vector<8x128xf32> to vector<8xf32>
    %1545 = vector.shape_cast %1544 : vector<8xf32> to vector<8x1xf32>
    %1546 = vector.broadcast %1545 : vector<8x1xf32> to vector<8x128xf32>
    %1547 = arith.subf %1543, %1546 : vector<8x128xf32>
    %1548 = math.exp %1547 : vector<8x128xf32>
    %cst_110 = arith.constant dense<0.000000e+00> : vector<8xf32>
    %1549 = vector.multi_reduction <add>, %1548, %cst_110 [1] : vector<8x128xf32> to vector<8xf32>
    %1550 = vector.shape_cast %1549 : vector<8xf32> to vector<8x1xf32>
    %1551 = math.log %1550 : vector<8x1xf32>
    %1552 = vector.broadcast %1551 : vector<8x1xf32> to vector<8x128xf32>
    %1553 = arith.subf %1547, %1552 : vector<8x128xf32>
    %cst_111 = arith.constant 0.000000e+00 : f32
    %1554 = vector.broadcast %cst_111 : f32 to vector<8x128xf32>
    %1555 = arith.select %1541, %1553, %1554 : vector<8x128xi1>, vector<8x128xf32>
    %c0_112 = arith.constant 0 : index
    %c0_113 = arith.constant 0 : index
    %1556 = vector.load %arg4[%c0_112, %c0_113] : memref<8x128xf32, #tpu.memory_space<vmem>>, vector<8x128xf32>
    tpu.vector_store %arg4[%c0_112, %c0_113], %1555 {strides = array<i32>} : memref<8x128xf32, #tpu.memory_space<vmem>>, vector<8x128xf32>,
    return
  }
}

</mosaic_0001>

<llo_original>
// kernel: tpu_custom_call.1
$region0: #{tpu_custom_call.1}
  #allocation0 [shape = 'u32[]', space=smem, size = 0x4, offset = 0x4, fixed_abs, tag = 'smem constant byte address 0x4 - core index']
  #allocation1 [shape = 'u32[144,128]{1,0:T(1,128)}', space=vmem, size = 0x12000, scoped, tag = 'internal scratch']
  #allocation2 [shape = 'f32[8,32]{1,0:T(8,128)}', space=vmem, size = 0x1000, scoped, tag = 'scratch operand']
  %s0 = inlined_call_operand.vmem [shape: f32[8,16], index: 0, kind: input, shape index: {}]
  %s1 = inlined_call_operand.vmem [shape: f32[40,8], index: 1, kind: input, shape index: {}]
  %s2 = inlined_call_operand.vmem [shape: s32[8,1], index: 2, kind: input, shape index: {}]
  %s3 = inlined_call_operand.hbm [shape: f32[128,128], index: 3, kind: input, shape index: {}]
  %s4 = inlined_call_operand.hbm [shape: f32[8,128], index: 4, kind: output, shape index: {}]
  %s5 = sld [smem:[#allocation0]]
  $region30: #{tpu_custom_call.1} parent=0
    _
  %s7 = ssub.s32 1, %s5
  %s8 = scalar_select 0, %s7, %s5
  $region1: #{tpu_custom_call.1} parent=0
    #allocation3 [shape = 'u8[65536]{0}', space=vmem, size = 0x10000, scoped, tag = 'input window, operand 3, single buffered']
    #allocation4 [shape = 's32[1]{0}', space=sflag, size = 0x4, scoped, tag = 'scoped memory for tpu_custom_call.1']
    #allocation5 [shape = 's32[1]{0}', space=sflag, size = 0x4, scoped, tag = 'scoped memory for tpu_custom_call.1']
    #allocation6 [shape = 'u8[4096]{0}', space=vmem, size = 0x1000, scoped, tag = 'output window, operand 0, single buffered']
    %9 = vsyncpa [#allocation4], 0
    %10 = vsyncpa [#allocation5], 0
    // Predicated region
    $region2: #{tpu_custom_call.1} parent=1 // pred_check
      _
    $region3: #{tpu_custom_call.1} parent=1 // pred_check_branch
      %12 = sbr.rel (0) target = $region5
    $region4: #{tpu_custom_call.1} parent=1 // pred_region
      _
    $region5: #{tpu_custom_call.1} parent=1 // pred_fallthru
      _
    // Predicated region
    $region6: #{tpu_custom_call.1} parent=1 // pred_check
      _
    $region7: #{tpu_custom_call.1} parent=1 // pred_check_branch
      %14 = sbr.rel (0) target = $region9
    $region8: #{tpu_custom_call.1} parent=1 // pred_region
      _
    $region9: #{tpu_custom_call.1} parent=1 // pred_fallthru
      _
    // Predicated region
    $region10: #{tpu_custom_call.1} parent=1 // pred_check
      _
    $region11: #{tpu_custom_call.1} parent=1 // pred_check_branch
      %16 = sbr.rel (0) target = $region13
    $region12: #{tpu_custom_call.1} parent=1 // pred_region
      _
    $region13: #{tpu_custom_call.1} parent=1 // pred_fallthru
      _
    // Predicated region
    $region14: #{tpu_custom_call.1} parent=1 // pred_check
      _
    $region15: #{tpu_custom_call.1} parent=1 // pred_check_branch
      %18 = sbr.rel (0) target = $region17
    $region16: #{tpu_custom_call.1} parent=1 // pred_region
      %s20 = ssub.s32 2048, 2048
      %21 = vsyncadd [#allocation4], %s20
      %s22 = sshll.u32 [#allocation3], 4
      %s23 = int_to_ptr.vmem [resolvable:$true] %s22
      %28 = dma.hbm_to_vmem [thread:$0]  %s3, 2048, %s23, [#allocation4], 128, 128, 8
    $region17: #{tpu_custom_call.1} parent=1 // pred_fallthru
      _
    // Predicated region
    $region18: #{tpu_custom_call.1} parent=1 // pred_check
      _
    $region19: #{tpu_custom_call.1} parent=1 // pred_check_branch
      %30 = sbr.rel (0) target = $region21
    $region20: #{tpu_custom_call.1} parent=1 // pred_region
      %31 = dma.done [#allocation4], 2048
    $region21: #{tpu_custom_call.1} parent=1 // pred_fallthru
      _
    %v32 = vld [vmem:[#allocation3] sm:$0xff]
    %v33 = vld [vmem:[#allocation3 + $0x10] sm:$0x1]
    %v34 = vld [vmem:[#allocation3 + $0x8] sm:$0x1]
    %v35 = vld [vmem:[#allocation3 + $0x9] sm:$0x1]
    %v36 = vld [vmem:[#allocation3 + $0xa] sm:$0x1]
    %v37 = vld [vmem:[#allocation3 + $0xb] sm:$0x1]
    %v38 = vld [vmem:[#allocation3 + $0xc] sm:$0x1]
    %v39 = vld [vmem:[#allocation3 + $0xd] sm:$0x1]
    %v40 = vld [vmem:[%s1] sm:$0xff]
    %v41 = vld [vmem:[%s1 + $0x8] sm:$0xff]
    %v42 = vld [vmem:[%s1 + $0x10] sm:$0xff]
    %v43 = vld [vmem:[%s1 + $0x18] sm:$0xff]
    %v44 = vld [vmem:[%s1 + $0x20] sm:$0xff]
    %v45 = vlaneseq
    %v46 = vshrl.u32 %v45, 7
    %v47 = vsub.s32 0, %v46
    %v48 = vrot.slane %v33, %v47
    %vm49 = vcmask 64512
    %v51 = vsel %vm49, %v40, 0
    %v54 = vsel %vm49, %v41, 0
    %v57 = vsel %vm49, %v42, 0
    %v60 = vsel %vm49, %v43, 0
    %v63 = vsel %vm49, %v44, 0
    %65 = vmatprep.subr.mxu0 0.0
    %66 = vmatpush1.msra.mxu0 %v32
    %67 = vmatprep.subr.mxu0 0.0
    %68 = vmatpush1.msra.mxu0 0.0
    %69 = vmatprep.subr.mxu0 0.0
    %70 = vmatpush1.msra.mxu0 0.0
    %71 = vmatprep.subr.mxu0 0.0
    %72 = vmatpush1.msra.mxu0 0.0
    %73 = vmatprep.subr.mxu0 0.0
    %74 = vmatpush1.msra.mxu0 0.0
    %75 = vmatprep.subr.mxu0 0.0
    %76 = vmatpush1.msra.mxu0 0.0
    %77 = vmatprep.subr.mxu0 0.0
    %78 = vmatpush1.msra.mxu0 0.0
    %79 = vmatprep.subr.mxu0 0.0
    %80 = vmatpush1.msra.mxu0 0.0
    %81 = vmatprep.subr.mxu0 0.0
    %82 = vmatpush1.msra.mxu0 0.0
    %83 = vmatprep.subr.mxu0 0.0
    %84 = vmatpush1.msra.mxu0 0.0
    %85 = vmatprep.subr.mxu0 0.0
    %86 = vmatpush1.msra.mxu0 0.0
    %87 = vmatprep.subr.mxu0 0.0
    %88 = vmatpush1.msra.mxu0 0.0
    %89 = vmatprep.subr.mxu0 0.0
    %90 = vmatpush1.msra.mxu0 0.0
    %91 = vmatprep.subr.mxu0 0.0
    %92 = vmatpush1.msra.mxu0 0.0
    %93 = vmatprep.subr.mxu0 0.0
    %94 = vmatpush1.msra.mxu0 0.0
    %95 = vmatprep.subr.mxu0 0.0
    %96 = vmatpush1.msra.mxu0 0.0
    %97 = vmatprep.subr.mxu0 0.0
    %98 = vmatpush1.msra.mxu0 0.0
    %99 = vmatprep.subr.mxu0 0.0
    %100 = vmatpush1.msra.mxu0 0.0
    %101 = vmatprep.subr.mxu0 0.0
    %102 = vmatpush1.msra.mxu0 0.0
    %103 = vmatprep.subr.mxu0 0.0
    %104 = vmatpush1.msra.mxu0 0.0
    %105 = vmatprep.subr.mxu0 0.0
    %106 = vmatpush1.msra.mxu0 0.0
    %107 = vmatprep.subr.mxu0 0.0
    %108 = vmatpush1.msra.mxu0 0.0
    %109 = vmatprep.subr.mxu0 0.0
    %110 = vmatpush1.msra.mxu0 0.0
    %111 = vmatprep.subr.mxu0 0.0
    %112 = vmatpush1.msra.mxu0 0.0
    %113 = vmatprep.subr.mxu0 0.0
    %114 = vmatpush1.msra.mxu0 0.0
    %115 = vmatprep.subr.mxu0 0.0
    %116 = vmatpush1.msra.mxu0 0.0
    %117 = vmatprep.subr.mxu0 0.0
    %118 = vmatpush1.msra.mxu0 0.0
    %119 = vmatprep.subr.mxu0 0.0
    %120 = vmatpush1.msra.mxu0 0.0
    %121 = vmatprep.subr.mxu0 0.0
    %122 = vmatpush1.msra.mxu0 0.0
    %123 = vmatprep.subr.mxu0 0.0
    %124 = vmatpush1.msra.mxu0 0.0
    %125 = vmatprep.subr.mxu0 0.0
    %126 = vmatpush1.msra.mxu0 0.0
    %127 = vmatprep.subr.mxu0 0.0
    %128 = vmatpush1.msra.mxu0 0.0
    %129 = vmatprep.mubr.f32.mxu0 0.0
    %130 = vmatmul.mubr.f32.gmra.mrb[0].mxu0 %v51
    %v131 = vpop.f32.mrb[0].mxu0
    %v132 = vadd.f32 %v48, %v131
    %v133 = vpop.f32.mrb[0].mxu0
    %134 = vmatprep.mubr.f32.mxu0 0.0
    %135 = vmatmul.mubr.f32.gmra.mrb[0].mxu0 %v54
    %v136 = vpop.f32.mrb[0].mxu0
    %v137 = vadd.f32 %v48, %v136
    %v138 = vpop.f32.mrb[0].mxu0
    %139 = vmatprep.mubr.f32.mxu0 0.0
    %140 = vmatmul.mubr.f32.gmra.mrb[0].mxu0 %v57
    %v141 = vpop.f32.mrb[0].mxu0
    %v142 = vadd.f32 %v48, %v141
    %v143 = vpop.f32.mrb[0].mxu0
    %144 = vmatprep.mubr.f32.mxu0 0.0
    %145 = vmatmul.mubr.f32.gmra.mrb[0].mxu0 %v60
    %v146 = vpop.f32.mrb[0].mxu0
    %v147 = vadd.f32 %v48, %v146
    %v148 = vpop.f32.mrb[0].mxu0
    %149 = vmatprep.mubr.f32.mxu0 0.0
    %150 = vmatmul.mubr.f32.gmra.mrb[0].mxu0 %v63
    %v151 = vpop.f32.mrb[0].mxu0
    %v152 = vadd.f32 %v48, %v151
    %v153 = vpop.f32.mrb[0].mxu0
    %154 = vdwg.mxu0
    %v155 = vld [vmem:[%s2] sm:$0xff]
    %156 = vset.pattern.permute.xlu0 0
    %157 = vperm.xlu0 %156, %v155
    %v158 = vpop.permute.xlu0 %157
    %v159 = vlaneseq
    %v160 = vshrl.u32 %v159, 7
    %v161 = vsub.s32 0, %v160
    %v162 = vrot.slane %v34, %v161
    %v163 = vmul.f32 %v162, 0.0
    %v164 = vlaneseq
    %v165 = vshrl.u32 %v164, 7
    %v166 = vsub.s32 0, %v165
    %v167 = vrot.slane %v35, %v166
    %v168 = vmul.f32 %v167, 0.0
    %v169 = vlaneseq
    %v170 = vshrl.u32 %v169, 7
    %v171 = vsub.s32 0, %v170
    %v172 = vrot.slane %v36, %v171
    %v173 = vmul.f32 %v172, 0.0
    %v174 = vlaneseq
    %v175 = vshrl.u32 %v174, 7
    %v176 = vsub.s32 0, %v175
    %v177 = vrot.slane %v37, %v176
    %v178 = vmul.f32 %v177, 0.0
    %v179 = vlaneseq
    %v180 = vshrl.u32 %v179, 7
    %v181 = vsub.s32 0, %v180
    %v182 = vrot.slane %v38, %v181
    %v183 = vmul.f32 %v182, 0.0
    %v184 = vlaneseq
    %v185 = vshrl.u32 %v184, 7
    %v186 = vsub.s32 0, %v185
    %v187 = vrot.slane %v39, %v186
    %v188 = vmul.f32 %v187, 0.0
    %v189 = vadd.f32 %v163, %v168
    %v190 = vadd.f32 %v173, %v178
    %v191 = vadd.f32 %v183, %v188
    %v192 = vadd.f32 %v189, %v190
    %v193 = vadd.f32 %v192, %v191
    %v194 = vadd.f32 %v132, %v193
    %v195 = vxor.u32 %v194, 2147483648
    %v196 = vmul.f32 %v195, 1.442695
    %v197 = vpow.pop %v196
    %v198 = vadd.f32 %v197, 1.0
    %v199 = vrcp.pop %v198
    %v200 = vmul.f32 1.0, %v199
    %v201 = vmul.f32 %v200, 2.0
    %v202 = vsub.f32 %v201, 1.0
    %v203 = vmul.f32 %v200, 0.0
    %205 = vrot.lane.b32.xlu0 %v202, 64
    %v206 = vpop.permute.xlu0 %205
    %v208 = vmul.f32 %v200, %v206
    %210 = vrot.lane.b32.xlu0 %v208, 32
    %v211 = vpop.permute.xlu0 %210
    %v213 = vadd.f32 %v203, %v211
    %v214 = vtanh.pop %v213
    %216 = vrot.lane.b32.xlu0 %v214, 64
    %v217 = vpop.permute.xlu0 %216
    %v219 = vmul.f32 %v200, %v217
    %vm220 = vcmp.gt.s32.totalorder %v158, 0
    %v221 = vsel %vm220, %v213, 0.0
    %v222 = vsel %vm220, %v219, 0.0
    %224 = vset.pattern.permute.xlu0 96
    %225 = vperm.xlu0 %224, %v222
    %v226 = vpop.permute.xlu0 %225
    %v228 = vmul.f32 %v226, %v162
    %229 = vset.pattern.permute.xlu0 97
    %230 = vperm.xlu0 %229, %v222
    %v231 = vpop.permute.xlu0 %230
    %v233 = vmul.f32 %v231, %v167
    %234 = vset.pattern.permute.xlu0 98
    %235 = vperm.xlu0 %234, %v222
    %v236 = vpop.permute.xlu0 %235
    %v238 = vmul.f32 %v236, %v172
    %239 = vset.pattern.permute.xlu0 99
    %240 = vperm.xlu0 %239, %v222
    %v241 = vpop.permute.xlu0 %240
    %v243 = vmul.f32 %v241, %v177
    %244 = vset.pattern.permute.xlu0 100
    %245 = vperm.xlu0 %244, %v222
    %v246 = vpop.permute.xlu0 %245
    %v248 = vmul.f32 %v246, %v182
    %249 = vset.pattern.permute.xlu0 101
    %250 = vperm.xlu0 %249, %v222
    %v251 = vpop.permute.xlu0 %250
    %v253 = vmul.f32 %v251, %v187
    %v254 = vadd.f32 %v228, %v233
    %v255 = vadd.f32 %v238, %v243
    %v256 = vadd.f32 %v248, %v253
    %v257 = vadd.f32 %v254, %v255
    %v258 = vadd.f32 %v257, %v256
    %v259 = vadd.f32 %v137, %v258
    %v260 = vxor.u32 %v259, 2147483648
    %v261 = vmul.f32 %v260, 1.442695
    %v262 = vpow.pop %v261
    %v263 = vadd.f32 %v262, 1.0
    %v264 = vrcp.pop %v263
    %v265 = vmul.f32 1.0, %v264
    %v266 = vmul.f32 %v265, 2.0
    %v267 = vsub.f32 %v266, 1.0
    %v268 = vmul.f32 %v265, %v221
    %270 = vrot.lane.b32.xlu0 %v267, 64
    %v271 = vpop.permute.xlu0 %270
    %v273 = vmul.f32 %v265, %v271
    %275 = vrot.lane.b32.xlu0 %v273, 32
    %v276 = vpop.permute.xlu0 %275
    %v278 = vadd.f32 %v268, %v276
    %v279 = vtanh.pop %v278
    %281 = vrot.lane.b32.xlu0 %v279, 64
    %v282 = vpop.permute.xlu0 %281
    %v284 = vmul.f32 %v265, %v282
    %vm285 = vcmp.gt.s32.totalorder %v158, 1
    %v286 = vsel %vm285, %v278, %v221
    %v287 = vsel %vm285, %v284, %v222
    %289 = vset.pattern.permute.xlu0 96
    %290 = vperm.xlu0 %289, %v287
    %v291 = vpop.permute.xlu0 %290
    %v293 = vmul.f32 %v291, %v162
    %294 = vset.pattern.permute.xlu0 97
    %295 = vperm.xlu0 %294, %v287
    %v296 = vpop.permute.xlu0 %295
    %v298 = vmul.f32 %v296, %v167
    %299 = vset.pattern.permute.xlu0 98
    %300 = vperm.xlu0 %299, %v287
    %v301 = vpop.permute.xlu0 %300
    %v303 = vmul.f32 %v301, %v172
    %304 = vset.pattern.permute.xlu0 99
    %305 = vperm.xlu0 %304, %v287
    %v306 = vpop.permute.xlu0 %305
    %v308 = vmul.f32 %v306, %v177
    %309 = vset.pattern.permute.xlu0 100
    %310 = vperm.xlu0 %309, %v287
    %v311 = vpop.permute.xlu0 %310
    %v313 = vmul.f32 %v311, %v182
    %314 = vset.pattern.permute.xlu0 101
    %315 = vperm.xlu0 %314, %v287
    %v316 = vpop.permute.xlu0 %315
    %v318 = vmul.f32 %v316, %v187
    %v319 = vadd.f32 %v293, %v298
    %v320 = vadd.f32 %v303, %v308
    %v321 = vadd.f32 %v313, %v318
    %v322 = vadd.f32 %v319, %v320
    %v323 = vadd.f32 %v322, %v321
    %v324 = vadd.f32 %v142, %v323
    %v325 = vxor.u32 %v324, 2147483648
    %v326 = vmul.f32 %v325, 1.442695
    %v327 = vpow.pop %v326
    %v328 = vadd.f32 %v327, 1.0
    %v329 = vrcp.pop %v328
    %v330 = vmul.f32 1.0, %v329
    %v331 = vmul.f32 %v330, 2.0
    %v332 = vsub.f32 %v331, 1.0
    %v333 = vmul.f32 %v330, %v286
    %335 = vrot.lane.b32.xlu0 %v332, 64
    %v336 = vpop.permute.xlu0 %335
    %v338 = vmul.f32 %v330, %v336
    %340 = vrot.lane.b32.xlu0 %v338, 32
    %v341 = vpop.permute.xlu0 %340
    %v343 = vadd.f32 %v333, %v341
    %v344 = vtanh.pop %v343
    %346 = vrot.lane.b32.xlu0 %v344, 64
    %v347 = vpop.permute.xlu0 %346
    %v349 = vmul.f32 %v330, %v347
    %vm350 = vcmp.gt.s32.totalorder %v158, 2
    %v351 = vsel %vm350, %v343, %v286
    %v352 = vsel %vm350, %v349, %v287
    %354 = vset.pattern.permute.xlu0 96
    %355 = vperm.xlu0 %354, %v352
    %v356 = vpop.permute.xlu0 %355
    %v358 = vmul.f32 %v356, %v162
    %359 = vset.pattern.permute.xlu0 97
    %360 = vperm.xlu0 %359, %v352
    %v361 = vpop.permute.xlu0 %360
    %v363 = vmul.f32 %v361, %v167
    %364 = vset.pattern.permute.xlu0 98
    %365 = vperm.xlu0 %364, %v352
    %v366 = vpop.permute.xlu0 %365
    %v368 = vmul.f32 %v366, %v172
    %369 = vset.pattern.permute.xlu0 99
    %370 = vperm.xlu0 %369, %v352
    %v371 = vpop.permute.xlu0 %370
    %v373 = vmul.f32 %v371, %v177
    %374 = vset.pattern.permute.xlu0 100
    %375 = vperm.xlu0 %374, %v352
    %v376 = vpop.permute.xlu0 %375
    %v378 = vmul.f32 %v376, %v182
    %379 = vset.pattern.permute.xlu0 101
    %380 = vperm.xlu0 %379, %v352
    %v381 = vpop.permute.xlu0 %380
    %v383 = vmul.f32 %v381, %v187
    %v384 = vadd.f32 %v358, %v363
    %v385 = vadd.f32 %v368, %v373
    %v386 = vadd.f32 %v378, %v383
    %v387 = vadd.f32 %v384, %v385
    %v388 = vadd.f32 %v387, %v386
    %v389 = vadd.f32 %v147, %v388
    %v390 = vxor.u32 %v389, 2147483648
    %v391 = vmul.f32 %v390, 1.442695
    %v392 = vpow.pop %v391
    %v393 = vadd.f32 %v392, 1.0
    %v394 = vrcp.pop %v393
    %v395 = vmul.f32 1.0, %v394
    %v396 = vmul.f32 %v395, 2.0
    %v397 = vsub.f32 %v396, 1.0
    %v398 = vmul.f32 %v395, %v351
    %400 = vrot.lane.b32.xlu0 %v397, 64
    %v401 = vpop.permute.xlu0 %400
    %v403 = vmul.f32 %v395, %v401
    %405 = vrot.lane.b32.xlu0 %v403, 32
    %v406 = vpop.permute.xlu0 %405
    %v408 = vadd.f32 %v398, %v406
    %v409 = vtanh.pop %v408
    %411 = vrot.lane.b32.xlu0 %v409, 64
    %v412 = vpop.permute.xlu0 %411
    %v414 = vmul.f32 %v395, %v412
    %vm415 = vcmp.gt.s32.totalorder %v158, 3
    %v416 = vsel %vm415, %v408, %v351
    %v417 = vsel %vm415, %v414, %v352
    %419 = vset.pattern.permute.xlu0 96
    %420 = vperm.xlu0 %419, %v417
    %v421 = vpop.permute.xlu0 %420
    %v423 = vmul.f32 %v421, %v162
    %424 = vset.pattern.permute.xlu0 97
    %425 = vperm.xlu0 %424, %v417
    %v426 = vpop.permute.xlu0 %425
    %v428 = vmul.f32 %v426, %v167
    %429 = vset.pattern.permute.xlu0 98
    %430 = vperm.xlu0 %429, %v417
    %v431 = vpop.permute.xlu0 %430
    %v433 = vmul.f32 %v431, %v172
    %434 = vset.pattern.permute.xlu0 99
    %435 = vperm.xlu0 %434, %v417
    %v436 = vpop.permute.xlu0 %435
    %v438 = vmul.f32 %v436, %v177
    %439 = vset.pattern.permute.xlu0 100
    %440 = vperm.xlu0 %439, %v417
    %v441 = vpop.permute.xlu0 %440
    %v443 = vmul.f32 %v441, %v182
    %444 = vset.pattern.permute.xlu0 101
    %445 = vperm.xlu0 %444, %v417
    %v446 = vpop.permute.xlu0 %445
    %v448 = vmul.f32 %v446, %v187
    %v449 = vadd.f32 %v423, %v428
    %v450 = vadd.f32 %v433, %v438
    %v451 = vadd.f32 %v443, %v448
    %v452 = vadd.f32 %v449, %v450
    %v453 = vadd.f32 %v452, %v451
    %v454 = vadd.f32 %v152, %v453
    %v455 = vxor.u32 %v454, 2147483648
    %v456 = vmul.f32 %v455, 1.442695
    %v457 = vpow.pop %v456
    %v458 = vadd.f32 %v457, 1.0
    %v459 = vrcp.pop %v458
    %v460 = vmul.f32 1.0, %v459
    %v461 = vmul.f32 %v460, 2.0
    %v462 = vsub.f32 %v461, 1.0
    %v463 = vmul.f32 %v460, %v416
    %465 = vrot.lane.b32.xlu0 %v462, 64
    %v466 = vpop.permute.xlu0 %465
    %v468 = vmul.f32 %v460, %v466
    %470 = vrot.lane.b32.xlu0 %v468, 32
    %v471 = vpop.permute.xlu0 %470
    %v473 = vadd.f32 %v463, %v471
    %v474 = vtanh.pop %v473
    %476 = vrot.lane.b32.xlu0 %v474, 64
    %v477 = vpop.permute.xlu0 %476
    %v479 = vmul.f32 %v460, %v477
    %vm480 = vcmp.gt.s32.totalorder %v158, 4
    %v481 = vsel %vm480, %v479, %v417
    %v482 = vld [vmem:[#allocation3 + $0x18] sm:$0xff]
    %v483 = vld [vmem:[#allocation3 + $0x20] sm:$0xff]
    %v484 = vld [vmem:[#allocation3 + $0x28] sm:$0xff]
    %v485 = vld [vmem:[#allocation3 + $0x50] sm:$0x1]
    %v486 = vld [vmem:[#allocation3 + $0x30] sm:$0x1]
    %v487 = vld [vmem:[#allocation3 + $0x31] sm:$0x1]
    %v488 = vld [vmem:[#allocation3 + $0x32] sm:$0x1]
    %v489 = vld [vmem:[#allocation3 + $0x33] sm:$0x1]
    %v490 = vld [vmem:[#allocation3 + $0x34] sm:$0x1]
    %v491 = vld [vmem:[#allocation3 + $0x35] sm:$0x1]
    %v492 = vld [vmem:[#allocation3 + $0x36] sm:$0x1]
    %v493 = vld [vmem:[#allocation3 + $0x37] sm:$0x1]
    %v494 = vld [vmem:[#allocation3 + $0x38] sm:$0x1]
    %v495 = vld [vmem:[#allocation3 + $0x39] sm:$0x1]
    %v496 = vld [vmem:[#allocation3 + $0x3a] sm:$0x1]
    %v497 = vld [vmem:[#allocation3 + $0x3b] sm:$0x1]
    %v498 = vld [vmem:[#allocation3 + $0x3c] sm:$0x1]
    %v499 = vld [vmem:[#allocation3 + $0x3d] sm:$0x1]
    %v500 = vld [vmem:[#allocation3 + $0x3e] sm:$0x1]
    %v501 = vld [vmem:[#allocation3 + $0x3f] sm:$0x1]
    %v502 = vld [vmem:[#allocation3 + $0x40] sm:$0x1]
    %v503 = vld [vmem:[#allocation3 + $0x41] sm:$0x1]
    %v504 = vld [vmem:[#allocation3 + $0x42] sm:$0x1]
    %v505 = vld [vmem:[#allocation3 + $0x43] sm:$0x1]
    %v506 = vld [vmem:[#allocation3 + $0x44] sm:$0x1]
    %v507 = vld [vmem:[#allocation3 + $0x45] sm:$0x1]
    %v508 = vld [vmem:[#allocation3 + $0x46] sm:$0x1]
    %v509 = vld [vmem:[#allocation3 + $0x47] sm:$0x1]
    %v510 = vld [vmem:[#allocation3 + $0x48] sm:$0x1]
    %v511 = vld [vmem:[#allocation3 + $0x49] sm:$0x1]
    %v512 = vld [vmem:[#allocation3 + $0x4a] sm:$0x1]
    %v513 = vld [vmem:[#allocation3 + $0x4b] sm:$0x1]
    %v514 = vld [vmem:[#allocation3 + $0x4c] sm:$0x1]
    %v515 = vld [vmem:[#allocation3 + $0x4d] sm:$0x1]
    %v516 = vld [vmem:[#allocation3 + $0x4e] sm:$0x1]
    %v517 = vld [vmem:[#allocation3 + $0x4f] sm:$0x1]
    %v518 = vld [vmem:[%s0] sm:$0xff]
    %520 = vrot.lane.b32.xlu0 %v481, 32
    %v521 = vpop.permute.xlu0 %520
    %v522 = vsel %vm49, %v521, 0
    %524 = vmatprep.subr.mxu0 0.0
    %525 = vmatpush1.msra.mxu0 %v484
    %526 = vmatprep.subr.mxu0 0.0
    %527 = vmatpush1.msra.mxu0 0.0
    %528 = vmatprep.subr.mxu0 0.0
    %529 = vmatpush1.msra.mxu0 0.0
    %530 = vmatprep.subr.mxu0 0.0
    %531 = vmatpush1.msra.mxu0 0.0
    %532 = vmatprep.subr.mxu0 0.0
    %533 = vmatpush1.msra.mxu0 0.0
    %534 = vmatprep.subr.mxu0 0.0
    %535 = vmatpush1.msra.mxu0 0.0
    %536 = vmatprep.subr.mxu0 0.0
    %537 = vmatpush1.msra.mxu0 0.0
    %538 = vmatprep.subr.mxu0 0.0
    %539 = vmatpush1.msra.mxu0 0.0
    %540 = vmatprep.subr.mxu0 0.0
    %541 = vmatpush1.msra.mxu0 0.0
    %542 = vmatprep.subr.mxu0 0.0
    %543 = vmatpush1.msra.mxu0 0.0
    %544 = vmatprep.subr.mxu0 0.0
    %545 = vmatpush1.msra.mxu0 0.0
    %546 = vmatprep.subr.mxu0 0.0
    %547 = vmatpush1.msra.mxu0 0.0
    %548 = vmatprep.subr.mxu0 0.0
    %549 = vmatpush1.msra.mxu0 0.0
    %550 = vmatprep.subr.mxu0 0.0
    %551 = vmatpush1.msra.mxu0 0.0
    %552 = vmatprep.subr.mxu0 0.0
    %553 = vmatpush1.msra.mxu0 0.0
    %554 = vmatprep.subr.mxu0 0.0
    %555 = vmatpush1.msra.mxu0 0.0
    %556 = vmatprep.subr.mxu0 0.0
    %557 = vmatpush1.msra.mxu0 0.0
    %558 = vmatprep.subr.mxu0 0.0
    %559 = vmatpush1.msra.mxu0 0.0
    %560 = vmatprep.subr.mxu0 0.0
    %561 = vmatpush1.msra.mxu0 0.0
    %562 = vmatprep.subr.mxu0 0.0
    %563 = vmatpush1.msra.mxu0 0.0
    %564 = vmatprep.subr.mxu0 0.0
    %565 = vmatpush1.msra.mxu0 0.0
    %566 = vmatprep.subr.mxu0 0.0
    %567 = vmatpush1.msra.mxu0 0.0
    %568 = vmatprep.subr.mxu0 0.0
    %569 = vmatpush1.msra.mxu0 0.0
    %570 = vmatprep.subr.mxu0 0.0
    %571 = vmatpush1.msra.mxu0 0.0
    %572 = vmatprep.subr.mxu0 0.0
    %573 = vmatpush1.msra.mxu0 0.0
    %574 = vmatprep.subr.mxu0 0.0
    %575 = vmatpush1.msra.mxu0 0.0
    %576 = vmatprep.subr.mxu0 0.0
    %577 = vmatpush1.msra.mxu0 0.0
    %578 = vmatprep.subr.mxu0 0.0
    %579 = vmatpush1.msra.mxu0 0.0
    %580 = vmatprep.subr.mxu0 0.0
    %581 = vmatpush1.msra.mxu0 0.0
    %582 = vmatprep.subr.mxu0 0.0
    %583 = vmatpush1.msra.mxu0 0.0
    %584 = vmatprep.subr.mxu0 0.0
    %585 = vmatpush1.msra.mxu0 0.0
    %586 = vmatprep.subr.mxu0 0.0
    %587 = vmatpush1.msra.mxu0 0.0
    %588 = vmatprep.mubr.f32.mxu0 0.0
    %589 = vmatmul.mubr.f32.gmra.mrb[0].mxu0 %v522
    %v590 = vpop.f32.mrb[0].mxu0
    %v591 = vadd.f32 0.0, %v590
    %v592 = vpop.f32.mrb[0].mxu0
    %593 = vdwg.mxu0
    %vm594 = vcmask 130048
    %v596 = vsel %vm594, %v518, 0
    %598 = vmatprep.subr.mxu0 0.0
    %599 = vmatpush1.msra.mxu0 %v482
    %600 = vmatprep.subr.mxu0 0.0
    %601 = vmatpush1.msra.mxu0 %v483
    %602 = vmatprep.subr.mxu0 0.0
    %603 = vmatpush1.msra.mxu0 0.0
    %604 = vmatprep.subr.mxu0 0.0
    %605 = vmatpush1.msra.mxu0 0.0
    %606 = vmatprep.subr.mxu0 0.0
    %607 = vmatpush1.msra.mxu0 0.0
    %608 = vmatprep.subr.mxu0 0.0
    %609 = vmatpush1.msra.mxu0 0.0
    %610 = vmatprep.subr.mxu0 0.0
    %611 = vmatpush1.msra.mxu0 0.0
    %612 = vmatprep.subr.mxu0 0.0
    %613 = vmatpush1.msra.mxu0 0.0
    %614 = vmatprep.subr.mxu0 0.0
    %615 = vmatpush1.msra.mxu0 0.0
    %616 = vmatprep.subr.mxu0 0.0
    %617 = vmatpush1.msra.mxu0 0.0
    %618 = vmatprep.subr.mxu0 0.0
    %619 = vmatpush1.msra.mxu0 0.0
    %620 = vmatprep.subr.mxu0 0.0
    %621 = vmatpush1.msra.mxu0 0.0
    %622 = vmatprep.subr.mxu0 0.0
    %623 = vmatpush1.msra.mxu0 0.0
    %624 = vmatprep.subr.mxu0 0.0
    %625 = vmatpush1.msra.mxu0 0.0
    %626 = vmatprep.subr.mxu0 0.0
    %627 = vmatpush1.msra.mxu0 0.0
    %628 = vmatprep.subr.mxu0 0.0
    %629 = vmatpush1.msra.mxu0 0.0
    %630 = vmatprep.subr.mxu0 0.0
    %631 = vmatpush1.msra.mxu0 0.0
    %632 = vmatprep.subr.mxu0 0.0
    %633 = vmatpush1.msra.mxu0 0.0
    %634 = vmatprep.subr.mxu0 0.0
    %635 = vmatpush1.msra.mxu0 0.0
    %636 = vmatprep.subr.mxu0 0.0
    %637 = vmatpush1.msra.mxu0 0.0
    %638 = vmatprep.subr.mxu0 0.0
    %639 = vmatpush1.msra.mxu0 0.0
    %640 = vmatprep.subr.mxu0 0.0
    %641 = vmatpush1.msra.mxu0 0.0
    %642 = vmatprep.subr.mxu0 0.0
    %643 = vmatpush1.msra.mxu0 0.0
    %644 = vmatprep.subr.mxu0 0.0
    %645 = vmatpush1.msra.mxu0 0.0
    %646 = vmatprep.subr.mxu0 0.0
    %647 = vmatpush1.msra.mxu0 0.0
    %648 = vmatprep.subr.mxu0 0.0
    %649 = vmatpush1.msra.mxu0 0.0
    %650 = vmatprep.subr.mxu0 0.0
    %651 = vmatpush1.msra.mxu0 0.0
    %652 = vmatprep.subr.mxu0 0.0
    %653 = vmatpush1.msra.mxu0 0.0
    %654 = vmatprep.subr.mxu0 0.0
    %655 = vmatpush1.msra.mxu0 0.0
    %656 = vmatprep.subr.mxu0 0.0
    %657 = vmatpush1.msra.mxu0 0.0
    %658 = vmatprep.subr.mxu0 0.0
    %659 = vmatpush1.msra.mxu0 0.0
    %660 = vmatprep.subr.mxu0 0.0
    %661 = vmatpush1.msra.mxu0 0.0
    %662 = vmatprep.mubr.f32.mxu0 0.0
    %663 = vmatmul.mubr.f32.gmra.mrb[0].mxu0 %v596
    %v664 = vpop.f32.mrb[0].mxu0
    %v665 = vadd.f32 %v591, %v664
    %v666 = vpop.f32.mrb[0].mxu0
    %667 = vdwg.mxu0
    %v668 = vlaneseq
    %v669 = vshrl.u32 %v668, 7
    %v670 = vsub.s32 0, %v669
    %v671 = vrot.slane %v485, %v670
    %v672 = vadd.f32 %v665, %v671
    %v673 = vmul.f32 %v486, 0.0
    %v674 = vmul.f32 %v487, 0.0
    %v675 = vmul.f32 %v488, 0.0
    %v676 = vmul.f32 %v489, 0.0
    %v677 = vmul.f32 %v490, 0.0
    %v678 = vmul.f32 %v491, 0.0
    %v679 = vmul.f32 %v492, 0.0
    %v680 = vmul.f32 %v493, 0.0
    %v681 = vmul.f32 %v494, 0.0
    %v682 = vmul.f32 %v495, 0.0
    %v683 = vmul.f32 %v496, 0.0
    %v684 = vmul.f32 %v497, 0.0
    %v685 = vmul.f32 %v498, 0.0
    %v686 = vmul.f32 %v499, 0.0
    %v687 = vmul.f32 %v500, 0.0
    %v688 = vmul.f32 %v501, 0.0
    %v689 = vmul.f32 %v502, 0.0
    %v690 = vmul.f32 %v503, 0.0
    %v691 = vmul.f32 %v504, 0.0
    %v692 = vmul.f32 %v505, 0.0
    %v693 = vmul.f32 %v506, 0.0
    %v694 = vmul.f32 %v507, 0.0
    %v695 = vmul.f32 %v508, 0.0
    %v696 = vmul.f32 %v509, 0.0
    %v697 = vmul.f32 %v510, 0.0
    %v698 = vmul.f32 %v511, 0.0
    %v699 = vmul.f32 %v512, 0.0
    %v700 = vmul.f32 %v513, 0.0
    %v701 = vmul.f32 %v514, 0.0
    %v702 = vmul.f32 %v515, 0.0
    %v703 = vmul.f32 %v516, 0.0
    %v704 = vmul.f32 %v517, 0.0
    %v705 = vadd.f32 %v673, %v674
    %v706 = vadd.f32 %v675, %v676
    %v707 = vadd.f32 %v677, %v678
    %v708 = vadd.f32 %v679, %v680
    %v709 = vadd.f32 %v681, %v682
    %v710 = vadd.f32 %v683, %v684
    %v711 = vadd.f32 %v685, %v686
    %v712 = vadd.f32 %v687, %v688
    %v713 = vadd.f32 %v689, %v690
    %v714 = vadd.f32 %v691, %v692
    %v715 = vadd.f32 %v693, %v694
    %v716 = vadd.f32 %v695, %v696
    %v717 = vadd.f32 %v697, %v698
    %v718 = vadd.f32 %v699, %v700
    %v719 = vadd.f32 %v701, %v702
    %v720 = vadd.f32 %v703, %v704
    %v721 = vadd.f32 %v705, %v706
    %v722 = vadd.f32 %v707, %v708
    %v723 = vadd.f32 %v709, %v710
    %v724 = vadd.f32 %v711, %v712
    %v725 = vadd.f32 %v713, %v714
    %v726 = vadd.f32 %v715, %v716
    %v727 = vadd.f32 %v717, %v718
    %v728 = vadd.f32 %v719, %v720
    %v729 = vadd.f32 %v721, %v722
    %v730 = vadd.f32 %v723, %v724
    %v731 = vadd.f32 %v725, %v726
    %v732 = vadd.f32 %v727, %v728
    %v733 = vadd.f32 %v729, %v730
    %v734 = vadd.f32 %v731, %v732
    %v735 = vadd.f32 %v733, %v734
    %v736 = vadd.f32 %v672, %v735
    %v737 = vxor.u32 %v736, 2147483648
    %v738 = vmul.f32 %v737, 1.442695
    %v739 = vpow.pop %v738
    %v740 = vadd.f32 %v739, 1.0
    %v741 = vrcp.pop %v740
    %v742 = vmul.f32 1.0, %v741
    %v743 = vmul.f32 %v742, 2.0
    %v744 = vsub.f32 %v743, 1.0
    %v745 = vmul.f32 %v742, 0.0
    %747 = vrot.lane.b32.xlu0 %v744, 64
    %v748 = vpop.permute.xlu0 %747
    %v750 = vmul.f32 %v742, %v748
    %752 = vrot.lane.b32.xlu0 %v750, 32
    %v753 = vpop.permute.xlu0 %752
    %v755 = vadd.f32 %v745, %v753
    %v756 = vtanh.pop %v755
    %758 = vrot.lane.b32.xlu0 %v756, 64
    %v759 = vpop.permute.xlu0 %758
    %v761 = vmul.f32 %v742, %v759
    %763 = vrot.lane.b32.xlu0 %v761, 32
    %v764 = vpop.permute.xlu0 %763
    %vm766 = vcmask 253952
    %767 = vst.msk [vmem:[#allocation2] sm:$0x1] %vm766, %v764
    %768 = vset.pattern.permute.xlu0 96
    %769 = vperm.xlu0 %768, %v761
    %v770 = vpop.permute.xlu0 %769
    %v772 = vmul.f32 %v770, %v486
    %773 = vset.pattern.permute.xlu0 97
    %774 = vperm.xlu0 %773, %v761
    %v775 = vpop.permute.xlu0 %774
    %v777 = vmul.f32 %v775, %v487
    %778 = vset.pattern.permute.xlu0 98
    %779 = vperm.xlu0 %778, %v761
    %v780 = vpop.permute.xlu0 %779
    %v782 = vmul.f32 %v780, %v488
    %783 = vset.pattern.permute.xlu0 99
    %784 = vperm.xlu0 %783, %v761
    %v785 = vpop.permute.xlu0 %784
    %v787 = vmul.f32 %v785, %v489
    %788 = vset.pattern.permute.xlu0 100
    %789 = vperm.xlu0 %788, %v761
    %v790 = vpop.permute.xlu0 %789
    %v792 = vmul.f32 %v790, %v490
    %793 = vset.pattern.permute.xlu0 101
    %794 = vperm.xlu0 %793, %v761
    %v795 = vpop.permute.xlu0 %794
    %v797 = vmul.f32 %v795, %v491
    %798 = vset.pattern.permute.xlu0 102
    %799 = vperm.xlu0 %798, %v761
    %v800 = vpop.permute.xlu0 %799
    %v802 = vmul.f32 %v800, %v492
    %803 = vset.pattern.permute.xlu0 103
    %804 = vperm.xlu0 %803, %v761
    %v805 = vpop.permute.xlu0 %804
    %v807 = vmul.f32 %v805, %v493
    %808 = vset.pattern.permute.xlu0 104
    %809 = vperm.xlu0 %808, %v761
    %v810 = vpop.permute.xlu0 %809
    %v812 = vmul.f32 %v810, %v494
    %813 = vset.pattern.permute.xlu0 105
    %814 = vperm.xlu0 %813, %v761
    %v815 = vpop.permute.xlu0 %814
    %v817 = vmul.f32 %v815, %v495
    %818 = vset.pattern.permute.xlu0 106
    %819 = vperm.xlu0 %818, %v761
    %v820 = vpop.permute.xlu0 %819
    %v822 = vmul.f32 %v820, %v496
    %823 = vset.pattern.permute.xlu0 107
    %824 = vperm.xlu0 %823, %v761
    %v825 = vpop.permute.xlu0 %824
    %v827 = vmul.f32 %v825, %v497
    %828 = vset.pattern.permute.xlu0 108
    %829 = vperm.xlu0 %828, %v761
    %v830 = vpop.permute.xlu0 %829
    %v832 = vmul.f32 %v830, %v498
    %833 = vset.pattern.permute.xlu0 109
    %834 = vperm.xlu0 %833, %v761
    %v835 = vpop.permute.xlu0 %834
    %v837 = vmul.f32 %v835, %v499
    %838 = vset.pattern.permute.xlu0 110
    %839 = vperm.xlu0 %838, %v761
    %v840 = vpop.permute.xlu0 %839
    %v842 = vmul.f32 %v840, %v500
    %843 = vset.pattern.permute.xlu0 111
    %844 = vperm.xlu0 %843, %v761
    %v845 = vpop.permute.xlu0 %844
    %v847 = vmul.f32 %v845, %v501
    %848 = vset.pattern.permute.xlu0 112
    %849 = vperm.xlu0 %848, %v761
    %v850 = vpop.permute.xlu0 %849
    %v852 = vmul.f32 %v850, %v502
    %853 = vset.pattern.permute.xlu0 113
    %854 = vperm.xlu0 %853, %v761
    %v855 = vpop.permute.xlu0 %854
    %v857 = vmul.f32 %v855, %v503
    %858 = vset.pattern.permute.xlu0 114
    %859 = vperm.xlu0 %858, %v761
    %v860 = vpop.permute.xlu0 %859
    %v862 = vmul.f32 %v860, %v504
    %863 = vset.pattern.permute.xlu0 115
    %864 = vperm.xlu0 %863, %v761
    %v865 = vpop.permute.xlu0 %864
    %v867 = vmul.f32 %v865, %v505
    %868 = vset.pattern.permute.xlu0 116
    %869 = vperm.xlu0 %868, %v761
    %v870 = vpop.permute.xlu0 %869
    %v872 = vmul.f32 %v870, %v506
    %873 = vset.pattern.permute.xlu0 117
    %874 = vperm.xlu0 %873, %v761
    %v875 = vpop.permute.xlu0 %874
    %v877 = vmul.f32 %v875, %v507
    %878 = vset.pattern.permute.xlu0 118
    %879 = vperm.xlu0 %878, %v761
    %v880 = vpop.permute.xlu0 %879
    %v882 = vmul.f32 %v880, %v508
    %883 = vset.pattern.permute.xlu0 119
    %884 = vperm.xlu0 %883, %v761
    %v885 = vpop.permute.xlu0 %884
    %v887 = vmul.f32 %v885, %v509
    %888 = vset.pattern.permute.xlu0 120
    %889 = vperm.xlu0 %888, %v761
    %v890 = vpop.permute.xlu0 %889
    %v892 = vmul.f32 %v890, %v510
    %893 = vset.pattern.permute.xlu0 121
    %894 = vperm.xlu0 %893, %v761
    %v895 = vpop.permute.xlu0 %894
    %v897 = vmul.f32 %v895, %v511
    %898 = vset.pattern.permute.xlu0 122
    %899 = vperm.xlu0 %898, %v761
    %v900 = vpop.permute.xlu0 %899
    %v902 = vmul.f32 %v900, %v512
    %903 = vset.pattern.permute.xlu0 123
    %904 = vperm.xlu0 %903, %v761
    %v905 = vpop.permute.xlu0 %904
    %v907 = vmul.f32 %v905, %v513
    %908 = vset.pattern.permute.xlu0 124
    %909 = vperm.xlu0 %908, %v761
    %v910 = vpop.permute.xlu0 %909
    %v912 = vmul.f32 %v910, %v514
    %913 = vset.pattern.permute.xlu0 125
    %914 = vperm.xlu0 %913, %v761
    %v915 = vpop.permute.xlu0 %914
    %v917 = vmul.f32 %v915, %v515
    %918 = vset.pattern.permute.xlu0 126
    %919 = vperm.xlu0 %918, %v761
    %v920 = vpop.permute.xlu0 %919
    %v922 = vmul.f32 %v920, %v516
    %923 = vset.pattern.permute.xlu0 127
    %924 = vperm.xlu0 %923, %v761
    %v925 = vpop.permute.xlu0 %924
    %v927 = vmul.f32 %v925, %v517
    %v928 = vadd.f32 %v772, %v777
    %v929 = vadd.f32 %v782, %v787
    %v930 = vadd.f32 %v792, %v797
    %v931 = vadd.f32 %v802, %v807
    %v932 = vadd.f32 %v812, %v817
    %v933 = vadd.f32 %v822, %v827
    %v934 = vadd.f32 %v832, %v837
    %v935 = vadd.f32 %v842, %v847
    %v936 = vadd.f32 %v852, %v857
    %v937 = vadd.f32 %v862, %v867
    %v938 = vadd.f32 %v872, %v877
    %v939 = vadd.f32 %v882, %v887
    %v940 = vadd.f32 %v892, %v897
    %v941 = vadd.f32 %v902, %v907
    %v942 = vadd.f32 %v912, %v917
    %v943 = vadd.f32 %v922, %v927
    %v944 = vadd.f32 %v928, %v929
    %v945 = vadd.f32 %v930, %v931
    %v946 = vadd.f32 %v932, %v933
    %v947 = vadd.f32 %v934, %v935
    %v948 = vadd.f32 %v936, %v937
    %v949 = vadd.f32 %v938, %v939
    %v950 = vadd.f32 %v940, %v941
    %v951 = vadd.f32 %v942, %v943
    %v952 = vadd.f32 %v944, %v945
    %v953 = vadd.f32 %v946, %v947
    %v954 = vadd.f32 %v948, %v949
    %v955 = vadd.f32 %v950, %v951
    %v956 = vadd.f32 %v952, %v953
    %v957 = vadd.f32 %v954, %v955
    %v958 = vadd.f32 %v956, %v957
    %v960 = vrot.slane %v958, 7
    %v962 = vadd.f32 %v672, %v960
    %v963 = vxor.u32 %v962, 2147483648
    %v964 = vmul.f32 %v963, 1.442695
    %v965 = vpow.pop %v964
    %v966 = vadd.f32 %v965, 1.0
    %v967 = vrcp.pop %v966
    %v968 = vmul.f32 1.0, %v967
    %v969 = vmul.f32 %v968, 2.0
    %v970 = vsub.f32 %v969, 1.0
    %v972 = vrot.slane %v755, 7
    %v974 = vmul.f32 %v968, %v972
    %976 = vrot.lane.b32.xlu0 %v970, 64
    %v977 = vpop.permute.xlu0 %976
    %v979 = vmul.f32 %v968, %v977
    %981 = vrot.lane.b32.xlu0 %v979, 32
    %v982 = vpop.permute.xlu0 %981
    %v984 = vadd.f32 %v974, %v982
    %v985 = vtanh.pop %v984
    %987 = vrot.lane.b32.xlu0 %v985, 64
    %v988 = vpop.permute.xlu0 %987
    %v990 = vmul.f32 %v968, %v988
    %992 = vrot.lane.b32.xlu0 %v990, 32
    %v993 = vpop.permute.xlu0 %992
    %vm995 = vcmask 254977
    %996 = vst.msk [vmem:[#allocation2] sm:$0x2] %vm995, %v993
    %997 = vset.pattern.permute.xlu0 96
    %998 = vperm.xlu0 %997, %v990
    %v999 = vpop.permute.xlu0 %998
    %v1002 = vrot.slane %v486, 7
    %v1004 = vmul.f32 %v999, %v1002
    %1005 = vset.pattern.permute.xlu0 97
    %1006 = vperm.xlu0 %1005, %v990
    %v1007 = vpop.permute.xlu0 %1006
    %v1010 = vrot.slane %v487, 7
    %v1012 = vmul.f32 %v1007, %v1010
    %1013 = vset.pattern.permute.xlu0 98
    %1014 = vperm.xlu0 %1013, %v990
    %v1015 = vpop.permute.xlu0 %1014
    %v1018 = vrot.slane %v488, 7
    %v1020 = vmul.f32 %v1015, %v1018
    %1021 = vset.pattern.permute.xlu0 99
    %1022 = vperm.xlu0 %1021, %v990
    %v1023 = vpop.permute.xlu0 %1022
    %v1026 = vrot.slane %v489, 7
    %v1028 = vmul.f32 %v1023, %v1026
    %1029 = vset.pattern.permute.xlu0 100
    %1030 = vperm.xlu0 %1029, %v990
    %v1031 = vpop.permute.xlu0 %1030
    %v1034 = vrot.slane %v490, 7
    %v1036 = vmul.f32 %v1031, %v1034
    %1037 = vset.pattern.permute.xlu0 101
    %1038 = vperm.xlu0 %1037, %v990
    %v1039 = vpop.permute.xlu0 %1038
    %v1042 = vrot.slane %v491, 7
    %v1044 = vmul.f32 %v1039, %v1042
    %1045 = vset.pattern.permute.xlu0 102
    %1046 = vperm.xlu0 %1045, %v990
    %v1047 = vpop.permute.xlu0 %1046
    %v1050 = vrot.slane %v492, 7
    %v1052 = vmul.f32 %v1047, %v1050
    %1053 = vset.pattern.permute.xlu0 103
    %1054 = vperm.xlu0 %1053, %v990
    %v1055 = vpop.permute.xlu0 %1054
    %v1058 = vrot.slane %v493, 7
    %v1060 = vmul.f32 %v1055, %v1058
    %1061 = vset.pattern.permute.xlu0 104
    %1062 = vperm.xlu0 %1061, %v990
    %v1063 = vpop.permute.xlu0 %1062
    %v1066 = vrot.slane %v494, 7
    %v1068 = vmul.f32 %v1063, %v1066
    %1069 = vset.pattern.permute.xlu0 105
    %1070 = vperm.xlu0 %1069, %v990
    %v1071 = vpop.permute.xlu0 %1070
    %v1074 = vrot.slane %v495, 7
    %v1076 = vmul.f32 %v1071, %v1074
    %1077 = vset.pattern.permute.xlu0 106
    %1078 = vperm.xlu0 %1077, %v990
    %v1079 = vpop.permute.xlu0 %1078
    %v1082 = vrot.slane %v496, 7
    %v1084 = vmul.f32 %v1079, %v1082
    %1085 = vset.pattern.permute.xlu0 107
    %1086 = vperm.xlu0 %1085, %v990
    %v1087 = vpop.permute.xlu0 %1086
    %v1090 = vrot.slane %v497, 7
    %v1092 = vmul.f32 %v1087, %v1090
    %1093 = vset.pattern.permute.xlu0 108
    %1094 = vperm.xlu0 %1093, %v990
    %v1095 = vpop.permute.xlu0 %1094
    %v1098 = vrot.slane %v498, 7
    %v1100 = vmul.f32 %v1095, %v1098
    %1101 = vset.pattern.permute.xlu0 109
    %1102 = vperm.xlu0 %1101, %v990
    %v1103 = vpop.permute.xlu0 %1102
    %v1106 = vrot.slane %v499, 7
    %v1108 = vmul.f32 %v1103, %v1106
    %1109 = vset.pattern.permute.xlu0 110
    %1110 = vperm.xlu0 %1109, %v990
    %v1111 = vpop.permute.xlu0 %1110
    %v1114 = vrot.slane %v500, 7
    %v1116 = vmul.f32 %v1111, %v1114
    %1117 = vset.pattern.permute.xlu0 111
    %1118 = vperm.xlu0 %1117, %v990
    %v1119 = vpop.permute.xlu0 %1118
    %v1122 = vrot.slane %v501, 7
    %v1124 = vmul.f32 %v1119, %v1122
    %1125 = vset.pattern.permute.xlu0 112
    %1126 = vperm.xlu0 %1125, %v990
    %v1127 = vpop.permute.xlu0 %1126
    %v1130 = vrot.slane %v502, 7
    %v1132 = vmul.f32 %v1127, %v1130
    %1133 = vset.pattern.permute.xlu0 113
    %1134 = vperm.xlu0 %1133, %v990
    %v1135 = vpop.permute.xlu0 %1134
    %v1138 = vrot.slane %v503, 7
    %v1140 = vmul.f32 %v1135, %v1138
    %1141 = vset.pattern.permute.xlu0 114
    %1142 = vperm.xlu0 %1141, %v990
    %v1143 = vpop.permute.xlu0 %1142
    %v1146 = vrot.slane %v504, 7
    %v1148 = vmul.f32 %v1143, %v1146
    %1149 = vset.pattern.permute.xlu0 115
    %1150 = vperm.xlu0 %1149, %v990
    %v1151 = vpop.permute.xlu0 %1150
    %v1154 = vrot.slane %v505, 7
    %v1156 = vmul.f32 %v1151, %v1154
    %1157 = vset.pattern.permute.xlu0 116
    %1158 = vperm.xlu0 %1157, %v990
    %v1159 = vpop.permute.xlu0 %1158
    %v1162 = vrot.slane %v506, 7
    %v1164 = vmul.f32 %v1159, %v1162
    %1165 = vset.pattern.permute.xlu0 117
    %1166 = vperm.xlu0 %1165, %v990
    %v1167 = vpop.permute.xlu0 %1166
    %v1170 = vrot.slane %v507, 7
    %v1172 = vmul.f32 %v1167, %v1170
    %1173 = vset.pattern.permute.xlu0 118
    %1174 = vperm.xlu0 %1173, %v990
    %v1175 = vpop.permute.xlu0 %1174
    %v1178 = vrot.slane %v508, 7
    %v1180 = vmul.f32 %v1175, %v1178
    %1181 = vset.pattern.permute.xlu0 119
    %1182 = vperm.xlu0 %1181, %v990
    %v1183 = vpop.permute.xlu0 %1182
    %v1186 = vrot.slane %v509, 7
    %v1188 = vmul.f32 %v1183, %v1186
    %1189 = vset.pattern.permute.xlu0 120
    %1190 = vperm.xlu0 %1189, %v990
    %v1191 = vpop.permute.xlu0 %1190
    %v1194 = vrot.slane %v510, 7
    %v1196 = vmul.f32 %v1191, %v1194
    %1197 = vset.pattern.permute.xlu0 121
    %1198 = vperm.xlu0 %1197, %v990
    %v1199 = vpop.permute.xlu0 %1198
    %v1202 = vrot.slane %v511, 7
    %v1204 = vmul.f32 %v1199, %v1202
    %1205 = vset.pattern.permute.xlu0 122
    %1206 = vperm.xlu0 %1205, %v990
    %v1207 = vpop.permute.xlu0 %1206
    %v1210 = vrot.slane %v512, 7
    %v1212 = vmul.f32 %v1207, %v1210
    %1213 = vset.pattern.permute.xlu0 123
    %1214 = vperm.xlu0 %1213, %v990
    %v1215 = vpop.permute.xlu0 %1214
    %v1218 = vrot.slane %v513, 7
    %v1220 = vmul.f32 %v1215, %v1218
    %1221 = vset.pattern.permute.xlu0 124
    %1222 = vperm.xlu0 %1221, %v990
    %v1223 = vpop.permute.xlu0 %1222
    %v1226 = vrot.slane %v514, 7
    %v1228 = vmul.f32 %v1223, %v1226
    %1229 = vset.pattern.permute.xlu0 125
    %1230 = vperm.xlu0 %1229, %v990
    %v1231 = vpop.permute.xlu0 %1230
    %v1234 = vrot.slane %v515, 7
    %v1236 = vmul.f32 %v1231, %v1234
    %1237 = vset.pattern.permute.xlu0 126
    %1238 = vperm.xlu0 %1237, %v990
    %v1239 = vpop.permute.xlu0 %1238
    %v1242 = vrot.slane %v516, 7
    %v1244 = vmul.f32 %v1239, %v1242
    %1245 = vset.pattern.permute.xlu0 127
    %1246 = vperm.xlu0 %1245, %v990
    %v1247 = vpop.permute.xlu0 %1246
    %v1250 = vrot.slane %v517, 7
    %v1252 = vmul.f32 %v1247, %v1250
    %v1253 = vadd.f32 %v1004, %v1012
    %v1254 = vadd.f32 %v1020, %v1028
    %v1255 = vadd.f32 %v1036, %v1044
    %v1256 = vadd.f32 %v1052, %v1060
    %v1257 = vadd.f32 %v1068, %v1076
    %v1258 = vadd.f32 %v1084, %v1092
    %v1259 = vadd.f32 %v1100, %v1108
    %v1260 = vadd.f32 %v1116, %v1124
    %v1261 = vadd.f32 %v1132, %v1140
    %v1262 = vadd.f32 %v1148, %v1156
    %v1263 = vadd.f32 %v1164, %v1172
    %v1264 = vadd.f32 %v1180, %v1188
    %v1265 = vadd.f32 %v1196, %v1204
    %v1266 = vadd.f32 %v1212, %v1220
    %v1267 = vadd.f32 %v1228, %v1236
    %v1268 = vadd.f32 %v1244, %v1252
    %v1269 = vadd.f32 %v1253, %v1254
    %v1270 = vadd.f32 %v1255, %v1256
    %v1271 = vadd.f32 %v1257, %v1258
    %v1272 = vadd.f32 %v1259, %v1260
    %v1273 = vadd.f32 %v1261, %v1262
    %v1274 = vadd.f32 %v1263, %v1264
    %v1275 = vadd.f32 %v1265, %v1266
    %v1276 = vadd.f32 %v1267, %v1268
    %v1277 = vadd.f32 %v1269, %v1270
    %v1278 = vadd.f32 %v1271, %v1272
    %v1279 = vadd.f32 %v1273, %v1274
    %v1280 = vadd.f32 %v1275, %v1276
    %v1281 = vadd.f32 %v1277, %v1278
    %v1282 = vadd.f32 %v1279, %v1280
    %v1283 = vadd.f32 %v1281, %v1282
    %v1285 = vrot.slane %v1283, 7
    %v1287 = vadd.f32 %v672, %v1285
    %v1288 = vxor.u32 %v1287, 2147483648
    %v1289 = vmul.f32 %v1288, 1.442695
    %v1290 = vpow.pop %v1289
    %v1291 = vadd.f32 %v1290, 1.0
    %v1292 = vrcp.pop %v1291
    %v1293 = vmul.f32 1.0, %v1292
    %v1294 = vmul.f32 %v1293, 2.0
    %v1295 = vsub.f32 %v1294, 1.0
    %v1297 = vrot.slane %v984, 7
    %v1299 = vmul.f32 %v1293, %v1297
    %1301 = vrot.lane.b32.xlu0 %v1295, 64
    %v1302 = vpop.permute.xlu0 %1301
    %v1304 = vmul.f32 %v1293, %v1302
    %1306 = vrot.lane.b32.xlu0 %v1304, 32
    %v1307 = vpop.permute.xlu0 %1306
    %v1309 = vadd.f32 %v1299, %v1307
    %v1310 = vtanh.pop %v1309
    %1312 = vrot.lane.b32.xlu0 %v1310, 64
    %v1313 = vpop.permute.xlu0 %1312
    %v1315 = vmul.f32 %v1293, %v1313
    %1317 = vrot.lane.b32.xlu0 %v1315, 32
    %v1318 = vpop.permute.xlu0 %1317
    %vm1320 = vcmask 256002
    %1321 = vst.msk [vmem:[#allocation2] sm:$0x4] %vm1320, %v1318
    %1322 = vset.pattern.permute.xlu0 96
    %1323 = vperm.xlu0 %1322, %v1315
    %v1324 = vpop.permute.xlu0 %1323
    %v1326 = vrot.slane %v486, 6
    %v1328 = vmul.f32 %v1324, %v1326
    %1329 = vset.pattern.permute.xlu0 97
    %1330 = vperm.xlu0 %1329, %v1315
    %v1331 = vpop.permute.xlu0 %1330
    %v1333 = vrot.slane %v487, 6
    %v1335 = vmul.f32 %v1331, %v1333
    %1336 = vset.pattern.permute.xlu0 98
    %1337 = vperm.xlu0 %1336, %v1315
    %v1338 = vpop.permute.xlu0 %1337
    %v1340 = vrot.slane %v488, 6
    %v1342 = vmul.f32 %v1338, %v1340
    %1343 = vset.pattern.permute.xlu0 99
    %1344 = vperm.xlu0 %1343, %v1315
    %v1345 = vpop.permute.xlu0 %1344
    %v1347 = vrot.slane %v489, 6
    %v1349 = vmul.f32 %v1345, %v1347
    %1350 = vset.pattern.permute.xlu0 100
    %1351 = vperm.xlu0 %1350, %v1315
    %v1352 = vpop.permute.xlu0 %1351
    %v1354 = vrot.slane %v490, 6
    %v1356 = vmul.f32 %v1352, %v1354
    %1357 = vset.pattern.permute.xlu0 101
    %1358 = vperm.xlu0 %1357, %v1315
    %v1359 = vpop.permute.xlu0 %1358
    %v1361 = vrot.slane %v491, 6
    %v1363 = vmul.f32 %v1359, %v1361
    %1364 = vset.pattern.permute.xlu0 102
    %1365 = vperm.xlu0 %1364, %v1315
    %v1366 = vpop.permute.xlu0 %1365
    %v1368 = vrot.slane %v492, 6
    %v1370 = vmul.f32 %v1366, %v1368
    %1371 = vset.pattern.permute.xlu0 103
    %1372 = vperm.xlu0 %1371, %v1315
    %v1373 = vpop.permute.xlu0 %1372
    %v1375 = vrot.slane %v493, 6
    %v1377 = vmul.f32 %v1373, %v1375
    %1378 = vset.pattern.permute.xlu0 104
    %1379 = vperm.xlu0 %1378, %v1315
    %v1380 = vpop.permute.xlu0 %1379
    %v1382 = vrot.slane %v494, 6
    %v1384 = vmul.f32 %v1380, %v1382
    %1385 = vset.pattern.permute.xlu0 105
    %1386 = vperm.xlu0 %1385, %v1315
    %v1387 = vpop.permute.xlu0 %1386
    %v1389 = vrot.slane %v495, 6
    %v1391 = vmul.f32 %v1387, %v1389
    %1392 = vset.pattern.permute.xlu0 106
    %1393 = vperm.xlu0 %1392, %v1315
    %v1394 = vpop.permute.xlu0 %1393
    %v1396 = vrot.slane %v496, 6
    %v1398 = vmul.f32 %v1394, %v1396
    %1399 = vset.pattern.permute.xlu0 107
    %1400 = vperm.xlu0 %1399, %v1315
    %v1401 = vpop.permute.xlu0 %1400
    %v1403 = vrot.slane %v497, 6
    %v1405 = vmul.f32 %v1401, %v1403
    %1406 = vset.pattern.permute.xlu0 108
    %1407 = vperm.xlu0 %1406, %v1315
    %v1408 = vpop.permute.xlu0 %1407
    %v1410 = vrot.slane %v498, 6
    %v1412 = vmul.f32 %v1408, %v1410
    %1413 = vset.pattern.permute.xlu0 109
    %1414 = vperm.xlu0 %1413, %v1315
    %v1415 = vpop.permute.xlu0 %1414
    %v1417 = vrot.slane %v499, 6
    %v1419 = vmul.f32 %v1415, %v1417
    %1420 = vset.pattern.permute.xlu0 110
    %1421 = vperm.xlu0 %1420, %v1315
    %v1422 = vpop.permute.xlu0 %1421
    %v1424 = vrot.slane %v500, 6
    %v1426 = vmul.f32 %v1422, %v1424
    %1427 = vset.pattern.permute.xlu0 111
    %1428 = vperm.xlu0 %1427, %v1315
    %v1429 = vpop.permute.xlu0 %1428
    %v1431 = vrot.slane %v501, 6
    %v1433 = vmul.f32 %v1429, %v1431
    %1434 = vset.pattern.permute.xlu0 112
    %1435 = vperm.xlu0 %1434, %v1315
    %v1436 = vpop.permute.xlu0 %1435
    %v1438 = vrot.slane %v502, 6
    %v1440 = vmul.f32 %v1436, %v1438
    %1441 = vset.pattern.permute.xlu0 113
    %1442 = vperm.xlu0 %1441, %v1315
    %v1443 = vpop.permute.xlu0 %1442
    %v1445 = vrot.slane %v503, 6
    %v1447 = vmul.f32 %v1443, %v1445
    %1448 = vset.pattern.permute.xlu0 114
    %1449 = vperm.xlu0 %1448, %v1315
    %v1450 = vpop.permute.xlu0 %1449
    %v1452 = vrot.slane %v504, 6
    %v1454 = vmul.f32 %v1450, %v1452
    %1455 = vset.pattern.permute.xlu0 115
    %1456 = vperm.xlu0 %1455, %v1315
    %v1457 = vpop.permute.xlu0 %1456
    %v1459 = vrot.slane %v505, 6
    %v1461 = vmul.f32 %v1457, %v1459
    %1462 = vset.pattern.permute.xlu0 116
    %1463 = vperm.xlu0 %1462, %v1315
    %v1464 = vpop.permute.xlu0 %1463
    %v1466 = vrot.slane %v506, 6
    %v1468 = vmul.f32 %v1464, %v1466
    %1469 = vset.pattern.permute.xlu0 117
    %1470 = vperm.xlu0 %1469, %v1315
    %v1471 = vpop.permute.xlu0 %1470
    %v1473 = vrot.slane %v507, 6
    %v1475 = vmul.f32 %v1471, %v1473
    %1476 = vset.pattern.permute.xlu0 118
    %1477 = vperm.xlu0 %1476, %v1315
    %v1478 = vpop.permute.xlu0 %1477
    %v1480 = vrot.slane %v508, 6
    %v1482 = vmul.f32 %v1478, %v1480
    %1483 = vset.pattern.permute.xlu0 119
    %1484 = vperm.xlu0 %1483, %v1315
    %v1485 = vpop.permute.xlu0 %1484
    %v1487 = vrot.slane %v509, 6
    %v1489 = vmul.f32 %v1485, %v1487
    %1490 = vset.pattern.permute.xlu0 120
    %1491 = vperm.xlu0 %1490, %v1315
    %v1492 = vpop.permute.xlu0 %1491
    %v1494 = vrot.slane %v510, 6
    %v1496 = vmul.f32 %v1492, %v1494
    %1497 = vset.pattern.permute.xlu0 121
    %1498 = vperm.xlu0 %1497, %v1315
    %v1499 = vpop.permute.xlu0 %1498
    %v1501 = vrot.slane %v511, 6
    %v1503 = vmul.f32 %v1499, %v1501
    %1504 = vset.pattern.permute.xlu0 122
    %1505 = vperm.xlu0 %1504, %v1315
    %v1506 = vpop.permute.xlu0 %1505
    %v1508 = vrot.slane %v512, 6
    %v1510 = vmul.f32 %v1506, %v1508
    %1511 = vset.pattern.permute.xlu0 123
    %1512 = vperm.xlu0 %1511, %v1315
    %v1513 = vpop.permute.xlu0 %1512
    %v1515 = vrot.slane %v513, 6
    %v1517 = vmul.f32 %v1513, %v1515
    %1518 = vset.pattern.permute.xlu0 124
    %1519 = vperm.xlu0 %1518, %v1315
    %v1520 = vpop.permute.xlu0 %1519
    %v1522 = vrot.slane %v514, 6
    %v1524 = vmul.f32 %v1520, %v1522
    %1525 = vset.pattern.permute.xlu0 125
    %1526 = vperm.xlu0 %1525, %v1315
    %v1527 = vpop.permute.xlu0 %1526
    %v1529 = vrot.slane %v515, 6
    %v1531 = vmul.f32 %v1527, %v1529
    %1532 = vset.pattern.permute.xlu0 126
    %1533 = vperm.xlu0 %1532, %v1315
    %v1534 = vpop.permute.xlu0 %1533
    %v1536 = vrot.slane %v516, 6
    %v1538 = vmul.f32 %v1534, %v1536
    %1539 = vset.pattern.permute.xlu0 127
    %1540 = vperm.xlu0 %1539, %v1315
    %v1541 = vpop.permute.xlu0 %1540
    %v1543 = vrot.slane %v517, 6
    %v1545 = vmul.f32 %v1541, %v1543
    %v1546 = vadd.f32 %v1328, %v1335
    %v1547 = vadd.f32 %v1342, %v1349
    %v1548 = vadd.f32 %v1356, %v1363
    %v1549 = vadd.f32 %v1370, %v1377
    %v1550 = vadd.f32 %v1384, %v1391
    %v1551 = vadd.f32 %v1398, %v1405
    %v1552 = vadd.f32 %v1412, %v1419
    %v1553 = vadd.f32 %v1426, %v1433
    %v1554 = vadd.f32 %v1440, %v1447
    %v1555 = vadd.f32 %v1454, %v1461
    %v1556 = vadd.f32 %v1468, %v1475
    %v1557 = vadd.f32 %v1482, %v1489
    %v1558 = vadd.f32 %v1496, %v1503
    %v1559 = vadd.f32 %v1510, %v1517
    %v1560 = vadd.f32 %v1524, %v1531
    %v1561 = vadd.f32 %v1538, %v1545
    %v1562 = vadd.f32 %v1546, %v1547
    %v1563 = vadd.f32 %v1548, %v1549
    %v1564 = vadd.f32 %v1550, %v1551
    %v1565 = vadd.f32 %v1552, %v1553
    %v1566 = vadd.f32 %v1554, %v1555
    %v1567 = vadd.f32 %v1556, %v1557
    %v1568 = vadd.f32 %v1558, %v1559
    %v1569 = vadd.f32 %v1560, %v1561
    %v1570 = vadd.f32 %v1562, %v1563
    %v1571 = vadd.f32 %v1564, %v1565
    %v1572 = vadd.f32 %v1566, %v1567
    %v1573 = vadd.f32 %v1568, %v1569
    %v1574 = vadd.f32 %v1570, %v1571
    %v1575 = vadd.f32 %v1572, %v1573
    %v1576 = vadd.f32 %v1574, %v1575
    %v1578 = vrot.slane %v1576, 7
    %v1580 = vadd.f32 %v672, %v1578
    %v1581 = vxor.u32 %v1580, 2147483648
    %v1582 = vmul.f32 %v1581, 1.442695
    %v1583 = vpow.pop %v1582
    %v1584 = vadd.f32 %v1583, 1.0
    %v1585 = vrcp.pop %v1584
    %v1586 = vmul.f32 1.0, %v1585
    %v1587 = vmul.f32 %v1586, 2.0
    %v1588 = vsub.f32 %v1587, 1.0
    %v1590 = vrot.slane %v1309, 7
    %v1592 = vmul.f32 %v1586, %v1590
    %1594 = vrot.lane.b32.xlu0 %v1588, 64
    %v1595 = vpop.permute.xlu0 %1594
    %v1597 = vmul.f32 %v1586, %v1595
    %1599 = vrot.lane.b32.xlu0 %v1597, 32
    %v1600 = vpop.permute.xlu0 %1599
    %v1602 = vadd.f32 %v1592, %v1600
    %v1603 = vtanh.pop %v1602
    %1605 = vrot.lane.b32.xlu0 %v1603, 64
    %v1606 = vpop.permute.xlu0 %1605
    %v1608 = vmul.f32 %v1586, %v1606
    %1610 = vrot.lane.b32.xlu0 %v1608, 32
    %v1611 = vpop.permute.xlu0 %1610
    %vm1613 = vcmask 257027
    %1614 = vst.msk [vmem:[#allocation2] sm:$0x8] %vm1613, %v1611
    %1615 = vset.pattern.permute.xlu0 96
    %1616 = vperm.xlu0 %1615, %v1608
    %v1617 = vpop.permute.xlu0 %1616
    %v1619 = vrot.slane %v486, 5
    %v1621 = vmul.f32 %v1617, %v1619
    %1622 = vset.pattern.permute.xlu0 97
    %1623 = vperm.xlu0 %1622, %v1608
    %v1624 = vpop.permute.xlu0 %1623
    %v1626 = vrot.slane %v487, 5
    %v1628 = vmul.f32 %v1624, %v1626
    %1629 = vset.pattern.permute.xlu0 98
    %1630 = vperm.xlu0 %1629, %v1608
    %v1631 = vpop.permute.xlu0 %1630
    %v1633 = vrot.slane %v488, 5
    %v1635 = vmul.f32 %v1631, %v1633
    %1636 = vset.pattern.permute.xlu0 99
    %1637 = vperm.xlu0 %1636, %v1608
    %v1638 = vpop.permute.xlu0 %1637
    %v1640 = vrot.slane %v489, 5
    %v1642 = vmul.f32 %v1638, %v1640
    %1643 = vset.pattern.permute.xlu0 100
    %1644 = vperm.xlu0 %1643, %v1608
    %v1645 = vpop.permute.xlu0 %1644
    %v1647 = vrot.slane %v490, 5
    %v1649 = vmul.f32 %v1645, %v1647
    %1650 = vset.pattern.permute.xlu0 101
    %1651 = vperm.xlu0 %1650, %v1608
    %v1652 = vpop.permute.xlu0 %1651
    %v1654 = vrot.slane %v491, 5
    %v1656 = vmul.f32 %v1652, %v1654
    %1657 = vset.pattern.permute.xlu0 102
    %1658 = vperm.xlu0 %1657, %v1608
    %v1659 = vpop.permute.xlu0 %1658
    %v1661 = vrot.slane %v492, 5
    %v1663 = vmul.f32 %v1659, %v1661
    %1664 = vset.pattern.permute.xlu0 103
    %1665 = vperm.xlu0 %1664, %v1608
    %v1666 = vpop.permute.xlu0 %1665
    %v1668 = vrot.slane %v493, 5
    %v1670 = vmul.f32 %v1666, %v1668
    %1671 = vset.pattern.permute.xlu0 104
    %1672 = vperm.xlu0 %1671, %v1608
    %v1673 = vpop.permute.xlu0 %1672
    %v1675 = vrot.slane %v494, 5
    %v1677 = vmul.f32 %v1673, %v1675
    %1678 = vset.pattern.permute.xlu0 105
    %1679 = vperm.xlu0 %1678, %v1608
    %v1680 = vpop.permute.xlu0 %1679
    %v1682 = vrot.slane %v495, 5
    %v1684 = vmul.f32 %v1680, %v1682
    %1685 = vset.pattern.permute.xlu0 106
    %1686 = vperm.xlu0 %1685, %v1608
    %v1687 = vpop.permute.xlu0 %1686
    %v1689 = vrot.slane %v496, 5
    %v1691 = vmul.f32 %v1687, %v1689
    %1692 = vset.pattern.permute.xlu0 107
    %1693 = vperm.xlu0 %1692, %v1608
    %v1694 = vpop.permute.xlu0 %1693
    %v1696 = vrot.slane %v497, 5
    %v1698 = vmul.f32 %v1694, %v1696
    %1699 = vset.pattern.permute.xlu0 108
    %1700 = vperm.xlu0 %1699, %v1608
    %v1701 = vpop.permute.xlu0 %1700
    %v1703 = vrot.slane %v498, 5
    %v1705 = vmul.f32 %v1701, %v1703
    %1706 = vset.pattern.permute.xlu0 109
    %1707 = vperm.xlu0 %1706, %v1608
    %v1708 = vpop.permute.xlu0 %1707
    %v1710 = vrot.slane %v499, 5
    %v1712 = vmul.f32 %v1708, %v1710
    %1713 = vset.pattern.permute.xlu0 110
    %1714 = vperm.xlu0 %1713, %v1608
    %v1715 = vpop.permute.xlu0 %1714
    %v1717 = vrot.slane %v500, 5
    %v1719 = vmul.f32 %v1715, %v1717
    %1720 = vset.pattern.permute.xlu0 111
    %1721 = vperm.xlu0 %1720, %v1608
    %v1722 = vpop.permute.xlu0 %1721
    %v1724 = vrot.slane %v501, 5
    %v1726 = vmul.f32 %v1722, %v1724
    %1727 = vset.pattern.permute.xlu0 112
    %1728 = vperm.xlu0 %1727, %v1608
    %v1729 = vpop.permute.xlu0 %1728
    %v1731 = vrot.slane %v502, 5
    %v1733 = vmul.f32 %v1729, %v1731
    %1734 = vset.pattern.permute.xlu0 113
    %1735 = vperm.xlu0 %1734, %v1608
    %v1736 = vpop.permute.xlu0 %1735
    %v1738 = vrot.slane %v503, 5
    %v1740 = vmul.f32 %v1736, %v1738
    %1741 = vset.pattern.permute.xlu0 114
    %1742 = vperm.xlu0 %1741, %v1608
    %v1743 = vpop.permute.xlu0 %1742
    %v1745 = vrot.slane %v504, 5
    %v1747 = vmul.f32 %v1743, %v1745
    %1748 = vset.pattern.permute.xlu0 115
    %1749 = vperm.xlu0 %1748, %v1608
    %v1750 = vpop.permute.xlu0 %1749
    %v1752 = vrot.slane %v505, 5
    %v1754 = vmul.f32 %v1750, %v1752
    %1755 = vset.pattern.permute.xlu0 116
    %1756 = vperm.xlu0 %1755, %v1608
    %v1757 = vpop.permute.xlu0 %1756
    %v1759 = vrot.slane %v506, 5
    %v1761 = vmul.f32 %v1757, %v1759
    %1762 = vset.pattern.permute.xlu0 117
    %1763 = vperm.xlu0 %1762, %v1608
    %v1764 = vpop.permute.xlu0 %1763
    %v1766 = vrot.slane %v507, 5
    %v1768 = vmul.f32 %v1764, %v1766
    %1769 = vset.pattern.permute.xlu0 118
    %1770 = vperm.xlu0 %1769, %v1608
    %v1771 = vpop.permute.xlu0 %1770
    %v1773 = vrot.slane %v508, 5
    %v1775 = vmul.f32 %v1771, %v1773
    %1776 = vset.pattern.permute.xlu0 119
    %1777 = vperm.xlu0 %1776, %v1608
    %v1778 = vpop.permute.xlu0 %1777
    %v1780 = vrot.slane %v509, 5
    %v1782 = vmul.f32 %v1778, %v1780
    %1783 = vset.pattern.permute.xlu0 120
    %1784 = vperm.xlu0 %1783, %v1608
    %v1785 = vpop.permute.xlu0 %1784
    %v1787 = vrot.slane %v510, 5
    %v1789 = vmul.f32 %v1785, %v1787
    %1790 = vset.pattern.permute.xlu0 121
    %1791 = vperm.xlu0 %1790, %v1608
    %v1792 = vpop.permute.xlu0 %1791
    %v1794 = vrot.slane %v511, 5
    %v1796 = vmul.f32 %v1792, %v1794
    %1797 = vset.pattern.permute.xlu0 122
    %1798 = vperm.xlu0 %1797, %v1608
    %v1799 = vpop.permute.xlu0 %1798
    %v1801 = vrot.slane %v512, 5
    %v1803 = vmul.f32 %v1799, %v1801
    %1804 = vset.pattern.permute.xlu0 123
    %1805 = vperm.xlu0 %1804, %v1608
    %v1806 = vpop.permute.xlu0 %1805
    %v1808 = vrot.slane %v513, 5
    %v1810 = vmul.f32 %v1806, %v1808
    %1811 = vset.pattern.permute.xlu0 124
    %1812 = vperm.xlu0 %1811, %v1608
    %v1813 = vpop.permute.xlu0 %1812
    %v1815 = vrot.slane %v514, 5
    %v1817 = vmul.f32 %v1813, %v1815
    %1818 = vset.pattern.permute.xlu0 125
    %1819 = vperm.xlu0 %1818, %v1608
    %v1820 = vpop.permute.xlu0 %1819
    %v1822 = vrot.slane %v515, 5
    %v1824 = vmul.f32 %v1820, %v1822
    %1825 = vset.pattern.permute.xlu0 126
    %1826 = vperm.xlu0 %1825, %v1608
    %v1827 = vpop.permute.xlu0 %1826
    %v1829 = vrot.slane %v516, 5
    %v1831 = vmul.f32 %v1827, %v1829
    %1832 = vset.pattern.permute.xlu0 127
    %1833 = vperm.xlu0 %1832, %v1608
    %v1834 = vpop.permute.xlu0 %1833
    %v1836 = vrot.slane %v517, 5
    %v1838 = vmul.f32 %v1834, %v1836
    %v1839 = vadd.f32 %v1621, %v1628
    %v1840 = vadd.f32 %v1635, %v1642
    %v1841 = vadd.f32 %v1649, %v1656
    %v1842 = vadd.f32 %v1663, %v1670
    %v1843 = vadd.f32 %v1677, %v1684
    %v1844 = vadd.f32 %v1691, %v1698
    %v1845 = vadd.f32 %v1705, %v1712
    %v1846 = vadd.f32 %v1719, %v1726
    %v1847 = vadd.f32 %v1733, %v1740
    %v1848 = vadd.f32 %v1747, %v1754
    %v1849 = vadd.f32 %v1761, %v1768
    %v1850 = vadd.f32 %v1775, %v1782
    %v1851 = vadd.f32 %v1789, %v1796
    %v1852 = vadd.f32 %v1803, %v1810
    %v1853 = vadd.f32 %v1817, %v1824
    %v1854 = vadd.f32 %v1831, %v1838
    %v1855 = vadd.f32 %v1839, %v1840
    %v1856 = vadd.f32 %v1841, %v1842
    %v1857 = vadd.f32 %v1843, %v1844
    %v1858 = vadd.f32 %v1845, %v1846
    %v1859 = vadd.f32 %v1847, %v1848
    %v1860 = vadd.f32 %v1849, %v1850
    %v1861 = vadd.f32 %v1851, %v1852
    %v1862 = vadd.f32 %v1853, %v1854
    %v1863 = vadd.f32 %v1855, %v1856
    %v1864 = vadd.f32 %v1857, %v1858
    %v1865 = vadd.f32 %v1859, %v1860
    %v1866 = vadd.f32 %v1861, %v1862
    %v1867 = vadd.f32 %v1863, %v1864
    %v1868 = vadd.f32 %v1865, %v1866
    %v1869 = vadd.f32 %v1867, %v1868
    %v1871 = vrot.slane %v1869, 7
    %v1873 = vadd.f32 %v672, %v1871
    %v1874 = vxor.u32 %v1873, 2147483648
    %v1875 = vmul.f32 %v1874, 1.442695
    %v1876 = vpow.pop %v1875
    %v1877 = vadd.f32 %v1876, 1.0
    %v1878 = vrcp.pop %v1877
    %v1879 = vmul.f32 1.0, %v1878
    %v1880 = vmul.f32 %v1879, 2.0
    %v1881 = vsub.f32 %v1880, 1.0
    %v1883 = vrot.slane %v1602, 7
    %v1885 = vmul.f32 %v1879, %v1883
    %1887 = vrot.lane.b32.xlu0 %v1881, 64
    %v1888 = vpop.permute.xlu0 %1887
    %v1890 = vmul.f32 %v1879, %v1888
    %1892 = vrot.lane.b32.xlu0 %v1890, 32
    %v1893 = vpop.permute.xlu0 %1892
    %v1895 = vadd.f32 %v1885, %v1893
    %v1896 = vtanh.pop %v1895
    %1898 = vrot.lane.b32.xlu0 %v1896, 64
    %v1899 = vpop.permute.xlu0 %1898
    %v1901 = vmul.f32 %v1879, %v1899
    %1903 = vrot.lane.b32.xlu0 %v1901, 32
    %v1904 = vpop.permute.xlu0 %1903
    %vm1906 = vcmask 258052
    %1907 = vst.msk [vmem:[#allocation2] sm:$0x10] %vm1906, %v1904
    %1908 = vset.pattern.permute.xlu0 96
    %1909 = vperm.xlu0 %1908, %v1901
    %v1910 = vpop.permute.xlu0 %1909
    %v1912 = vrot.slane %v486, 4
    %v1914 = vmul.f32 %v1910, %v1912
    %1915 = vset.pattern.permute.xlu0 97
    %1916 = vperm.xlu0 %1915, %v1901
    %v1917 = vpop.permute.xlu0 %1916
    %v1919 = vrot.slane %v487, 4
    %v1921 = vmul.f32 %v1917, %v1919
    %1922 = vset.pattern.permute.xlu0 98
    %1923 = vperm.xlu0 %1922, %v1901
    %v1924 = vpop.permute.xlu0 %1923
    %v1926 = vrot.slane %v488, 4
    %v1928 = vmul.f32 %v1924, %v1926
    %1929 = vset.pattern.permute.xlu0 99
    %1930 = vperm.xlu0 %1929, %v1901
    %v1931 = vpop.permute.xlu0 %1930
    %v1933 = vrot.slane %v489, 4
    %v1935 = vmul.f32 %v1931, %v1933
    %1936 = vset.pattern.permute.xlu0 100
    %1937 = vperm.xlu0 %1936, %v1901
    %v1938 = vpop.permute.xlu0 %1937
    %v1940 = vrot.slane %v490, 4
    %v1942 = vmul.f32 %v1938, %v1940
    %1943 = vset.pattern.permute.xlu0 101
    %1944 = vperm.xlu0 %1943, %v1901
    %v1945 = vpop.permute.xlu0 %1944
    %v1947 = vrot.slane %v491, 4
    %v1949 = vmul.f32 %v1945, %v1947
    %1950 = vset.pattern.permute.xlu0 102
    %1951 = vperm.xlu0 %1950, %v1901
    %v1952 = vpop.permute.xlu0 %1951
    %v1954 = vrot.slane %v492, 4
    %v1956 = vmul.f32 %v1952, %v1954
    %1957 = vset.pattern.permute.xlu0 103
    %1958 = vperm.xlu0 %1957, %v1901
    %v1959 = vpop.permute.xlu0 %1958
    %v1961 = vrot.slane %v493, 4
    %v1963 = vmul.f32 %v1959, %v1961
    %1964 = vset.pattern.permute.xlu0 104
    %1965 = vperm.xlu0 %1964, %v1901
    %v1966 = vpop.permute.xlu0 %1965
    %v1968 = vrot.slane %v494, 4
    %v1970 = vmul.f32 %v1966, %v1968
    %1971 = vset.pattern.permute.xlu0 105
    %1972 = vperm.xlu0 %1971, %v1901
    %v1973 = vpop.permute.xlu0 %1972
    %v1975 = vrot.slane %v495, 4
    %v1977 = vmul.f32 %v1973, %v1975
    %1978 = vset.pattern.permute.xlu0 106
    %1979 = vperm.xlu0 %1978, %v1901
    %v1980 = vpop.permute.xlu0 %1979
    %v1982 = vrot.slane %v496, 4
    %v1984 = vmul.f32 %v1980, %v1982
    %1985 = vset.pattern.permute.xlu0 107
    %1986 = vperm.xlu0 %1985, %v1901
    %v1987 = vpop.permute.xlu0 %1986
    %v1989 = vrot.slane %v497, 4
    %v1991 = vmul.f32 %v1987, %v1989
    %1992 = vset.pattern.permute.xlu0 108
    %1993 = vperm.xlu0 %1992, %v1901
    %v1994 = vpop.permute.xlu0 %1993
    %v1996 = vrot.slane %v498, 4
    %v1998 = vmul.f32 %v1994, %v1996
    %1999 = vset.pattern.permute.xlu0 109
    %2000 = vperm.xlu0 %1999, %v1901
    %v2001 = vpop.permute.xlu0 %2000
    %v2003 = vrot.slane %v499, 4
    %v2005 = vmul.f32 %v2001, %v2003
    %2006 = vset.pattern.permute.xlu0 110
    %2007 = vperm.xlu0 %2006, %v1901
    %v2008 = vpop.permute.xlu0 %2007
    %v2010 = vrot.slane %v500, 4
    %v2012 = vmul.f32 %v2008, %v2010
    %2013 = vset.pattern.permute.xlu0 111
    %2014 = vperm.xlu0 %2013, %v1901
    %v2015 = vpop.permute.xlu0 %2014
    %v2017 = vrot.slane %v501, 4
    %v2019 = vmul.f32 %v2015, %v2017
    %2020 = vset.pattern.permute.xlu0 112
    %2021 = vperm.xlu0 %2020, %v1901
    %v2022 = vpop.permute.xlu0 %2021
    %v2024 = vrot.slane %v502, 4
    %v2026 = vmul.f32 %v2022, %v2024
    %2027 = vset.pattern.permute.xlu0 113
    %2028 = vperm.xlu0 %2027, %v1901
    %v2029 = vpop.permute.xlu0 %2028
    %v2031 = vrot.slane %v503, 4
    %v2033 = vmul.f32 %v2029, %v2031
    %2034 = vset.pattern.permute.xlu0 114
    %2035 = vperm.xlu0 %2034, %v1901
    %v2036 = vpop.permute.xlu0 %2035
    %v2038 = vrot.slane %v504, 4
    %v2040 = vmul.f32 %v2036, %v2038
    %2041 = vset.pattern.permute.xlu0 115
    %2042 = vperm.xlu0 %2041, %v1901
    %v2043 = vpop.permute.xlu0 %2042
    %v2045 = vrot.slane %v505, 4
    %v2047 = vmul.f32 %v2043, %v2045
    %2048 = vset.pattern.permute.xlu0 116
    %2049 = vperm.xlu0 %2048, %v1901
    %v2050 = vpop.permute.xlu0 %2049
    %v2052 = vrot.slane %v506, 4
    %v2054 = vmul.f32 %v2050, %v2052
    %2055 = vset.pattern.permute.xlu0 117
    %2056 = vperm.xlu0 %2055, %v1901
    %v2057 = vpop.permute.xlu0 %2056
    %v2059 = vrot.slane %v507, 4
    %v2061 = vmul.f32 %v2057, %v2059
    %2062 = vset.pattern.permute.xlu0 118
    %2063 = vperm.xlu0 %2062, %v1901
    %v2064 = vpop.permute.xlu0 %2063
    %v2066 = vrot.slane %v508, 4
    %v2068 = vmul.f32 %v2064, %v2066
    %2069 = vset.pattern.permute.xlu0 119
    %2070 = vperm.xlu0 %2069, %v1901
    %v2071 = vpop.permute.xlu0 %2070
    %v2073 = vrot.slane %v509, 4
    %v2075 = vmul.f32 %v2071, %v2073
    %2076 = vset.pattern.permute.xlu0 120
    %2077 = vperm.xlu0 %2076, %v1901
    %v2078 = vpop.permute.xlu0 %2077
    %v2080 = vrot.slane %v510, 4
    %v2082 = vmul.f32 %v2078, %v2080
    %2083 = vset.pattern.permute.xlu0 121
    %2084 = vperm.xlu0 %2083, %v1901
    %v2085 = vpop.permute.xlu0 %2084
    %v2087 = vrot.slane %v511, 4
    %v2089 = vmul.f32 %v2085, %v2087
    %2090 = vset.pattern.permute.xlu0 122
    %2091 = vperm.xlu0 %2090, %v1901
    %v2092 = vpop.permute.xlu0 %2091
    %v2094 = vrot.slane %v512, 4
    %v2096 = vmul.f32 %v2092, %v2094
    %2097 = vset.pattern.permute.xlu0 123
    %2098 = vperm.xlu0 %2097, %v1901
    %v2099 = vpop.permute.xlu0 %2098
    %v2101 = vrot.slane %v513, 4
    %v2103 = vmul.f32 %v2099, %v2101
    %2104 = vset.pattern.permute.xlu0 124
    %2105 = vperm.xlu0 %2104, %v1901
    %v2106 = vpop.permute.xlu0 %2105
    %v2108 = vrot.slane %v514, 4
    %v2110 = vmul.f32 %v2106, %v2108
    %2111 = vset.pattern.permute.xlu0 125
    %2112 = vperm.xlu0 %2111, %v1901
    %v2113 = vpop.permute.xlu0 %2112
    %v2115 = vrot.slane %v515, 4
    %v2117 = vmul.f32 %v2113, %v2115
    %2118 = vset.pattern.permute.xlu0 126
    %2119 = vperm.xlu0 %2118, %v1901
    %v2120 = vpop.permute.xlu0 %2119
    %v2122 = vrot.slane %v516, 4
    %v2124 = vmul.f32 %v2120, %v2122
    %2125 = vset.pattern.permute.xlu0 127
    %2126 = vperm.xlu0 %2125, %v1901
    %v2127 = vpop.permute.xlu0 %2126
    %v2129 = vrot.slane %v517, 4
    %v2131 = vmul.f32 %v2127, %v2129
    %v2132 = vadd.f32 %v1914, %v1921
    %v2133 = vadd.f32 %v1928, %v1935
    %v2134 = vadd.f32 %v1942, %v1949
    %v2135 = vadd.f32 %v1956, %v1963
    %v2136 = vadd.f32 %v1970, %v1977
    %v2137 = vadd.f32 %v1984, %v1991
    %v2138 = vadd.f32 %v1998, %v2005
    %v2139 = vadd.f32 %v2012, %v2019
    %v2140 = vadd.f32 %v2026, %v2033
    %v2141 = vadd.f32 %v2040, %v2047
    %v2142 = vadd.f32 %v2054, %v2061
    %v2143 = vadd.f32 %v2068, %v2075
    %v2144 = vadd.f32 %v2082, %v2089
    %v2145 = vadd.f32 %v2096, %v2103
    %v2146 = vadd.f32 %v2110, %v2117
    %v2147 = vadd.f32 %v2124, %v2131
    %v2148 = vadd.f32 %v2132, %v2133
    %v2149 = vadd.f32 %v2134, %v2135
    %v2150 = vadd.f32 %v2136, %v2137
    %v2151 = vadd.f32 %v2138, %v2139
    %v2152 = vadd.f32 %v2140, %v2141
    %v2153 = vadd.f32 %v2142, %v2143
    %v2154 = vadd.f32 %v2144, %v2145
    %v2155 = vadd.f32 %v2146, %v2147
    %v2156 = vadd.f32 %v2148, %v2149
    %v2157 = vadd.f32 %v2150, %v2151
    %v2158 = vadd.f32 %v2152, %v2153
    %v2159 = vadd.f32 %v2154, %v2155
    %v2160 = vadd.f32 %v2156, %v2157
    %v2161 = vadd.f32 %v2158, %v2159
    %v2162 = vadd.f32 %v2160, %v2161
    %v2164 = vrot.slane %v2162, 7
    %v2166 = vadd.f32 %v672, %v2164
    %v2167 = vxor.u32 %v2166, 2147483648
    %v2168 = vmul.f32 %v2167, 1.442695
    %v2169 = vpow.pop %v2168
    %v2170 = vadd.f32 %v2169, 1.0
    %v2171 = vrcp.pop %v2170
    %v2172 = vmul.f32 1.0, %v2171
    %v2173 = vmul.f32 %v2172, 2.0
    %v2174 = vsub.f32 %v2173, 1.0
    %v2176 = vrot.slane %v1895, 7
    %v2178 = vmul.f32 %v2172, %v2176
    %2180 = vrot.lane.b32.xlu0 %v2174, 64
    %v2181 = vpop.permute.xlu0 %2180
    %v2183 = vmul.f32 %v2172, %v2181
    %2185 = vrot.lane.b32.xlu0 %v2183, 32
    %v2186 = vpop.permute.xlu0 %2185
    %v2188 = vadd.f32 %v2178, %v2186
    %v2189 = vtanh.pop %v2188
    %2191 = vrot.lane.b32.xlu0 %v2189, 64
    %v2192 = vpop.permute.xlu0 %2191
    %v2194 = vmul.f32 %v2172, %v2192
    %2196 = vrot.lane.b32.xlu0 %v2194, 32
    %v2197 = vpop.permute.xlu0 %2196
    %vm2199 = vcmask 259077
    %2200 = vst.msk [vmem:[#allocation2] sm:$0x20] %vm2199, %v2197
    %2201 = vset.pattern.permute.xlu0 96
    %2202 = vperm.xlu0 %2201, %v2194
    %v2203 = vpop.permute.xlu0 %2202
    %v2205 = vrot.slane %v486, 3
    %v2207 = vmul.f32 %v2203, %v2205
    %2208 = vset.pattern.permute.xlu0 97
    %2209 = vperm.xlu0 %2208, %v2194
    %v2210 = vpop.permute.xlu0 %2209
    %v2212 = vrot.slane %v487, 3
    %v2214 = vmul.f32 %v2210, %v2212
    %2215 = vset.pattern.permute.xlu0 98
    %2216 = vperm.xlu0 %2215, %v2194
    %v2217 = vpop.permute.xlu0 %2216
    %v2219 = vrot.slane %v488, 3
    %v2221 = vmul.f32 %v2217, %v2219
    %2222 = vset.pattern.permute.xlu0 99
    %2223 = vperm.xlu0 %2222, %v2194
    %v2224 = vpop.permute.xlu0 %2223
    %v2226 = vrot.slane %v489, 3
    %v2228 = vmul.f32 %v2224, %v2226
    %2229 = vset.pattern.permute.xlu0 100
    %2230 = vperm.xlu0 %2229, %v2194
    %v2231 = vpop.permute.xlu0 %2230
    %v2233 = vrot.slane %v490, 3
    %v2235 = vmul.f32 %v2231, %v2233
    %2236 = vset.pattern.permute.xlu0 101
    %2237 = vperm.xlu0 %2236, %v2194
    %v2238 = vpop.permute.xlu0 %2237
    %v2240 = vrot.slane %v491, 3
    %v2242 = vmul.f32 %v2238, %v2240
    %2243 = vset.pattern.permute.xlu0 102
    %2244 = vperm.xlu0 %2243, %v2194
    %v2245 = vpop.permute.xlu0 %2244
    %v2247 = vrot.slane %v492, 3
    %v2249 = vmul.f32 %v2245, %v2247
    %2250 = vset.pattern.permute.xlu0 103
    %2251 = vperm.xlu0 %2250, %v2194
    %v2252 = vpop.permute.xlu0 %2251
    %v2254 = vrot.slane %v493, 3
    %v2256 = vmul.f32 %v2252, %v2254
    %2257 = vset.pattern.permute.xlu0 104
    %2258 = vperm.xlu0 %2257, %v2194
    %v2259 = vpop.permute.xlu0 %2258
    %v2261 = vrot.slane %v494, 3
    %v2263 = vmul.f32 %v2259, %v2261
    %2264 = vset.pattern.permute.xlu0 105
    %2265 = vperm.xlu0 %2264, %v2194
    %v2266 = vpop.permute.xlu0 %2265
    %v2268 = vrot.slane %v495, 3
    %v2270 = vmul.f32 %v2266, %v2268
    %2271 = vset.pattern.permute.xlu0 106
    %2272 = vperm.xlu0 %2271, %v2194
    %v2273 = vpop.permute.xlu0 %2272
    %v2275 = vrot.slane %v496, 3
    %v2277 = vmul.f32 %v2273, %v2275
    %2278 = vset.pattern.permute.xlu0 107
    %2279 = vperm.xlu0 %2278, %v2194
    %v2280 = vpop.permute.xlu0 %2279
    %v2282 = vrot.slane %v497, 3
    %v2284 = vmul.f32 %v2280, %v2282
    %2285 = vset.pattern.permute.xlu0 108
    %2286 = vperm.xlu0 %2285, %v2194
    %v2287 = vpop.permute.xlu0 %2286
    %v2289 = vrot.slane %v498, 3
    %v2291 = vmul.f32 %v2287, %v2289
    %2292 = vset.pattern.permute.xlu0 109
    %2293 = vperm.xlu0 %2292, %v2194
    %v2294 = vpop.permute.xlu0 %2293
    %v2296 = vrot.slane %v499, 3
    %v2298 = vmul.f32 %v2294, %v2296
    %2299 = vset.pattern.permute.xlu0 110
    %2300 = vperm.xlu0 %2299, %v2194
    %v2301 = vpop.permute.xlu0 %2300
    %v2303 = vrot.slane %v500, 3
    %v2305 = vmul.f32 %v2301, %v2303
    %2306 = vset.pattern.permute.xlu0 111
    %2307 = vperm.xlu0 %2306, %v2194
    %v2308 = vpop.permute.xlu0 %2307
    %v2310 = vrot.slane %v501, 3
    %v2312 = vmul.f32 %v2308, %v2310
    %2313 = vset.pattern.permute.xlu0 112
    %2314 = vperm.xlu0 %2313, %v2194
    %v2315 = vpop.permute.xlu0 %2314
    %v2317 = vrot.slane %v502, 3
    %v2319 = vmul.f32 %v2315, %v2317
    %2320 = vset.pattern.permute.xlu0 113
    %2321 = vperm.xlu0 %2320, %v2194
    %v2322 = vpop.permute.xlu0 %2321
    %v2324 = vrot.slane %v503, 3
    %v2326 = vmul.f32 %v2322, %v2324
    %2327 = vset.pattern.permute.xlu0 114
    %2328 = vperm.xlu0 %2327, %v2194
    %v2329 = vpop.permute.xlu0 %2328
    %v2331 = vrot.slane %v504, 3
    %v2333 = vmul.f32 %v2329, %v2331
    %2334 = vset.pattern.permute.xlu0 115
    %2335 = vperm.xlu0 %2334, %v2194
    %v2336 = vpop.permute.xlu0 %2335
    %v2338 = vrot.slane %v505, 3
    %v2340 = vmul.f32 %v2336, %v2338
    %2341 = vset.pattern.permute.xlu0 116
    %2342 = vperm.xlu0 %2341, %v2194
    %v2343 = vpop.permute.xlu0 %2342
    %v2345 = vrot.slane %v506, 3
    %v2347 = vmul.f32 %v2343, %v2345
    %2348 = vset.pattern.permute.xlu0 117
    %2349 = vperm.xlu0 %2348, %v2194
    %v2350 = vpop.permute.xlu0 %2349
    %v2352 = vrot.slane %v507, 3
    %v2354 = vmul.f32 %v2350, %v2352
    %2355 = vset.pattern.permute.xlu0 118
    %2356 = vperm.xlu0 %2355, %v2194
    %v2357 = vpop.permute.xlu0 %2356
    %v2359 = vrot.slane %v508, 3
    %v2361 = vmul.f32 %v2357, %v2359
    %2362 = vset.pattern.permute.xlu0 119
    %2363 = vperm.xlu0 %2362, %v2194
    %v2364 = vpop.permute.xlu0 %2363
    %v2366 = vrot.slane %v509, 3
    %v2368 = vmul.f32 %v2364, %v2366
    %2369 = vset.pattern.permute.xlu0 120
    %2370 = vperm.xlu0 %2369, %v2194
    %v2371 = vpop.permute.xlu0 %2370
    %v2373 = vrot.slane %v510, 3
    %v2375 = vmul.f32 %v2371, %v2373
    %2376 = vset.pattern.permute.xlu0 121
    %2377 = vperm.xlu0 %2376, %v2194
    %v2378 = vpop.permute.xlu0 %2377
    %v2380 = vrot.slane %v511, 3
    %v2382 = vmul.f32 %v2378, %v2380
    %2383 = vset.pattern.permute.xlu0 122
    %2384 = vperm.xlu0 %2383, %v2194
    %v2385 = vpop.permute.xlu0 %2384
    %v2387 = vrot.slane %v512, 3
    %v2389 = vmul.f32 %v2385, %v2387
    %2390 = vset.pattern.permute.xlu0 123
    %2391 = vperm.xlu0 %2390, %v2194
    %v2392 = vpop.permute.xlu0 %2391
    %v2394 = vrot.slane %v513, 3
    %v2396 = vmul.f32 %v2392, %v2394
    %2397 = vset.pattern.permute.xlu0 124
    %2398 = vperm.xlu0 %2397, %v2194
    %v2399 = vpop.permute.xlu0 %2398
    %v2401 = vrot.slane %v514, 3
    %v2403 = vmul.f32 %v2399, %v2401
    %2404 = vset.pattern.permute.xlu0 125
    %2405 = vperm.xlu0 %2404, %v2194
    %v2406 = vpop.permute.xlu0 %2405
    %v2408 = vrot.slane %v515, 3
    %v2410 = vmul.f32 %v2406, %v2408
    %2411 = vset.pattern.permute.xlu0 126
    %2412 = vperm.xlu0 %2411, %v2194
    %v2413 = vpop.permute.xlu0 %2412
    %v2415 = vrot.slane %v516, 3
    %v2417 = vmul.f32 %v2413, %v2415
    %2418 = vset.pattern.permute.xlu0 127
    %2419 = vperm.xlu0 %2418, %v2194
    %v2420 = vpop.permute.xlu0 %2419
    %v2422 = vrot.slane %v517, 3
    %v2424 = vmul.f32 %v2420, %v2422
    %v2425 = vadd.f32 %v2207, %v2214
    %v2426 = vadd.f32 %v2221, %v2228
    %v2427 = vadd.f32 %v2235, %v2242
    %v2428 = vadd.f32 %v2249, %v2256
    %v2429 = vadd.f32 %v2263, %v2270
    %v2430 = vadd.f32 %v2277, %v2284
    %v2431 = vadd.f32 %v2291, %v2298
    %v2432 = vadd.f32 %v2305, %v2312
    %v2433 = vadd.f32 %v2319, %v2326
    %v2434 = vadd.f32 %v2333, %v2340
    %v2435 = vadd.f32 %v2347, %v2354
    %v2436 = vadd.f32 %v2361, %v2368
    %v2437 = vadd.f32 %v2375, %v2382
    %v2438 = vadd.f32 %v2389, %v2396
    %v2439 = vadd.f32 %v2403, %v2410
    %v2440 = vadd.f32 %v2417, %v2424
    %v2441 = vadd.f32 %v2425, %v2426
    %v2442 = vadd.f32 %v2427, %v2428
    %v2443 = vadd.f32 %v2429, %v2430
    %v2444 = vadd.f32 %v2431, %v2432
    %v2445 = vadd.f32 %v2433, %v2434
    %v2446 = vadd.f32 %v2435, %v2436
    %v2447 = vadd.f32 %v2437, %v2438
    %v2448 = vadd.f32 %v2439, %v2440
    %v2449 = vadd.f32 %v2441, %v2442
    %v2450 = vadd.f32 %v2443, %v2444
    %v2451 = vadd.f32 %v2445, %v2446
    %v2452 = vadd.f32 %v2447, %v2448
    %v2453 = vadd.f32 %v2449, %v2450
    %v2454 = vadd.f32 %v2451, %v2452
    %v2455 = vadd.f32 %v2453, %v2454
    %v2457 = vrot.slane %v2455, 7
    %v2459 = vadd.f32 %v672, %v2457
    %v2460 = vxor.u32 %v2459, 2147483648
    %v2461 = vmul.f32 %v2460, 1.442695
    %v2462 = vpow.pop %v2461
    %v2463 = vadd.f32 %v2462, 1.0
    %v2464 = vrcp.pop %v2463
    %v2465 = vmul.f32 1.0, %v2464
    %v2466 = vmul.f32 %v2465, 2.0
    %v2467 = vsub.f32 %v2466, 1.0
    %v2469 = vrot.slane %v2188, 7
    %v2471 = vmul.f32 %v2465, %v2469
    %2473 = vrot.lane.b32.xlu0 %v2467, 64
    %v2474 = vpop.permute.xlu0 %2473
    %v2476 = vmul.f32 %v2465, %v2474
    %2478 = vrot.lane.b32.xlu0 %v2476, 32
    %v2479 = vpop.permute.xlu0 %2478
    %v2481 = vadd.f32 %v2471, %v2479
    %v2482 = vtanh.pop %v2481
    %2484 = vrot.lane.b32.xlu0 %v2482, 64
    %v2485 = vpop.permute.xlu0 %2484
    %v2487 = vmul.f32 %v2465, %v2485
    %2489 = vrot.lane.b32.xlu0 %v2487, 32
    %v2490 = vpop.permute.xlu0 %2489
    %vm2492 = vcmask 260102
    %2493 = vst.msk [vmem:[#allocation2] sm:$0x40] %vm2492, %v2490
    %2494 = vset.pattern.permute.xlu0 96
    %2495 = vperm.xlu0 %2494, %v2487
    %v2496 = vpop.permute.xlu0 %2495
    %v2498 = vrot.slane %v486, 2
    %v2500 = vmul.f32 %v2496, %v2498
    %2501 = vset.pattern.permute.xlu0 97
    %2502 = vperm.xlu0 %2501, %v2487
    %v2503 = vpop.permute.xlu0 %2502
    %v2505 = vrot.slane %v487, 2
    %v2507 = vmul.f32 %v2503, %v2505
    %2508 = vset.pattern.permute.xlu0 98
    %2509 = vperm.xlu0 %2508, %v2487
    %v2510 = vpop.permute.xlu0 %2509
    %v2512 = vrot.slane %v488, 2
    %v2514 = vmul.f32 %v2510, %v2512
    %2515 = vset.pattern.permute.xlu0 99
    %2516 = vperm.xlu0 %2515, %v2487
    %v2517 = vpop.permute.xlu0 %2516
    %v2519 = vrot.slane %v489, 2
    %v2521 = vmul.f32 %v2517, %v2519
    %2522 = vset.pattern.permute.xlu0 100
    %2523 = vperm.xlu0 %2522, %v2487
    %v2524 = vpop.permute.xlu0 %2523
    %v2526 = vrot.slane %v490, 2
    %v2528 = vmul.f32 %v2524, %v2526
    %2529 = vset.pattern.permute.xlu0 101
    %2530 = vperm.xlu0 %2529, %v2487
    %v2531 = vpop.permute.xlu0 %2530
    %v2533 = vrot.slane %v491, 2
    %v2535 = vmul.f32 %v2531, %v2533
    %2536 = vset.pattern.permute.xlu0 102
    %2537 = vperm.xlu0 %2536, %v2487
    %v2538 = vpop.permute.xlu0 %2537
    %v2540 = vrot.slane %v492, 2
    %v2542 = vmul.f32 %v2538, %v2540
    %2543 = vset.pattern.permute.xlu0 103
    %2544 = vperm.xlu0 %2543, %v2487
    %v2545 = vpop.permute.xlu0 %2544
    %v2547 = vrot.slane %v493, 2
    %v2549 = vmul.f32 %v2545, %v2547
    %2550 = vset.pattern.permute.xlu0 104
    %2551 = vperm.xlu0 %2550, %v2487
    %v2552 = vpop.permute.xlu0 %2551
    %v2554 = vrot.slane %v494, 2
    %v2556 = vmul.f32 %v2552, %v2554
    %2557 = vset.pattern.permute.xlu0 105
    %2558 = vperm.xlu0 %2557, %v2487
    %v2559 = vpop.permute.xlu0 %2558
    %v2561 = vrot.slane %v495, 2
    %v2563 = vmul.f32 %v2559, %v2561
    %2564 = vset.pattern.permute.xlu0 106
    %2565 = vperm.xlu0 %2564, %v2487
    %v2566 = vpop.permute.xlu0 %2565
    %v2568 = vrot.slane %v496, 2
    %v2570 = vmul.f32 %v2566, %v2568
    %2571 = vset.pattern.permute.xlu0 107
    %2572 = vperm.xlu0 %2571, %v2487
    %v2573 = vpop.permute.xlu0 %2572
    %v2575 = vrot.slane %v497, 2
    %v2577 = vmul.f32 %v2573, %v2575
    %2578 = vset.pattern.permute.xlu0 108
    %2579 = vperm.xlu0 %2578, %v2487
    %v2580 = vpop.permute.xlu0 %2579
    %v2582 = vrot.slane %v498, 2
    %v2584 = vmul.f32 %v2580, %v2582
    %2585 = vset.pattern.permute.xlu0 109
    %2586 = vperm.xlu0 %2585, %v2487
    %v2587 = vpop.permute.xlu0 %2586
    %v2589 = vrot.slane %v499, 2
    %v2591 = vmul.f32 %v2587, %v2589
    %2592 = vset.pattern.permute.xlu0 110
    %2593 = vperm.xlu0 %2592, %v2487
    %v2594 = vpop.permute.xlu0 %2593
    %v2596 = vrot.slane %v500, 2
    %v2598 = vmul.f32 %v2594, %v2596
    %2599 = vset.pattern.permute.xlu0 111
    %2600 = vperm.xlu0 %2599, %v2487
    %v2601 = vpop.permute.xlu0 %2600
    %v2603 = vrot.slane %v501, 2
    %v2605 = vmul.f32 %v2601, %v2603
    %2606 = vset.pattern.permute.xlu0 112
    %2607 = vperm.xlu0 %2606, %v2487
    %v2608 = vpop.permute.xlu0 %2607
    %v2610 = vrot.slane %v502, 2
    %v2612 = vmul.f32 %v2608, %v2610
    %2613 = vset.pattern.permute.xlu0 113
    %2614 = vperm.xlu0 %2613, %v2487
    %v2615 = vpop.permute.xlu0 %2614
    %v2617 = vrot.slane %v503, 2
    %v2619 = vmul.f32 %v2615, %v2617
    %2620 = vset.pattern.permute.xlu0 114
    %2621 = vperm.xlu0 %2620, %v2487
    %v2622 = vpop.permute.xlu0 %2621
    %v2624 = vrot.slane %v504, 2
    %v2626 = vmul.f32 %v2622, %v2624
    %2627 = vset.pattern.permute.xlu0 115
    %2628 = vperm.xlu0 %2627, %v2487
    %v2629 = vpop.permute.xlu0 %2628
    %v2631 = vrot.slane %v505, 2
    %v2633 = vmul.f32 %v2629, %v2631
    %2634 = vset.pattern.permute.xlu0 116
    %2635 = vperm.xlu0 %2634, %v2487
    %v2636 = vpop.permute.xlu0 %2635
    %v2638 = vrot.slane %v506, 2
    %v2640 = vmul.f32 %v2636, %v2638
    %2641 = vset.pattern.permute.xlu0 117
    %2642 = vperm.xlu0 %2641, %v2487
    %v2643 = vpop.permute.xlu0 %2642
    %v2645 = vrot.slane %v507, 2
    %v2647 = vmul.f32 %v2643, %v2645
    %2648 = vset.pattern.permute.xlu0 118
    %2649 = vperm.xlu0 %2648, %v2487
    %v2650 = vpop.permute.xlu0 %2649
    %v2652 = vrot.slane %v508, 2
    %v2654 = vmul.f32 %v2650, %v2652
    %2655 = vset.pattern.permute.xlu0 119
    %2656 = vperm.xlu0 %2655, %v2487
    %v2657 = vpop.permute.xlu0 %2656
    %v2659 = vrot.slane %v509, 2
    %v2661 = vmul.f32 %v2657, %v2659
    %2662 = vset.pattern.permute.xlu0 120
    %2663 = vperm.xlu0 %2662, %v2487
    %v2664 = vpop.permute.xlu0 %2663
    %v2666 = vrot.slane %v510, 2
    %v2668 = vmul.f32 %v2664, %v2666
    %2669 = vset.pattern.permute.xlu0 121
    %2670 = vperm.xlu0 %2669, %v2487
    %v2671 = vpop.permute.xlu0 %2670
    %v2673 = vrot.slane %v511, 2
    %v2675 = vmul.f32 %v2671, %v2673
    %2676 = vset.pattern.permute.xlu0 122
    %2677 = vperm.xlu0 %2676, %v2487
    %v2678 = vpop.permute.xlu0 %2677
    %v2680 = vrot.slane %v512, 2
    %v2682 = vmul.f32 %v2678, %v2680
    %2683 = vset.pattern.permute.xlu0 123
    %2684 = vperm.xlu0 %2683, %v2487
    %v2685 = vpop.permute.xlu0 %2684
    %v2687 = vrot.slane %v513, 2
    %v2689 = vmul.f32 %v2685, %v2687
    %2690 = vset.pattern.permute.xlu0 124
    %2691 = vperm.xlu0 %2690, %v2487
    %v2692 = vpop.permute.xlu0 %2691
    %v2694 = vrot.slane %v514, 2
    %v2696 = vmul.f32 %v2692, %v2694
    %2697 = vset.pattern.permute.xlu0 125
    %2698 = vperm.xlu0 %2697, %v2487
    %v2699 = vpop.permute.xlu0 %2698
    %v2701 = vrot.slane %v515, 2
    %v2703 = vmul.f32 %v2699, %v2701
    %2704 = vset.pattern.permute.xlu0 126
    %2705 = vperm.xlu0 %2704, %v2487
    %v2706 = vpop.permute.xlu0 %2705
    %v2708 = vrot.slane %v516, 2
    %v2710 = vmul.f32 %v2706, %v2708
    %2711 = vset.pattern.permute.xlu0 127
    %2712 = vperm.xlu0 %2711, %v2487
    %v2713 = vpop.permute.xlu0 %2712
    %v2715 = vrot.slane %v517, 2
    %v2717 = vmul.f32 %v2713, %v2715
    %v2718 = vadd.f32 %v2500, %v2507
    %v2719 = vadd.f32 %v2514, %v2521
    %v2720 = vadd.f32 %v2528, %v2535
    %v2721 = vadd.f32 %v2542, %v2549
    %v2722 = vadd.f32 %v2556, %v2563
    %v2723 = vadd.f32 %v2570, %v2577
    %v2724 = vadd.f32 %v2584, %v2591
    %v2725 = vadd.f32 %v2598, %v2605
    %v2726 = vadd.f32 %v2612, %v2619
    %v2727 = vadd.f32 %v2626, %v2633
    %v2728 = vadd.f32 %v2640, %v2647
    %v2729 = vadd.f32 %v2654, %v2661
    %v2730 = vadd.f32 %v2668, %v2675
    %v2731 = vadd.f32 %v2682, %v2689
    %v2732 = vadd.f32 %v2696, %v2703
    %v2733 = vadd.f32 %v2710, %v2717
    %v2734 = vadd.f32 %v2718, %v2719
    %v2735 = vadd.f32 %v2720, %v2721
    %v2736 = vadd.f32 %v2722, %v2723
    %v2737 = vadd.f32 %v2724, %v2725
    %v2738 = vadd.f32 %v2726, %v2727
    %v2739 = vadd.f32 %v2728, %v2729
    %v2740 = vadd.f32 %v2730, %v2731
    %v2741 = vadd.f32 %v2732, %v2733
    %v2742 = vadd.f32 %v2734, %v2735
    %v2743 = vadd.f32 %v2736, %v2737
    %v2744 = vadd.f32 %v2738, %v2739
    %v2745 = vadd.f32 %v2740, %v2741
    %v2746 = vadd.f32 %v2742, %v2743
    %v2747 = vadd.f32 %v2744, %v2745
    %v2748 = vadd.f32 %v2746, %v2747
    %v2750 = vrot.slane %v2748, 7
    %v2752 = vadd.f32 %v672, %v2750
    %v2753 = vxor.u32 %v2752, 2147483648
    %v2754 = vmul.f32 %v2753, 1.442695
    %v2755 = vpow.pop %v2754
    %v2756 = vadd.f32 %v2755, 1.0
    %v2757 = vrcp.pop %v2756
    %v2758 = vmul.f32 1.0, %v2757
    %v2759 = vmul.f32 %v2758, 2.0
    %v2760 = vsub.f32 %v2759, 1.0
    %v2762 = vrot.slane %v2481, 7
    %v2764 = vmul.f32 %v2758, %v2762
    %2766 = vrot.lane.b32.xlu0 %v2760, 64
    %v2767 = vpop.permute.xlu0 %2766
    %v2769 = vmul.f32 %v2758, %v2767
    %2771 = vrot.lane.b32.xlu0 %v2769, 32
    %v2772 = vpop.permute.xlu0 %2771
    %v2774 = vadd.f32 %v2764, %v2772
    %v2775 = vtanh.pop %v2774
    %2777 = vrot.lane.b32.xlu0 %v2775, 64
    %v2778 = vpop.permute.xlu0 %2777
    %v2780 = vmul.f32 %v2758, %v2778
    %2782 = vrot.lane.b32.xlu0 %v2780, 32
    %v2783 = vpop.permute.xlu0 %2782
    %vm2785 = vcmask 261127
    %2786 = vst.msk [vmem:[#allocation2] sm:$0x80] %vm2785, %v2783
    %v2787 = vld [vmem:[#allocation3 + $0x58] sm:$0xff]
    %v2788 = vld [vmem:[#allocation3 + $0x60] sm:$0xff]
    %v2789 = vld [vmem:[#allocation3 + $0x68] sm:$0xff]
    %v2790 = vld [vmem:[#allocation3 + $0x70] sm:$0xff]
    %v2791 = vld [vmem:[#allocation3 + $0x78] sm:$0x1]
    %v2792 = vld [vmem:[#allocation2] sm:$0xff]
    %v2793 = vlaneseq
    %v2794 = vshrl.u32 %v2793, 7
    %v2795 = vsub.s32 0, %v2794
    %v2796 = vrot.slane %v2791, %v2795
    %vm2797 = vcmask 261120
    %v2799 = vsel %vm2797, %v2792, 0
    %2801 = vmatprep.subr.mxu0 0.0
    %2802 = vmatpush1.msra.mxu0 %v2787
    %2803 = vmatprep.subr.mxu0 0.0
    %2804 = vmatpush1.msra.mxu0 %v2788
    %2805 = vmatprep.subr.mxu0 0.0
    %2806 = vmatpush1.msra.mxu0 %v2789
    %2807 = vmatprep.subr.mxu0 0.0
    %2808 = vmatpush1.msra.mxu0 %v2790
    %2809 = vmatprep.subr.mxu0 0.0
    %2810 = vmatpush1.msra.mxu0 0.0
    %2811 = vmatprep.subr.mxu0 0.0
    %2812 = vmatpush1.msra.mxu0 0.0
    %2813 = vmatprep.subr.mxu0 0.0
    %2814 = vmatpush1.msra.mxu0 0.0
    %2815 = vmatprep.subr.mxu0 0.0
    %2816 = vmatpush1.msra.mxu0 0.0
    %2817 = vmatprep.subr.mxu0 0.0
    %2818 = vmatpush1.msra.mxu0 0.0
    %2819 = vmatprep.subr.mxu0 0.0
    %2820 = vmatpush1.msra.mxu0 0.0
    %2821 = vmatprep.subr.mxu0 0.0
    %2822 = vmatpush1.msra.mxu0 0.0
    %2823 = vmatprep.subr.mxu0 0.0
    %2824 = vmatpush1.msra.mxu0 0.0
    %2825 = vmatprep.subr.mxu0 0.0
    %2826 = vmatpush1.msra.mxu0 0.0
    %2827 = vmatprep.subr.mxu0 0.0
    %2828 = vmatpush1.msra.mxu0 0.0
    %2829 = vmatprep.subr.mxu0 0.0
    %2830 = vmatpush1.msra.mxu0 0.0
    %2831 = vmatprep.subr.mxu0 0.0
    %2832 = vmatpush1.msra.mxu0 0.0
    %2833 = vmatprep.subr.mxu0 0.0
    %2834 = vmatpush1.msra.mxu0 0.0
    %2835 = vmatprep.subr.mxu0 0.0
    %2836 = vmatpush1.msra.mxu0 0.0
    %2837 = vmatprep.subr.mxu0 0.0
    %2838 = vmatpush1.msra.mxu0 0.0
    %2839 = vmatprep.subr.mxu0 0.0
    %2840 = vmatpush1.msra.mxu0 0.0
    %2841 = vmatprep.subr.mxu0 0.0
    %2842 = vmatpush1.msra.mxu0 0.0
    %2843 = vmatprep.subr.mxu0 0.0
    %2844 = vmatpush1.msra.mxu0 0.0
    %2845 = vmatprep.subr.mxu0 0.0
    %2846 = vmatpush1.msra.mxu0 0.0
    %2847 = vmatprep.subr.mxu0 0.0
    %2848 = vmatpush1.msra.mxu0 0.0
    %2849 = vmatprep.subr.mxu0 0.0
    %2850 = vmatpush1.msra.mxu0 0.0
    %2851 = vmatprep.subr.mxu0 0.0
    %2852 = vmatpush1.msra.mxu0 0.0
    %2853 = vmatprep.subr.mxu0 0.0
    %2854 = vmatpush1.msra.mxu0 0.0
    %2855 = vmatprep.subr.mxu0 0.0
    %2856 = vmatpush1.msra.mxu0 0.0
    %2857 = vmatprep.subr.mxu0 0.0
    %2858 = vmatpush1.msra.mxu0 0.0
    %2859 = vmatprep.subr.mxu0 0.0
    %2860 = vmatpush1.msra.mxu0 0.0
    %2861 = vmatprep.subr.mxu0 0.0
    %2862 = vmatpush1.msra.mxu0 0.0
    %2863 = vmatprep.subr.mxu0 0.0
    %2864 = vmatpush1.msra.mxu0 0.0
    %2865 = vmatprep.mubr.f32.mxu0 0.0
    %2866 = vmatmul.mubr.f32.gmra.mrb[0].mxu0 %v2799
    %v2867 = vpop.f32.mrb[0].mxu0
    %v2868 = vadd.f32 %v2796, %v2867
    %v2869 = vpop.f32.mrb[0].mxu0
    %2870 = vdwg.mxu0
    %v2871 = vlaneseq
    %v2872 = vand.u32 %v2871, 127
    %vm2873 = vcmp.lt.s32.totalorder %v2872, 10
    %v2874 = vsel %vm2873, %v2868, -1e+30
    %2875 = vmax.xlane.f32.xlu0 %v2874
    %v2876 = vpop.xlane.xlu0 %2875
    %v2877 = vsub.f32 %v2874, %v2876
    %v2878 = vmul.f32 %v2877, 1.442695
    %v2879 = vpow.pop %v2878
    %2880 = vadd.xlane.f32.xlu0 %v2879
    %v2881 = vpop.xlane.xlu0 %2880
    %v2882 = vlog2.pop %v2881
    %v2883 = vmul.f32 %v2882, 0.6931472
    %v2884 = vsub.f32 %v2877, %v2883
    %v2885 = vsel %vm2873, %v2884, 0.0
    %2886 = vst [vmem:[#allocation6] sm:$0xff] %v2885
    // Predicated region
    $region22: #{tpu_custom_call.1} parent=1 // pred_check
      _
    $region23: #{tpu_custom_call.1} parent=1 // pred_check_branch
      %2888 = sbr.rel (0) target = $region25
    $region24: #{tpu_custom_call.1} parent=1 // pred_region
      %s2890 = ssub.s32 128, 128
      %2891 = vsyncadd [#allocation5], %s2890
      %s2893 = sshll.u32 [#allocation6], 4
      %s2894 = int_to_ptr.vmem [resolvable:$true] %s2893
      %2896 = dma.vmem_to_hbm [thread:$0]  %s2894, 128, %s4, [#allocation5]
    $region25: #{tpu_custom_call.1} parent=1 // pred_fallthru
      _
    // Predicated region
    $region26: #{tpu_custom_call.1} parent=1 // pred_check
      _
    $region27: #{tpu_custom_call.1} parent=1 // pred_check_branch
      %2898 = sbr.rel (0) target = $region29
    $region28: #{tpu_custom_call.1} parent=1 // pred_region
      %2899 = dma.done [#allocation5], 128
    $region29: #{tpu_custom_call.1} parent=1 // pred_fallthru
      _
    %2900 = vsyncpa [#allocation4], 1
    %2901 = vsyncpa [#allocation5], 1

</llo_original>
